<compile_context>
chip_gen: v7x
topology: tpu7x:2x2x1
jax: 0.10.0
libtpu: 0.0.40
codegen_flags: <defaults>
</compile_context>

<pallas_src>
from functools import partial

import jax
import jax.numpy as jnp
from jax.experimental import pallas as pl
from jax.experimental.pallas import tpu as pltpu


_VMEM_LIMIT_BYTES = 64 * 1024 * 1024    # scoped-VMEM cap handed to Mosaic
_VMEM_BUDGET_BYTES = 32 * 1024 * 1024   # conservative per-grid-step sizing
                                        # budget (safe on v5e/v6e/v7x)


def _attention_kernel(x_ref, wqkv_ref, wproj_ref, bproj_ref, o_ref, ctx_ref,
                      *, num_heads: int, scale: float):
    # x_ref:     (Bt, N, C)    bf16   batch tile
    # wqkv_ref:  (H, C, 3D)    bf16   head-major fused QKV weight
    # wproj_ref: (C, C)        bf16   output projection
    # bproj_ref: (1, C)        f32    output projection bias
    # o_ref:     (Bt, N, C)    input dtype
    # ctx_ref:   (Bt*N, C)     bf16   VMEM scratch: per-head context slabs
    Bt, N, C = x_ref.shape
    H = num_heads
    D = C // H

    x2d = x_ref[...].reshape(Bt * N, C)                       # bf16

    # Static unroll over heads (H is small). Each head's temporaries die at
    # the scratch store, so no large value is carried across iterations.
    for h in range(H):
        # Per-head QKV projection: full K=C contraction, only 3D output lanes.
        qkv_h = jnp.dot(x2d, wqkv_ref[h],
                        preferred_element_type=jnp.float32)   # (Bt*N, 3D) f32
        # Scale folded into q (N*D multiplies instead of N*N), then bf16.
        q = (qkv_h[:, :D] * scale).astype(jnp.bfloat16).reshape(Bt, N, D)
        k = qkv_h[:, D:2 * D].astype(jnp.bfloat16).reshape(Bt, N, D)
        v = qkv_h[:, 2 * D:].astype(jnp.bfloat16).reshape(Bt, N, D)

        # NT batched matmul (contract last dims) -> no explicit K transpose.
        s = jnp.einsum('bnd,bmd->bnm', q, k,
                       preferred_element_type=jnp.float32)    # (Bt, N, N) f32
        # matches: attn = attn - attn.max(-1, keepdim); softmax(-1)
        s = s - jnp.max(s, axis=-1, keepdims=True)
        e = jnp.exp(s)                                        # f32
        denom = jnp.sum(e, axis=-1, keepdims=True)            # (Bt, N, 1) f32
        # attn_drop(p=0.0) -> identity.
        # Unnormalized PV matmul; normalize the (N, D) context instead of the
        # (N, N) probabilities.
        ctx = jnp.einsum('bnm,bmd->bnd', e.astype(jnp.bfloat16), v,
                         preferred_element_type=jnp.float32)  # (Bt, N, D) f32
        ctx = ctx * pl.reciprocal(denom, approx=True)
        ctx_ref[:, h * D:(h + 1) * D] = (
            ctx.reshape(Bt * N, D).astype(jnp.bfloat16))

    # Single full-depth (K=C) output projection + bias.
    out = jnp.dot(ctx_ref[...], wproj_ref[...],
                  preferred_element_type=jnp.float32) + bproj_ref[...]
    # proj_drop(p=0.0) -> identity.
    o_ref[...] = out.reshape(Bt, N, C).astype(o_ref.dtype)


def _pick_batch_tile(B, N, C, D, budget_bytes):
    """Largest divisor of B whose per-step VMEM estimate fits the budget,
    then shrunk (if possible) so the grid has >= 2 steps for megacore."""
    H = C // D

    def vmem_estimate(bt):
        rows = bt * N
        x_blk = 2 * rows * C * 2              # bf16 input block, double-buffered
        o_blk = 2 * rows * C * 4              # f32 output block, double-buffered
        weights = H * C * 3 * D * 2 + C * C * 2 + C * 4   # single-buffered
        ctx_scr = rows * C * 2                # bf16 context scratch
        # dominant transients: f32 scores + exp, per-head f32 qkv, f32 proj out
        live = 2 * bt * N * N * 4 + 2 * rows * 3 * D * 4 + rows * C * 4
        return x_blk + o_blk + weights + ctx_scr + live

    bt = 1
    for cand in range(B, 0, -1):
        if B % cand == 0 and vmem_estimate(cand) <= budget_bytes:
            bt = cand
            break
    # Keep grid >= 2 so both TensorCores get work on v7x (parallel axis).
    if B >= 2 and B // bt < 2:
        for cand in range(bt - 1, 0, -1):
            if B % cand == 0 and B // cand >= 2:
                bt = cand
                break
    return bt


def attention_pallas(x, w_qkv, w_proj, b_proj, *, num_heads: int):
    B, N, C = x.shape
    assert C % num_heads == 0
    H = num_heads
    D = C // H
    scale = D ** (-0.5)

    bt = _pick_batch_tile(B, N, C, D, _VMEM_BUDGET_BYTES)
    out_dtype = x.dtype

    # bf16 MXU inputs (halves weight/activation DMA bytes and VMEM footprint);
    # accumulation stays f32 inside the kernel.
    x_bf = x.astype(jnp.bfloat16)
    # Head-major QKV weight: (C, 3C) -> (H, C, 3D); columns of head h are
    # [q_h | k_h | v_h], so the kernel never slices lane offsets of a big
    # (Bt*N, 3C) intermediate.
    wqkv_h = (w_qkv.reshape(C, 3, H, D).transpose(2, 0, 1, 3)
              .reshape(H, C, 3 * D).astype(jnp.bfloat16))
    wproj_bf = w_proj.astype(jnp.bfloat16)                    # plain (C, C)
    bproj_f32 = b_proj.astype(jnp.float32).reshape(1, C)

    kernel = partial(_attention_kernel, num_heads=H, scale=scale)

    def build(single_buffer_weights: bool):
        wkw = ({'pipeline_mode': pl.Buffered(1)}
               if single_buffer_weights else {})
        return pl.pallas_call(
            kernel,
            out_shape=jax.ShapeDtypeStruct((B, N, C), out_dtype),
            grid_spec=pltpu.PrefetchScalarGridSpec(
                num_scalar_prefetch=0,
                grid=(B // bt,),
                in_specs=[
                    pl.BlockSpec((bt, N, C), lambda i: (i, 0, 0)),        # x
                    pl.BlockSpec((H, C, 3 * D), lambda i: (0, 0, 0), **wkw),
                    pl.BlockSpec((C, C), lambda i: (0, 0), **wkw),        # Wp
                    pl.BlockSpec((1, C), lambda i: (0, 0), **wkw),        # bp
                ],
                out_specs=pl.BlockSpec((bt, N, C), lambda i: (i, 0, 0)),
                scratch_shapes=[pltpu.VMEM((bt * N, C), jnp.bfloat16)],
            ),
            compiler_params=pltpu.CompilerParams(
                dimension_semantics=("parallel",),
                vmem_limit_bytes=_VMEM_LIMIT_BYTES),
        )

    try:
        return build(True)(x_bf, wqkv_h, wproj_bf, bproj_f32)
    except Exception:
        # Fallback for JAX builds that reject pipeline_mode / pl.Buffered.
        return build(False)(x_bf, wqkv_h, wproj_bf, bproj_f32)


def attention_reference(x, w_qkv, w_proj, b_proj, *, num_heads: int):
    """Pure-JAX f32 reference mirroring the PyTorch forward."""
    B, N, C = x.shape
    D = C // num_heads
    scale = D ** (-0.5)
    qkv = x @ w_qkv                                          # (B, N, 3C)
    qkv = qkv.reshape(B, N, 3, num_heads, D)
    qkv = jnp.transpose(qkv, (2, 0, 3, 1, 4))                # (3, B, H, N, D)
    q, k, v = qkv[0], qkv[1], qkv[2]
    attn = (q * scale) @ jnp.swapaxes(k, -2, -1)             # (B, H, N, N)
    attn = attn - jnp.max(attn, axis=-1, keepdims=True)
    attn = jax.nn.softmax(attn, axis=-1)
    out = attn @ v                                           # (B, H, N, D)
    out = jnp.transpose(out, (0, 2, 1, 3)).reshape(B, N, C)
    return out @ w_proj + b_proj[0]


if __name__ == "__main__":
    # Small shapes consistent with the module: B=2, N=8 tokens, C=32, 8 heads.
    B, N, C, H = 2, 8, 32, 8

    key = jax.random.PRNGKey(0)
    kx, kq, kp, kb = jax.random.split(key, 4)
    x = jax.random.normal(kx, (B, N, C), dtype=jnp.float32)
    # Deterministic synthetic parameters (qkv_bias=False; proj has bias).
    w_qkv = jax.random.normal(kq, (C, 3 * C), dtype=jnp.float32) * 0.05
    w_proj = jax.random.normal(kp, (C, C), dtype=jnp.float32) * 0.05
    b_proj = jax.random.normal(kb, (1, C), dtype=jnp.float32) * 0.05

    out = attention_pallas(x, w_qkv, w_proj, b_proj, num_heads=H)
    out = jax.block_until_ready(out)

    ref = attention_reference(x, w_qkv, w_proj, b_proj, num_heads=H)
    assert out.shape == (B, N, C)
    # bf16 MXU inputs + approx reciprocal -> loosened tolerance vs f32 reference.
    assert jnp.allclose(out, ref, atol=2e-2, rtol=2e-2), "mismatch vs reference"

    print("KERNEL_OK")
</pallas_src>

<mosaic_0001>
module attributes {stable_mosaic.version = 11 : i64} {
  func.func @_attention_kernel(%arg0: i32, %arg1: memref<1x8x32xbf16, #tpu.memory_space<vmem>>, %arg2: memref<8x32x12xbf16, #tpu.memory_space<vmem>>, %arg3: memref<32x32xbf16, #tpu.memory_space<vmem>>, %arg4: memref<1x32xf32, #tpu.memory_space<vmem>>, %arg5: memref<1x8x32xf32, #tpu.memory_space<vmem>>, %arg6: memref<8x32xbf16, #tpu.memory_space<vmem>>) attributes {dimension_semantics = [#tpu.dimension_semantics<parallel>], iteration_bounds = array<i64: 2>, scalar_prefetch = 0 : i64, scratch_operands = 1 : i64, tpu.core_type = #tpu.core_type<tc>, window_params = [{transform_indices = @transform_0, window_bounds = array<i64: 1, 8, 32>}, {pipeline_mode = #tpu.pipeline_mode<synchronous>, transform_indices = @transform_1, window_bounds = array<i64: 8, 32, 12>}, {pipeline_mode = #tpu.pipeline_mode<synchronous>, transform_indices = @transform_2, window_bounds = array<i64: 32, 32>}, {pipeline_mode = #tpu.pipeline_mode<synchronous>, transform_indices = @transform_3, window_bounds = array<i64: 1, 32>}, {transform_indices = @transform_4, window_bounds = array<i64: 1, 8, 32>}]} {
    %c0 = arith.constant 0 : index
    %c0_0 = arith.constant 0 : index
    %c0_1 = arith.constant 0 : index
    %0 = vector.load %arg1[%c0, %c0_0, %c0_1] : memref<1x8x32xbf16, #tpu.memory_space<vmem>>, vector<1x8x32xbf16>
    %1 = vector.shape_cast %0 : vector<1x8x32xbf16> to vector<8x32xbf16>
    %c0_2 = arith.constant 0 : index
    %c0_3 = arith.constant 0 : index
    %c0_4 = arith.constant 0 : index
    %2 = vector.load %arg2[%c0_2, %c0_3, %c0_4] : memref<8x32x12xbf16, #tpu.memory_space<vmem>>, vector<1x32x12xbf16>
    %3 = vector.shape_cast %2 : vector<1x32x12xbf16> to vector<32x12xbf16>
    %cst = arith.constant dense<0.000000e+00> : vector<8x12xf32>
    %4 = tpu.matmul %1, %3, %cst {dimension_numbers = #tpu.dot_dimension_numbers<[1], [0], [0], [1], [0, 0, 1, 1], [], []>} : vector<8x32xbf16>, vector<32x12xbf16>, vector<8x12xf32> -> vector<8x12xf32>
    %5 = vector.extract_strided_slice %4 {offsets = [0, 0], sizes = [8, 4], strides = [1, 1]} : vector<8x12xf32> to vector<8x4xf32>
    %cst_5 = arith.constant 5.000000e-01 : f32
    %6 = vector.broadcast %cst_5 : f32 to vector<8x4xf32>
    %7 = arith.mulf %5, %6 : vector<8x4xf32>
    %8 = arith.truncf %7 : vector<8x4xf32> to vector<8x4xbf16>
    %9 = vector.shape_cast %8 : vector<8x4xbf16> to vector<1x8x4xbf16>
    %10 = vector.extract_strided_slice %4 {offsets = [0, 4], sizes = [8, 4], strides = [1, 1]} : vector<8x12xf32> to vector<8x4xf32>
    %11 = arith.truncf %10 : vector<8x4xf32> to vector<8x4xbf16>
    %12 = vector.shape_cast %11 : vector<8x4xbf16> to vector<1x8x4xbf16>
    %13 = vector.extract_strided_slice %4 {offsets = [0, 8], sizes = [8, 4], strides = [1, 1]} : vector<8x12xf32> to vector<8x4xf32>
    %14 = arith.truncf %13 : vector<8x4xf32> to vector<8x4xbf16>
    %15 = vector.shape_cast %14 : vector<8x4xbf16> to vector<1x8x4xbf16>
    "tpu.trace_start"() <{level = 10 : i32, message = "bnd,bmd->bnm"}> : () -> ()
    %cst_6 = arith.constant dense<0.000000e+00> : vector<1x8x8xf32>
    %16 = tpu.matmul %9, %12, %cst_6 {dimension_numbers = #tpu.dot_dimension_numbers<[2], [2], [1], [1], [0, 0, 0, 1, 1, 1], [0], [0]>} : vector<1x8x4xbf16>, vector<1x8x4xbf16>, vector<1x8x8xf32> -> vector<1x8x8xf32>
    "tpu.trace_stop"() : () -> ()
    %cst_7 = arith.constant dense<0xFF800000> : vector<1x8xf32>
    %17 = vector.multi_reduction <maximumf>, %16, %cst_7 [2] : vector<1x8x8xf32> to vector<1x8xf32>
    %18 = vector.shape_cast %17 : vector<1x8xf32> to vector<1x8x1xf32>
    %19 = vector.broadcast %18 : vector<1x8x1xf32> to vector<1x8x8xf32>
    %20 = arith.subf %16, %19 : vector<1x8x8xf32>
    %21 = math.exp %20 : vector<1x8x8xf32>
    %cst_8 = arith.constant dense<0.000000e+00> : vector<1x8xf32>
    %22 = vector.multi_reduction <add>, %21, %cst_8 [2] : vector<1x8x8xf32> to vector<1x8xf32>
    %23 = vector.shape_cast %22 : vector<1x8xf32> to vector<1x8x1xf32>
    %24 = arith.truncf %21 : vector<1x8x8xf32> to vector<1x8x8xbf16>
    "tpu.trace_start"() <{level = 10 : i32, message = "bnm,bmd->bnd"}> : () -> ()
    %cst_9 = arith.constant dense<0.000000e+00> : vector<1x8x4xf32>
    %25 = tpu.matmul %24, %15, %cst_9 {dimension_numbers = #tpu.dot_dimension_numbers<[2], [1], [1], [2], [0, 0, 0, 1, 1, 2], [0], [0]>} : vector<1x8x8xbf16>, vector<1x8x4xbf16>, vector<1x8x4xf32> -> vector<1x8x4xf32>
    "tpu.trace_stop"() : () -> ()
    %26 = tpu.reciprocal %23 {approx = true} : vector<1x8x1xf32> -> vector<1x8x1xf32>
    %27 = vector.broadcast %26 : vector<1x8x1xf32> to vector<1x8x4xf32>
    %28 = arith.mulf %25, %27 : vector<1x8x4xf32>
    %29 = vector.shape_cast %28 : vector<1x8x4xf32> to vector<8x4xf32>
    %30 = arith.truncf %29 : vector<8x4xf32> to vector<8x4xbf16>
    %c0_10 = arith.constant 0 : index
    %c0_11 = arith.constant 0 : index
    %31 = vector.load %arg6[%c0_10, %c0_11] : memref<8x32xbf16, #tpu.memory_space<vmem>>, vector<8x4xbf16>
    tpu.vector_store %arg6[%c0_10, %c0_11], %30 {strides = array<i32>} : memref<8x32xbf16, #tpu.memory_space<vmem>>, vector<8x4xbf16>,
    %c1 = arith.constant 1 : index
    %c0_12 = arith.constant 0 : index
    %c0_13 = arith.constant 0 : index
    %32 = vector.load %arg2[%c1, %c0_12, %c0_13] : memref<8x32x12xbf16, #tpu.memory_space<vmem>>, vector<1x32x12xbf16>
    %33 = vector.shape_cast %32 : vector<1x32x12xbf16> to vector<32x12xbf16>
    %cst_14 = arith.constant dense<0.000000e+00> : vector<8x12xf32>
    %34 = tpu.matmul %1, %33, %cst_14 {dimension_numbers = #tpu.dot_dimension_numbers<[1], [0], [0], [1], [0, 0, 1, 1], [], []>} : vector<8x32xbf16>, vector<32x12xbf16>, vector<8x12xf32> -> vector<8x12xf32>
    %35 = vector.extract_strided_slice %34 {offsets = [0, 0], sizes = [8, 4], strides = [1, 1]} : vector<8x12xf32> to vector<8x4xf32>
    %cst_15 = arith.constant 5.000000e-01 : f32
    %36 = vector.broadcast %cst_15 : f32 to vector<8x4xf32>
    %37 = arith.mulf %35, %36 : vector<8x4xf32>
    %38 = arith.truncf %37 : vector<8x4xf32> to vector<8x4xbf16>
    %39 = vector.shape_cast %38 : vector<8x4xbf16> to vector<1x8x4xbf16>
    %40 = vector.extract_strided_slice %34 {offsets = [0, 4], sizes = [8, 4], strides = [1, 1]} : vector<8x12xf32> to vector<8x4xf32>
    %41 = arith.truncf %40 : vector<8x4xf32> to vector<8x4xbf16>
    %42 = vector.shape_cast %41 : vector<8x4xbf16> to vector<1x8x4xbf16>
    %43 = vector.extract_strided_slice %34 {offsets = [0, 8], sizes = [8, 4], strides = [1, 1]} : vector<8x12xf32> to vector<8x4xf32>
    %44 = arith.truncf %43 : vector<8x4xf32> to vector<8x4xbf16>
    %45 = vector.shape_cast %44 : vector<8x4xbf16> to vector<1x8x4xbf16>
    "tpu.trace_start"() <{level = 10 : i32, message = "bnd,bmd->bnm"}> : () -> ()
    %cst_16 = arith.constant dense<0.000000e+00> : vector<1x8x8xf32>
    %46 = tpu.matmul %39, %42, %cst_16 {dimension_numbers = #tpu.dot_dimension_numbers<[2], [2], [1], [1], [0, 0, 0, 1, 1, 1], [0], [0]>} : vector<1x8x4xbf16>, vector<1x8x4xbf16>, vector<1x8x8xf32> -> vector<1x8x8xf32>
    "tpu.trace_stop"() : () -> ()
    %cst_17 = arith.constant dense<0xFF800000> : vector<1x8xf32>
    %47 = vector.multi_reduction <maximumf>, %46, %cst_17 [2] : vector<1x8x8xf32> to vector<1x8xf32>
    %48 = vector.shape_cast %47 : vector<1x8xf32> to vector<1x8x1xf32>
    %49 = vector.broadcast %48 : vector<1x8x1xf32> to vector<1x8x8xf32>
    %50 = arith.subf %46, %49 : vector<1x8x8xf32>
    %51 = math.exp %50 : vector<1x8x8xf32>
    %cst_18 = arith.constant dense<0.000000e+00> : vector<1x8xf32>
    %52 = vector.multi_reduction <add>, %51, %cst_18 [2] : vector<1x8x8xf32> to vector<1x8xf32>
    %53 = vector.shape_cast %52 : vector<1x8xf32> to vector<1x8x1xf32>
    %54 = arith.truncf %51 : vector<1x8x8xf32> to vector<1x8x8xbf16>
    "tpu.trace_start"() <{level = 10 : i32, message = "bnm,bmd->bnd"}> : () -> ()
    %cst_19 = arith.constant dense<0.000000e+00> : vector<1x8x4xf32>
    %55 = tpu.matmul %54, %45, %cst_19 {dimension_numbers = #tpu.dot_dimension_numbers<[2], [1], [1], [2], [0, 0, 0, 1, 1, 2], [0], [0]>} : vector<1x8x8xbf16>, vector<1x8x4xbf16>, vector<1x8x4xf32> -> vector<1x8x4xf32>
    "tpu.trace_stop"() : () -> ()
    %56 = tpu.reciprocal %53 {approx = true} : vector<1x8x1xf32> -> vector<1x8x1xf32>
    %57 = vector.broadcast %56 : vector<1x8x1xf32> to vector<1x8x4xf32>
    %58 = arith.mulf %55, %57 : vector<1x8x4xf32>
    %59 = vector.shape_cast %58 : vector<1x8x4xf32> to vector<8x4xf32>
    %60 = arith.truncf %59 : vector<8x4xf32> to vector<8x4xbf16>
    %c0_20 = arith.constant 0 : index
    %c4 = arith.constant 4 : index
    %61 = vector.load %arg6[%c0_20, %c4] : memref<8x32xbf16, #tpu.memory_space<vmem>>, vector<8x4xbf16>
    tpu.vector_store %arg6[%c0_20, %c4], %60 {strides = array<i32>} : memref<8x32xbf16, #tpu.memory_space<vmem>>, vector<8x4xbf16>,
    %c2 = arith.constant 2 : index
    %c0_21 = arith.constant 0 : index
    %c0_22 = arith.constant 0 : index
    %62 = vector.load %arg2[%c2, %c0_21, %c0_22] : memref<8x32x12xbf16, #tpu.memory_space<vmem>>, vector<1x32x12xbf16>
    %63 = vector.shape_cast %62 : vector<1x32x12xbf16> to vector<32x12xbf16>
    %cst_23 = arith.constant dense<0.000000e+00> : vector<8x12xf32>
    %64 = tpu.matmul %1, %63, %cst_23 {dimension_numbers = #tpu.dot_dimension_numbers<[1], [0], [0], [1], [0, 0, 1, 1], [], []>} : vector<8x32xbf16>, vector<32x12xbf16>, vector<8x12xf32> -> vector<8x12xf32>
    %65 = vector.extract_strided_slice %64 {offsets = [0, 0], sizes = [8, 4], strides = [1, 1]} : vector<8x12xf32> to vector<8x4xf32>
    %cst_24 = arith.constant 5.000000e-01 : f32
    %66 = vector.broadcast %cst_24 : f32 to vector<8x4xf32>
    %67 = arith.mulf %65, %66 : vector<8x4xf32>
    %68 = arith.truncf %67 : vector<8x4xf32> to vector<8x4xbf16>
    %69 = vector.shape_cast %68 : vector<8x4xbf16> to vector<1x8x4xbf16>
    %70 = vector.extract_strided_slice %64 {offsets = [0, 4], sizes = [8, 4], strides = [1, 1]} : vector<8x12xf32> to vector<8x4xf32>
    %71 = arith.truncf %70 : vector<8x4xf32> to vector<8x4xbf16>
    %72 = vector.shape_cast %71 : vector<8x4xbf16> to vector<1x8x4xbf16>
    %73 = vector.extract_strided_slice %64 {offsets = [0, 8], sizes = [8, 4], strides = [1, 1]} : vector<8x12xf32> to vector<8x4xf32>
    %74 = arith.truncf %73 : vector<8x4xf32> to vector<8x4xbf16>
    %75 = vector.shape_cast %74 : vector<8x4xbf16> to vector<1x8x4xbf16>
    "tpu.trace_start"() <{level = 10 : i32, message = "bnd,bmd->bnm"}> : () -> ()
    %cst_25 = arith.constant dense<0.000000e+00> : vector<1x8x8xf32>
    %76 = tpu.matmul %69, %72, %cst_25 {dimension_numbers = #tpu.dot_dimension_numbers<[2], [2], [1], [1], [0, 0, 0, 1, 1, 1], [0], [0]>} : vector<1x8x4xbf16>, vector<1x8x4xbf16>, vector<1x8x8xf32> -> vector<1x8x8xf32>
    "tpu.trace_stop"() : () -> ()
    %cst_26 = arith.constant dense<0xFF800000> : vector<1x8xf32>
    %77 = vector.multi_reduction <maximumf>, %76, %cst_26 [2] : vector<1x8x8xf32> to vector<1x8xf32>
    %78 = vector.shape_cast %77 : vector<1x8xf32> to vector<1x8x1xf32>
    %79 = vector.broadcast %78 : vector<1x8x1xf32> to vector<1x8x8xf32>
    %80 = arith.subf %76, %79 : vector<1x8x8xf32>
    %81 = math.exp %80 : vector<1x8x8xf32>
    %cst_27 = arith.constant dense<0.000000e+00> : vector<1x8xf32>
    %82 = vector.multi_reduction <add>, %81, %cst_27 [2] : vector<1x8x8xf32> to vector<1x8xf32>
    %83 = vector.shape_cast %82 : vector<1x8xf32> to vector<1x8x1xf32>
    %84 = arith.truncf %81 : vector<1x8x8xf32> to vector<1x8x8xbf16>
    "tpu.trace_start"() <{level = 10 : i32, message = "bnm,bmd->bnd"}> : () -> ()
    %cst_28 = arith.constant dense<0.000000e+00> : vector<1x8x4xf32>
    %85 = tpu.matmul %84, %75, %cst_28 {dimension_numbers = #tpu.dot_dimension_numbers<[2], [1], [1], [2], [0, 0, 0, 1, 1, 2], [0], [0]>} : vector<1x8x8xbf16>, vector<1x8x4xbf16>, vector<1x8x4xf32> -> vector<1x8x4xf32>
    "tpu.trace_stop"() : () -> ()
    %86 = tpu.reciprocal %83 {approx = true} : vector<1x8x1xf32> -> vector<1x8x1xf32>
    %87 = vector.broadcast %86 : vector<1x8x1xf32> to vector<1x8x4xf32>
    %88 = arith.mulf %85, %87 : vector<1x8x4xf32>
    %89 = vector.shape_cast %88 : vector<1x8x4xf32> to vector<8x4xf32>
    %90 = arith.truncf %89 : vector<8x4xf32> to vector<8x4xbf16>
    %c0_29 = arith.constant 0 : index
    %c8 = arith.constant 8 : index
    %91 = vector.load %arg6[%c0_29, %c8] : memref<8x32xbf16, #tpu.memory_space<vmem>>, vector<8x4xbf16>
    tpu.vector_store %arg6[%c0_29, %c8], %90 {strides = array<i32>} : memref<8x32xbf16, #tpu.memory_space<vmem>>, vector<8x4xbf16>,
    %c3 = arith.constant 3 : index
    %c0_30 = arith.constant 0 : index
    %c0_31 = arith.constant 0 : index
    %92 = vector.load %arg2[%c3, %c0_30, %c0_31] : memref<8x32x12xbf16, #tpu.memory_space<vmem>>, vector<1x32x12xbf16>
    %93 = vector.shape_cast %92 : vector<1x32x12xbf16> to vector<32x12xbf16>
    %cst_32 = arith.constant dense<0.000000e+00> : vector<8x12xf32>
    %94 = tpu.matmul %1, %93, %cst_32 {dimension_numbers = #tpu.dot_dimension_numbers<[1], [0], [0], [1], [0, 0, 1, 1], [], []>} : vector<8x32xbf16>, vector<32x12xbf16>, vector<8x12xf32> -> vector<8x12xf32>
    %95 = vector.extract_strided_slice %94 {offsets = [0, 0], sizes = [8, 4], strides = [1, 1]} : vector<8x12xf32> to vector<8x4xf32>
    %cst_33 = arith.constant 5.000000e-01 : f32
    %96 = vector.broadcast %cst_33 : f32 to vector<8x4xf32>
    %97 = arith.mulf %95, %96 : vector<8x4xf32>
    %98 = arith.truncf %97 : vector<8x4xf32> to vector<8x4xbf16>
    %99 = vector.shape_cast %98 : vector<8x4xbf16> to vector<1x8x4xbf16>
    %100 = vector.extract_strided_slice %94 {offsets = [0, 4], sizes = [8, 4], strides = [1, 1]} : vector<8x12xf32> to vector<8x4xf32>
    %101 = arith.truncf %100 : vector<8x4xf32> to vector<8x4xbf16>
    %102 = vector.shape_cast %101 : vector<8x4xbf16> to vector<1x8x4xbf16>
    %103 = vector.extract_strided_slice %94 {offsets = [0, 8], sizes = [8, 4], strides = [1, 1]} : vector<8x12xf32> to vector<8x4xf32>
    %104 = arith.truncf %103 : vector<8x4xf32> to vector<8x4xbf16>
    %105 = vector.shape_cast %104 : vector<8x4xbf16> to vector<1x8x4xbf16>
    "tpu.trace_start"() <{level = 10 : i32, message = "bnd,bmd->bnm"}> : () -> ()
    %cst_34 = arith.constant dense<0.000000e+00> : vector<1x8x8xf32>
    %106 = tpu.matmul %99, %102, %cst_34 {dimension_numbers = #tpu.dot_dimension_numbers<[2], [2], [1], [1], [0, 0, 0, 1, 1, 1], [0], [0]>} : vector<1x8x4xbf16>, vector<1x8x4xbf16>, vector<1x8x8xf32> -> vector<1x8x8xf32>
    "tpu.trace_stop"() : () -> ()
    %cst_35 = arith.constant dense<0xFF800000> : vector<1x8xf32>
    %107 = vector.multi_reduction <maximumf>, %106, %cst_35 [2] : vector<1x8x8xf32> to vector<1x8xf32>
    %108 = vector.shape_cast %107 : vector<1x8xf32> to vector<1x8x1xf32>
    %109 = vector.broadcast %108 : vector<1x8x1xf32> to vector<1x8x8xf32>
    %110 = arith.subf %106, %109 : vector<1x8x8xf32>
    %111 = math.exp %110 : vector<1x8x8xf32>
    %cst_36 = arith.constant dense<0.000000e+00> : vector<1x8xf32>
    %112 = vector.multi_reduction <add>, %111, %cst_36 [2] : vector<1x8x8xf32> to vector<1x8xf32>
    %113 = vector.shape_cast %112 : vector<1x8xf32> to vector<1x8x1xf32>
    %114 = arith.truncf %111 : vector<1x8x8xf32> to vector<1x8x8xbf16>
    "tpu.trace_start"() <{level = 10 : i32, message = "bnm,bmd->bnd"}> : () -> ()
    %cst_37 = arith.constant dense<0.000000e+00> : vector<1x8x4xf32>
    %115 = tpu.matmul %114, %105, %cst_37 {dimension_numbers = #tpu.dot_dimension_numbers<[2], [1], [1], [2], [0, 0, 0, 1, 1, 2], [0], [0]>} : vector<1x8x8xbf16>, vector<1x8x4xbf16>, vector<1x8x4xf32> -> vector<1x8x4xf32>
    "tpu.trace_stop"() : () -> ()
    %116 = tpu.reciprocal %113 {approx = true} : vector<1x8x1xf32> -> vector<1x8x1xf32>
    %117 = vector.broadcast %116 : vector<1x8x1xf32> to vector<1x8x4xf32>
    %118 = arith.mulf %115, %117 : vector<1x8x4xf32>
    %119 = vector.shape_cast %118 : vector<1x8x4xf32> to vector<8x4xf32>
    %120 = arith.truncf %119 : vector<8x4xf32> to vector<8x4xbf16>
    %c0_38 = arith.constant 0 : index
    %c12 = arith.constant 12 : index
    %121 = vector.load %arg6[%c0_38, %c12] : memref<8x32xbf16, #tpu.memory_space<vmem>>, vector<8x4xbf16>
    tpu.vector_store %arg6[%c0_38, %c12], %120 {strides = array<i32>} : memref<8x32xbf16, #tpu.memory_space<vmem>>, vector<8x4xbf16>,
    %c4_39 = arith.constant 4 : index
    %c0_40 = arith.constant 0 : index
    %c0_41 = arith.constant 0 : index
    %122 = vector.load %arg2[%c4_39, %c0_40, %c0_41] : memref<8x32x12xbf16, #tpu.memory_space<vmem>>, vector<1x32x12xbf16>
    %123 = vector.shape_cast %122 : vector<1x32x12xbf16> to vector<32x12xbf16>
    %cst_42 = arith.constant dense<0.000000e+00> : vector<8x12xf32>
    %124 = tpu.matmul %1, %123, %cst_42 {dimension_numbers = #tpu.dot_dimension_numbers<[1], [0], [0], [1], [0, 0, 1, 1], [], []>} : vector<8x32xbf16>, vector<32x12xbf16>, vector<8x12xf32> -> vector<8x12xf32>
    %125 = vector.extract_strided_slice %124 {offsets = [0, 0], sizes = [8, 4], strides = [1, 1]} : vector<8x12xf32> to vector<8x4xf32>
    %cst_43 = arith.constant 5.000000e-01 : f32
    %126 = vector.broadcast %cst_43 : f32 to vector<8x4xf32>
    %127 = arith.mulf %125, %126 : vector<8x4xf32>
    %128 = arith.truncf %127 : vector<8x4xf32> to vector<8x4xbf16>
    %129 = vector.shape_cast %128 : vector<8x4xbf16> to vector<1x8x4xbf16>
    %130 = vector.extract_strided_slice %124 {offsets = [0, 4], sizes = [8, 4], strides = [1, 1]} : vector<8x12xf32> to vector<8x4xf32>
    %131 = arith.truncf %130 : vector<8x4xf32> to vector<8x4xbf16>
    %132 = vector.shape_cast %131 : vector<8x4xbf16> to vector<1x8x4xbf16>
    %133 = vector.extract_strided_slice %124 {offsets = [0, 8], sizes = [8, 4], strides = [1, 1]} : vector<8x12xf32> to vector<8x4xf32>
    %134 = arith.truncf %133 : vector<8x4xf32> to vector<8x4xbf16>
    %135 = vector.shape_cast %134 : vector<8x4xbf16> to vector<1x8x4xbf16>
    "tpu.trace_start"() <{level = 10 : i32, message = "bnd,bmd->bnm"}> : () -> ()
    %cst_44 = arith.constant dense<0.000000e+00> : vector<1x8x8xf32>
    %136 = tpu.matmul %129, %132, %cst_44 {dimension_numbers = #tpu.dot_dimension_numbers<[2], [2], [1], [1], [0, 0, 0, 1, 1, 1], [0], [0]>} : vector<1x8x4xbf16>, vector<1x8x4xbf16>, vector<1x8x8xf32> -> vector<1x8x8xf32>
    "tpu.trace_stop"() : () -> ()
    %cst_45 = arith.constant dense<0xFF800000> : vector<1x8xf32>
    %137 = vector.multi_reduction <maximumf>, %136, %cst_45 [2] : vector<1x8x8xf32> to vector<1x8xf32>
    %138 = vector.shape_cast %137 : vector<1x8xf32> to vector<1x8x1xf32>
    %139 = vector.broadcast %138 : vector<1x8x1xf32> to vector<1x8x8xf32>
    %140 = arith.subf %136, %139 : vector<1x8x8xf32>
    %141 = math.exp %140 : vector<1x8x8xf32>
    %cst_46 = arith.constant dense<0.000000e+00> : vector<1x8xf32>
    %142 = vector.multi_reduction <add>, %141, %cst_46 [2] : vector<1x8x8xf32> to vector<1x8xf32>
    %143 = vector.shape_cast %142 : vector<1x8xf32> to vector<1x8x1xf32>
    %144 = arith.truncf %141 : vector<1x8x8xf32> to vector<1x8x8xbf16>
    "tpu.trace_start"() <{level = 10 : i32, message = "bnm,bmd->bnd"}> : () -> ()
    %cst_47 = arith.constant dense<0.000000e+00> : vector<1x8x4xf32>
    %145 = tpu.matmul %144, %135, %cst_47 {dimension_numbers = #tpu.dot_dimension_numbers<[2], [1], [1], [2], [0, 0, 0, 1, 1, 2], [0], [0]>} : vector<1x8x8xbf16>, vector<1x8x4xbf16>, vector<1x8x4xf32> -> vector<1x8x4xf32>
    "tpu.trace_stop"() : () -> ()
    %146 = tpu.reciprocal %143 {approx = true} : vector<1x8x1xf32> -> vector<1x8x1xf32>
    %147 = vector.broadcast %146 : vector<1x8x1xf32> to vector<1x8x4xf32>
    %148 = arith.mulf %145, %147 : vector<1x8x4xf32>
    %149 = vector.shape_cast %148 : vector<1x8x4xf32> to vector<8x4xf32>
    %150 = arith.truncf %149 : vector<8x4xf32> to vector<8x4xbf16>
    %c0_48 = arith.constant 0 : index
    %c16 = arith.constant 16 : index
    %151 = vector.load %arg6[%c0_48, %c16] : memref<8x32xbf16, #tpu.memory_space<vmem>>, vector<8x4xbf16>
    tpu.vector_store %arg6[%c0_48, %c16], %150 {strides = array<i32>} : memref<8x32xbf16, #tpu.memory_space<vmem>>, vector<8x4xbf16>,
    %c5 = arith.constant 5 : index
    %c0_49 = arith.constant 0 : index
    %c0_50 = arith.constant 0 : index
    %152 = vector.load %arg2[%c5, %c0_49, %c0_50] : memref<8x32x12xbf16, #tpu.memory_space<vmem>>, vector<1x32x12xbf16>
    %153 = vector.shape_cast %152 : vector<1x32x12xbf16> to vector<32x12xbf16>
    %cst_51 = arith.constant dense<0.000000e+00> : vector<8x12xf32>
    %154 = tpu.matmul %1, %153, %cst_51 {dimension_numbers = #tpu.dot_dimension_numbers<[1], [0], [0], [1], [0, 0, 1, 1], [], []>} : vector<8x32xbf16>, vector<32x12xbf16>, vector<8x12xf32> -> vector<8x12xf32>
    %155 = vector.extract_strided_slice %154 {offsets = [0, 0], sizes = [8, 4], strides = [1, 1]} : vector<8x12xf32> to vector<8x4xf32>
    %cst_52 = arith.constant 5.000000e-01 : f32
    %156 = vector.broadcast %cst_52 : f32 to vector<8x4xf32>
    %157 = arith.mulf %155, %156 : vector<8x4xf32>
    %158 = arith.truncf %157 : vector<8x4xf32> to vector<8x4xbf16>
    %159 = vector.shape_cast %158 : vector<8x4xbf16> to vector<1x8x4xbf16>
    %160 = vector.extract_strided_slice %154 {offsets = [0, 4], sizes = [8, 4], strides = [1, 1]} : vector<8x12xf32> to vector<8x4xf32>
    %161 = arith.truncf %160 : vector<8x4xf32> to vector<8x4xbf16>
    %162 = vector.shape_cast %161 : vector<8x4xbf16> to vector<1x8x4xbf16>
    %163 = vector.extract_strided_slice %154 {offsets = [0, 8], sizes = [8, 4], strides = [1, 1]} : vector<8x12xf32> to vector<8x4xf32>
    %164 = arith.truncf %163 : vector<8x4xf32> to vector<8x4xbf16>
    %165 = vector.shape_cast %164 : vector<8x4xbf16> to vector<1x8x4xbf16>
    "tpu.trace_start"() <{level = 10 : i32, message = "bnd,bmd->bnm"}> : () -> ()
    %cst_53 = arith.constant dense<0.000000e+00> : vector<1x8x8xf32>
    %166 = tpu.matmul %159, %162, %cst_53 {dimension_numbers = #tpu.dot_dimension_numbers<[2], [2], [1], [1], [0, 0, 0, 1, 1, 1], [0], [0]>} : vector<1x8x4xbf16>, vector<1x8x4xbf16>, vector<1x8x8xf32> -> vector<1x8x8xf32>
    "tpu.trace_stop"() : () -> ()
    %cst_54 = arith.constant dense<0xFF800000> : vector<1x8xf32>
    %167 = vector.multi_reduction <maximumf>, %166, %cst_54 [2] : vector<1x8x8xf32> to vector<1x8xf32>
    %168 = vector.shape_cast %167 : vector<1x8xf32> to vector<1x8x1xf32>
    %169 = vector.broadcast %168 : vector<1x8x1xf32> to vector<1x8x8xf32>
    %170 = arith.subf %166, %169 : vector<1x8x8xf32>
    %171 = math.exp %170 : vector<1x8x8xf32>
    %cst_55 = arith.constant dense<0.000000e+00> : vector<1x8xf32>
    %172 = vector.multi_reduction <add>, %171, %cst_55 [2] : vector<1x8x8xf32> to vector<1x8xf32>
    %173 = vector.shape_cast %172 : vector<1x8xf32> to vector<1x8x1xf32>
    %174 = arith.truncf %171 : vector<1x8x8xf32> to vector<1x8x8xbf16>
    "tpu.trace_start"() <{level = 10 : i32, message = "bnm,bmd->bnd"}> : () -> ()
    %cst_56 = arith.constant dense<0.000000e+00> : vector<1x8x4xf32>
    %175 = tpu.matmul %174, %165, %cst_56 {dimension_numbers = #tpu.dot_dimension_numbers<[2], [1], [1], [2], [0, 0, 0, 1, 1, 2], [0], [0]>} : vector<1x8x8xbf16>, vector<1x8x4xbf16>, vector<1x8x4xf32> -> vector<1x8x4xf32>
    "tpu.trace_stop"() : () -> ()
    %176 = tpu.reciprocal %173 {approx = true} : vector<1x8x1xf32> -> vector<1x8x1xf32>
    %177 = vector.broadcast %176 : vector<1x8x1xf32> to vector<1x8x4xf32>
    %178 = arith.mulf %175, %177 : vector<1x8x4xf32>
    %179 = vector.shape_cast %178 : vector<1x8x4xf32> to vector<8x4xf32>
    %180 = arith.truncf %179 : vector<8x4xf32> to vector<8x4xbf16>
    %c0_57 = arith.constant 0 : index
    %c20 = arith.constant 20 : index
    %181 = vector.load %arg6[%c0_57, %c20] : memref<8x32xbf16, #tpu.memory_space<vmem>>, vector<8x4xbf16>
    tpu.vector_store %arg6[%c0_57, %c20], %180 {strides = array<i32>} : memref<8x32xbf16, #tpu.memory_space<vmem>>, vector<8x4xbf16>,
    %c6 = arith.constant 6 : index
    %c0_58 = arith.constant 0 : index
    %c0_59 = arith.constant 0 : index
    %182 = vector.load %arg2[%c6, %c0_58, %c0_59] : memref<8x32x12xbf16, #tpu.memory_space<vmem>>, vector<1x32x12xbf16>
    %183 = vector.shape_cast %182 : vector<1x32x12xbf16> to vector<32x12xbf16>
    %cst_60 = arith.constant dense<0.000000e+00> : vector<8x12xf32>
    %184 = tpu.matmul %1, %183, %cst_60 {dimension_numbers = #tpu.dot_dimension_numbers<[1], [0], [0], [1], [0, 0, 1, 1], [], []>} : vector<8x32xbf16>, vector<32x12xbf16>, vector<8x12xf32> -> vector<8x12xf32>
    %185 = vector.extract_strided_slice %184 {offsets = [0, 0], sizes = [8, 4], strides = [1, 1]} : vector<8x12xf32> to vector<8x4xf32>
    %cst_61 = arith.constant 5.000000e-01 : f32
    %186 = vector.broadcast %cst_61 : f32 to vector<8x4xf32>
    %187 = arith.mulf %185, %186 : vector<8x4xf32>
    %188 = arith.truncf %187 : vector<8x4xf32> to vector<8x4xbf16>
    %189 = vector.shape_cast %188 : vector<8x4xbf16> to vector<1x8x4xbf16>
    %190 = vector.extract_strided_slice %184 {offsets = [0, 4], sizes = [8, 4], strides = [1, 1]} : vector<8x12xf32> to vector<8x4xf32>
    %191 = arith.truncf %190 : vector<8x4xf32> to vector<8x4xbf16>
    %192 = vector.shape_cast %191 : vector<8x4xbf16> to vector<1x8x4xbf16>
    %193 = vector.extract_strided_slice %184 {offsets = [0, 8], sizes = [8, 4], strides = [1, 1]} : vector<8x12xf32> to vector<8x4xf32>
    %194 = arith.truncf %193 : vector<8x4xf32> to vector<8x4xbf16>
    %195 = vector.shape_cast %194 : vector<8x4xbf16> to vector<1x8x4xbf16>
    "tpu.trace_start"() <{level = 10 : i32, message = "bnd,bmd->bnm"}> : () -> ()
    %cst_62 = arith.constant dense<0.000000e+00> : vector<1x8x8xf32>
    %196 = tpu.matmul %189, %192, %cst_62 {dimension_numbers = #tpu.dot_dimension_numbers<[2], [2], [1], [1], [0, 0, 0, 1, 1, 1], [0], [0]>} : vector<1x8x4xbf16>, vector<1x8x4xbf16>, vector<1x8x8xf32> -> vector<1x8x8xf32>
    "tpu.trace_stop"() : () -> ()
    %cst_63 = arith.constant dense<0xFF800000> : vector<1x8xf32>
    %197 = vector.multi_reduction <maximumf>, %196, %cst_63 [2] : vector<1x8x8xf32> to vector<1x8xf32>
    %198 = vector.shape_cast %197 : vector<1x8xf32> to vector<1x8x1xf32>
    %199 = vector.broadcast %198 : vector<1x8x1xf32> to vector<1x8x8xf32>
    %200 = arith.subf %196, %199 : vector<1x8x8xf32>
    %201 = math.exp %200 : vector<1x8x8xf32>
    %cst_64 = arith.constant dense<0.000000e+00> : vector<1x8xf32>
    %202 = vector.multi_reduction <add>, %201, %cst_64 [2] : vector<1x8x8xf32> to vector<1x8xf32>
    %203 = vector.shape_cast %202 : vector<1x8xf32> to vector<1x8x1xf32>
    %204 = arith.truncf %201 : vector<1x8x8xf32> to vector<1x8x8xbf16>
    "tpu.trace_start"() <{level = 10 : i32, message = "bnm,bmd->bnd"}> : () -> ()
    %cst_65 = arith.constant dense<0.000000e+00> : vector<1x8x4xf32>
    %205 = tpu.matmul %204, %195, %cst_65 {dimension_numbers = #tpu.dot_dimension_numbers<[2], [1], [1], [2], [0, 0, 0, 1, 1, 2], [0], [0]>} : vector<1x8x8xbf16>, vector<1x8x4xbf16>, vector<1x8x4xf32> -> vector<1x8x4xf32>
    "tpu.trace_stop"() : () -> ()
    %206 = tpu.reciprocal %203 {approx = true} : vector<1x8x1xf32> -> vector<1x8x1xf32>
    %207 = vector.broadcast %206 : vector<1x8x1xf32> to vector<1x8x4xf32>
    %208 = arith.mulf %205, %207 : vector<1x8x4xf32>
    %209 = vector.shape_cast %208 : vector<1x8x4xf32> to vector<8x4xf32>
    %210 = arith.truncf %209 : vector<8x4xf32> to vector<8x4xbf16>
    %c0_66 = arith.constant 0 : index
    %c24 = arith.constant 24 : index
    %211 = vector.load %arg6[%c0_66, %c24] : memref<8x32xbf16, #tpu.memory_space<vmem>>, vector<8x4xbf16>
    tpu.vector_store %arg6[%c0_66, %c24], %210 {strides = array<i32>} : memref<8x32xbf16, #tpu.memory_space<vmem>>, vector<8x4xbf16>,
    %c7 = arith.constant 7 : index
    %c0_67 = arith.constant 0 : index
    %c0_68 = arith.constant 0 : index
    %212 = vector.load %arg2[%c7, %c0_67, %c0_68] : memref<8x32x12xbf16, #tpu.memory_space<vmem>>, vector<1x32x12xbf16>
    %213 = vector.shape_cast %212 : vector<1x32x12xbf16> to vector<32x12xbf16>
    %cst_69 = arith.constant dense<0.000000e+00> : vector<8x12xf32>
    %214 = tpu.matmul %1, %213, %cst_69 {dimension_numbers = #tpu.dot_dimension_numbers<[1], [0], [0], [1], [0, 0, 1, 1], [], []>} : vector<8x32xbf16>, vector<32x12xbf16>, vector<8x12xf32> -> vector<8x12xf32>
    %215 = vector.extract_strided_slice %214 {offsets = [0, 0], sizes = [8, 4], strides = [1, 1]} : vector<8x12xf32> to vector<8x4xf32>
    %cst_70 = arith.constant 5.000000e-01 : f32
    %216 = vector.broadcast %cst_70 : f32 to vector<8x4xf32>
    %217 = arith.mulf %215, %216 : vector<8x4xf32>
    %218 = arith.truncf %217 : vector<8x4xf32> to vector<8x4xbf16>
    %219 = vector.shape_cast %218 : vector<8x4xbf16> to vector<1x8x4xbf16>
    %220 = vector.extract_strided_slice %214 {offsets = [0, 4], sizes = [8, 4], strides = [1, 1]} : vector<8x12xf32> to vector<8x4xf32>
    %221 = arith.truncf %220 : vector<8x4xf32> to vector<8x4xbf16>
    %222 = vector.shape_cast %221 : vector<8x4xbf16> to vector<1x8x4xbf16>
    %223 = vector.extract_strided_slice %214 {offsets = [0, 8], sizes = [8, 4], strides = [1, 1]} : vector<8x12xf32> to vector<8x4xf32>
    %224 = arith.truncf %223 : vector<8x4xf32> to vector<8x4xbf16>
    %225 = vector.shape_cast %224 : vector<8x4xbf16> to vector<1x8x4xbf16>
    "tpu.trace_start"() <{level = 10 : i32, message = "bnd,bmd->bnm"}> : () -> ()
    %cst_71 = arith.constant dense<0.000000e+00> : vector<1x8x8xf32>
    %226 = tpu.matmul %219, %222, %cst_71 {dimension_numbers = #tpu.dot_dimension_numbers<[2], [2], [1], [1], [0, 0, 0, 1, 1, 1], [0], [0]>} : vector<1x8x4xbf16>, vector<1x8x4xbf16>, vector<1x8x8xf32> -> vector<1x8x8xf32>
    "tpu.trace_stop"() : () -> ()
    %cst_72 = arith.constant dense<0xFF800000> : vector<1x8xf32>
    %227 = vector.multi_reduction <maximumf>, %226, %cst_72 [2] : vector<1x8x8xf32> to vector<1x8xf32>
    %228 = vector.shape_cast %227 : vector<1x8xf32> to vector<1x8x1xf32>
    %229 = vector.broadcast %228 : vector<1x8x1xf32> to vector<1x8x8xf32>
    %230 = arith.subf %226, %229 : vector<1x8x8xf32>
    %231 = math.exp %230 : vector<1x8x8xf32>
    %cst_73 = arith.constant dense<0.000000e+00> : vector<1x8xf32>
    %232 = vector.multi_reduction <add>, %231, %cst_73 [2] : vector<1x8x8xf32> to vector<1x8xf32>
    %233 = vector.shape_cast %232 : vector<1x8xf32> to vector<1x8x1xf32>
    %234 = arith.truncf %231 : vector<1x8x8xf32> to vector<1x8x8xbf16>
    "tpu.trace_start"() <{level = 10 : i32, message = "bnm,bmd->bnd"}> : () -> ()
    %cst_74 = arith.constant dense<0.000000e+00> : vector<1x8x4xf32>
    %235 = tpu.matmul %234, %225, %cst_74 {dimension_numbers = #tpu.dot_dimension_numbers<[2], [1], [1], [2], [0, 0, 0, 1, 1, 2], [0], [0]>} : vector<1x8x8xbf16>, vector<1x8x4xbf16>, vector<1x8x4xf32> -> vector<1x8x4xf32>
    "tpu.trace_stop"() : () -> ()
    %236 = tpu.reciprocal %233 {approx = true} : vector<1x8x1xf32> -> vector<1x8x1xf32>
    %237 = vector.broadcast %236 : vector<1x8x1xf32> to vector<1x8x4xf32>
    %238 = arith.mulf %235, %237 : vector<1x8x4xf32>
    %239 = vector.shape_cast %238 : vector<1x8x4xf32> to vector<8x4xf32>
    %240 = arith.truncf %239 : vector<8x4xf32> to vector<8x4xbf16>
    %c0_75 = arith.constant 0 : index
    %c28 = arith.constant 28 : index
    %241 = vector.load %arg6[%c0_75, %c28] : memref<8x32xbf16, #tpu.memory_space<vmem>>, vector<8x4xbf16>
    tpu.vector_store %arg6[%c0_75, %c28], %240 {strides = array<i32>} : memref<8x32xbf16, #tpu.memory_space<vmem>>, vector<8x4xbf16>,
    %c0_76 = arith.constant 0 : index
    %c0_77 = arith.constant 0 : index
    %242 = vector.load %arg6[%c0_76, %c0_77] : memref<8x32xbf16, #tpu.memory_space<vmem>>, vector<8x32xbf16>
    %c0_78 = arith.constant 0 : index
    %c0_79 = arith.constant 0 : index
    %243 = vector.load %arg3[%c0_78, %c0_79] : memref<32x32xbf16, #tpu.memory_space<vmem>>, vector<32x32xbf16>
    %cst_80 = arith.constant dense<0.000000e+00> : vector<8x32xf32>
    %244 = tpu.matmul %242, %243, %cst_80 {dimension_numbers = #tpu.dot_dimension_numbers<[1], [0], [0], [1], [0, 0, 1, 1], [], []>} : vector<8x32xbf16>, vector<32x32xbf16>, vector<8x32xf32> -> vector<8x32xf32>
    %c0_81 = arith.constant 0 : index
    %c0_82 = arith.constant 0 : index
    %245 = vector.load %arg4[%c0_81, %c0_82] : memref<1x32xf32, #tpu.memory_space<vmem>>, vector<1x32xf32>
    %246 = vector.broadcast %245 : vector<1x32xf32> to vector<8x32xf32>
    %247 = arith.addf %244, %246 : vector<8x32xf32>
    %248 = vector.shape_cast %247 : vector<8x32xf32> to vector<1x8x32xf32>
    %c0_83 = arith.constant 0 : index
    %c0_84 = arith.constant 0 : index
    %c0_85 = arith.constant 0 : index
    %249 = vector.load %arg5[%c0_83, %c0_84, %c0_85] : memref<1x8x32xf32, #tpu.memory_space<vmem>>, vector<1x8x32xf32>
    tpu.vector_store %arg5[%c0_83, %c0_84, %c0_85], %248 {strides = array<i32>} : memref<1x8x32xf32, #tpu.memory_space<vmem>>, vector<1x8x32xf32>,
    return
  }
  func.func @transform_0(%arg0: i32) -> (i32, i32, i32) {
    %c0_i32 = arith.constant 0 : i32
    %c0_i32_0 = arith.constant 0 : i32
    %c0_i32_1 = arith.constant 0 : i32
    return %arg0, %c0_i32, %c0_i32_0 : i32, i32, i32
  }
  func.func @transform_1(%arg0: i32) -> (i32, i32, i32) {
    %c0_i32 = arith.constant 0 : i32
    %c0_i32_0 = arith.constant 0 : i32
    %c0_i32_1 = arith.constant 0 : i32
    %c0_i32_2 = arith.constant 0 : i32
    return %c0_i32, %c0_i32_0, %c0_i32_1 : i32, i32, i32
  }
  func.func @transform_2(%arg0: i32) -> (i32, i32) {
    %c0_i32 = arith.constant 0 : i32
    %c0_i32_0 = arith.constant 0 : i32
    %c0_i32_1 = arith.constant 0 : i32
    return %c0_i32, %c0_i32_0 : i32, i32
  }
  func.func @transform_3(%arg0: i32) -> (i32, i32) {
    %c0_i32 = arith.constant 0 : i32
    %c0_i32_0 = arith.constant 0 : i32
    %c0_i32_1 = arith.constant 0 : i32
    return %c0_i32, %c0_i32_0 : i32, i32
  }
  func.func @transform_4(%arg0: i32) -> (i32, i32, i32) {
    %c0_i32 = arith.constant 0 : i32
    %c0_i32_0 = arith.constant 0 : i32
    %c0_i32_1 = arith.constant 0 : i32
    return %arg0, %c0_i32, %c0_i32_0 : i32, i32, i32
  }
}

module attributes {stable_mosaic.version = 11 : i64} {
  func.func @_attention_kernel(%arg0: i32, %arg1: memref<1x8x32xbf16, #tpu.memory_space<vmem>>, %arg2: memref<8x32x12xbf16, #tpu.memory_space<vmem>>, %arg3: memref<32x32xbf16, #tpu.memory_space<vmem>>, %arg4: memref<1x32xf32, #tpu.memory_space<vmem>>, %arg5: memref<1x8x32xf32, #tpu.memory_space<vmem>>, %arg6: memref<8x32xbf16, #tpu.memory_space<vmem>>) attributes {dimension_semantics = [#tpu.dimension_semantics<parallel>], iteration_bounds = array<i64: 2>, scalar_prefetch = 0 : i64, scratch_operands = 1 : i64, tpu.core_type = #tpu.core_type<tc>, window_params = [{transform_indices = @transform_0, window_bounds = array<i64: 1, 8, 32>}, {pipeline_mode = #tpu.pipeline_mode<synchronous>, transform_indices = @transform_1, window_bounds = array<i64: 8, 32, 12>}, {pipeline_mode = #tpu.pipeline_mode<synchronous>, transform_indices = @transform_2, window_bounds = array<i64: 32, 32>}, {pipeline_mode = #tpu.pipeline_mode<synchronous>, transform_indices = @transform_3, window_bounds = array<i64: 1, 32>}, {transform_indices = @transform_4, window_bounds = array<i64: 1, 8, 32>}]} {
    %c0 = arith.constant 0 : index
    %c0_0 = arith.constant 0 : index
    %c0_1 = arith.constant 0 : index
    %0 = vector.load %arg1[%c0, %c0_0, %c0_1] : memref<1x8x32xbf16, #tpu.memory_space<vmem>>, vector<1x8x32xbf16>
    %1 = vector.shape_cast %0 : vector<1x8x32xbf16> to vector<8x32xbf16>
    %c0_2 = arith.constant 0 : index
    %c0_3 = arith.constant 0 : index
    %c0_4 = arith.constant 0 : index
    %2 = vector.load %arg2[%c0_2, %c0_3, %c0_4] : memref<8x32x12xbf16, #tpu.memory_space<vmem>>, vector<1x32x12xbf16>
    %3 = vector.shape_cast %2 : vector<1x32x12xbf16> to vector<32x12xbf16>
    %cst = arith.constant dense<0.000000e+00> : vector<8x12xf32>
    %4 = tpu.matmul %1, %3, %cst {dimension_numbers = #tpu.dot_dimension_numbers<[1], [0], [0], [1], [0, 0, 1, 1], [], []>} : vector<8x32xbf16>, vector<32x12xbf16>, vector<8x12xf32> -> vector<8x12xf32>
    %5 = vector.extract_strided_slice %4 {offsets = [0, 0], sizes = [8, 4], strides = [1, 1]} : vector<8x12xf32> to vector<8x4xf32>
    %cst_5 = arith.constant 5.000000e-01 : f32
    %6 = vector.broadcast %cst_5 : f32 to vector<8x4xf32>
    %7 = arith.mulf %5, %6 : vector<8x4xf32>
    %8 = arith.truncf %7 : vector<8x4xf32> to vector<8x4xbf16>
    %9 = vector.shape_cast %8 : vector<8x4xbf16> to vector<1x8x4xbf16>
    %10 = vector.extract_strided_slice %4 {offsets = [0, 4], sizes = [8, 4], strides = [1, 1]} : vector<8x12xf32> to vector<8x4xf32>
    %11 = arith.truncf %10 : vector<8x4xf32> to vector<8x4xbf16>
    %12 = vector.shape_cast %11 : vector<8x4xbf16> to vector<1x8x4xbf16>
    %13 = vector.extract_strided_slice %4 {offsets = [0, 8], sizes = [8, 4], strides = [1, 1]} : vector<8x12xf32> to vector<8x4xf32>
    %14 = arith.truncf %13 : vector<8x4xf32> to vector<8x4xbf16>
    %15 = vector.shape_cast %14 : vector<8x4xbf16> to vector<1x8x4xbf16>
    "tpu.trace_start"() <{level = 10 : i32, message = "bnd,bmd->bnm"}> : () -> ()
    %cst_6 = arith.constant dense<0.000000e+00> : vector<1x8x8xf32>
    %16 = tpu.matmul %9, %12, %cst_6 {dimension_numbers = #tpu.dot_dimension_numbers<[2], [2], [1], [1], [0, 0, 0, 1, 1, 1], [0], [0]>} : vector<1x8x4xbf16>, vector<1x8x4xbf16>, vector<1x8x8xf32> -> vector<1x8x8xf32>
    "tpu.trace_stop"() : () -> ()
    %cst_7 = arith.constant dense<0xFF800000> : vector<1x8xf32>
    %17 = vector.multi_reduction <maximumf>, %16, %cst_7 [2] : vector<1x8x8xf32> to vector<1x8xf32>
    %18 = vector.shape_cast %17 : vector<1x8xf32> to vector<1x8x1xf32>
    %19 = vector.broadcast %18 : vector<1x8x1xf32> to vector<1x8x8xf32>
    %20 = arith.subf %16, %19 : vector<1x8x8xf32>
    %21 = math.exp %20 : vector<1x8x8xf32>
    %cst_8 = arith.constant dense<0.000000e+00> : vector<1x8xf32>
    %22 = vector.multi_reduction <add>, %21, %cst_8 [2] : vector<1x8x8xf32> to vector<1x8xf32>
    %23 = vector.shape_cast %22 : vector<1x8xf32> to vector<1x8x1xf32>
    %24 = arith.truncf %21 : vector<1x8x8xf32> to vector<1x8x8xbf16>
    "tpu.trace_start"() <{level = 10 : i32, message = "bnm,bmd->bnd"}> : () -> ()
    %cst_9 = arith.constant dense<0.000000e+00> : vector<1x8x4xf32>
    %25 = tpu.matmul %24, %15, %cst_9 {dimension_numbers = #tpu.dot_dimension_numbers<[2], [1], [1], [2], [0, 0, 0, 1, 1, 2], [0], [0]>} : vector<1x8x8xbf16>, vector<1x8x4xbf16>, vector<1x8x4xf32> -> vector<1x8x4xf32>
    "tpu.trace_stop"() : () -> ()
    %26 = tpu.reciprocal %23 {approx = true} : vector<1x8x1xf32> -> vector<1x8x1xf32>
    %27 = vector.broadcast %26 : vector<1x8x1xf32> to vector<1x8x4xf32>
    %28 = arith.mulf %25, %27 : vector<1x8x4xf32>
    %29 = vector.shape_cast %28 : vector<1x8x4xf32> to vector<8x4xf32>
    %30 = arith.truncf %29 : vector<8x4xf32> to vector<8x4xbf16>
    %c0_10 = arith.constant 0 : index
    %c0_11 = arith.constant 0 : index
    %31 = vector.load %arg6[%c0_10, %c0_11] : memref<8x32xbf16, #tpu.memory_space<vmem>>, vector<8x4xbf16>
    tpu.vector_store %arg6[%c0_10, %c0_11], %30 {strides = array<i32>} : memref<8x32xbf16, #tpu.memory_space<vmem>>, vector<8x4xbf16>,
    %c1 = arith.constant 1 : index
    %c0_12 = arith.constant 0 : index
    %c0_13 = arith.constant 0 : index
    %32 = vector.load %arg2[%c1, %c0_12, %c0_13] : memref<8x32x12xbf16, #tpu.memory_space<vmem>>, vector<1x32x12xbf16>
    %33 = vector.shape_cast %32 : vector<1x32x12xbf16> to vector<32x12xbf16>
    %cst_14 = arith.constant dense<0.000000e+00> : vector<8x12xf32>
    %34 = tpu.matmul %1, %33, %cst_14 {dimension_numbers = #tpu.dot_dimension_numbers<[1], [0], [0], [1], [0, 0, 1, 1], [], []>} : vector<8x32xbf16>, vector<32x12xbf16>, vector<8x12xf32> -> vector<8x12xf32>
    %35 = vector.extract_strided_slice %34 {offsets = [0, 0], sizes = [8, 4], strides = [1, 1]} : vector<8x12xf32> to vector<8x4xf32>
    %cst_15 = arith.constant 5.000000e-01 : f32
    %36 = vector.broadcast %cst_15 : f32 to vector<8x4xf32>
    %37 = arith.mulf %35, %36 : vector<8x4xf32>
    %38 = arith.truncf %37 : vector<8x4xf32> to vector<8x4xbf16>
    %39 = vector.shape_cast %38 : vector<8x4xbf16> to vector<1x8x4xbf16>
    %40 = vector.extract_strided_slice %34 {offsets = [0, 4], sizes = [8, 4], strides = [1, 1]} : vector<8x12xf32> to vector<8x4xf32>
    %41 = arith.truncf %40 : vector<8x4xf32> to vector<8x4xbf16>
    %42 = vector.shape_cast %41 : vector<8x4xbf16> to vector<1x8x4xbf16>
    %43 = vector.extract_strided_slice %34 {offsets = [0, 8], sizes = [8, 4], strides = [1, 1]} : vector<8x12xf32> to vector<8x4xf32>
    %44 = arith.truncf %43 : vector<8x4xf32> to vector<8x4xbf16>
    %45 = vector.shape_cast %44 : vector<8x4xbf16> to vector<1x8x4xbf16>
    "tpu.trace_start"() <{level = 10 : i32, message = "bnd,bmd->bnm"}> : () -> ()
    %cst_16 = arith.constant dense<0.000000e+00> : vector<1x8x8xf32>
    %46 = tpu.matmul %39, %42, %cst_16 {dimension_numbers = #tpu.dot_dimension_numbers<[2], [2], [1], [1], [0, 0, 0, 1, 1, 1], [0], [0]>} : vector<1x8x4xbf16>, vector<1x8x4xbf16>, vector<1x8x8xf32> -> vector<1x8x8xf32>
    "tpu.trace_stop"() : () -> ()
    %cst_17 = arith.constant dense<0xFF800000> : vector<1x8xf32>
    %47 = vector.multi_reduction <maximumf>, %46, %cst_17 [2] : vector<1x8x8xf32> to vector<1x8xf32>
    %48 = vector.shape_cast %47 : vector<1x8xf32> to vector<1x8x1xf32>
    %49 = vector.broadcast %48 : vector<1x8x1xf32> to vector<1x8x8xf32>
    %50 = arith.subf %46, %49 : vector<1x8x8xf32>
    %51 = math.exp %50 : vector<1x8x8xf32>
    %cst_18 = arith.constant dense<0.000000e+00> : vector<1x8xf32>
    %52 = vector.multi_reduction <add>, %51, %cst_18 [2] : vector<1x8x8xf32> to vector<1x8xf32>
    %53 = vector.shape_cast %52 : vector<1x8xf32> to vector<1x8x1xf32>
    %54 = arith.truncf %51 : vector<1x8x8xf32> to vector<1x8x8xbf16>
    "tpu.trace_start"() <{level = 10 : i32, message = "bnm,bmd->bnd"}> : () -> ()
    %cst_19 = arith.constant dense<0.000000e+00> : vector<1x8x4xf32>
    %55 = tpu.matmul %54, %45, %cst_19 {dimension_numbers = #tpu.dot_dimension_numbers<[2], [1], [1], [2], [0, 0, 0, 1, 1, 2], [0], [0]>} : vector<1x8x8xbf16>, vector<1x8x4xbf16>, vector<1x8x4xf32> -> vector<1x8x4xf32>
    "tpu.trace_stop"() : () -> ()
    %56 = tpu.reciprocal %53 {approx = true} : vector<1x8x1xf32> -> vector<1x8x1xf32>
    %57 = vector.broadcast %56 : vector<1x8x1xf32> to vector<1x8x4xf32>
    %58 = arith.mulf %55, %57 : vector<1x8x4xf32>
    %59 = vector.shape_cast %58 : vector<1x8x4xf32> to vector<8x4xf32>
    %60 = arith.truncf %59 : vector<8x4xf32> to vector<8x4xbf16>
    %c0_20 = arith.constant 0 : index
    %c4 = arith.constant 4 : index
    %61 = vector.load %arg6[%c0_20, %c4] : memref<8x32xbf16, #tpu.memory_space<vmem>>, vector<8x4xbf16>
    tpu.vector_store %arg6[%c0_20, %c4], %60 {strides = array<i32>} : memref<8x32xbf16, #tpu.memory_space<vmem>>, vector<8x4xbf16>,
    %c2 = arith.constant 2 : index
    %c0_21 = arith.constant 0 : index
    %c0_22 = arith.constant 0 : index
    %62 = vector.load %arg2[%c2, %c0_21, %c0_22] : memref<8x32x12xbf16, #tpu.memory_space<vmem>>, vector<1x32x12xbf16>
    %63 = vector.shape_cast %62 : vector<1x32x12xbf16> to vector<32x12xbf16>
    %cst_23 = arith.constant dense<0.000000e+00> : vector<8x12xf32>
    %64 = tpu.matmul %1, %63, %cst_23 {dimension_numbers = #tpu.dot_dimension_numbers<[1], [0], [0], [1], [0, 0, 1, 1], [], []>} : vector<8x32xbf16>, vector<32x12xbf16>, vector<8x12xf32> -> vector<8x12xf32>
    %65 = vector.extract_strided_slice %64 {offsets = [0, 0], sizes = [8, 4], strides = [1, 1]} : vector<8x12xf32> to vector<8x4xf32>
    %cst_24 = arith.constant 5.000000e-01 : f32
    %66 = vector.broadcast %cst_24 : f32 to vector<8x4xf32>
    %67 = arith.mulf %65, %66 : vector<8x4xf32>
    %68 = arith.truncf %67 : vector<8x4xf32> to vector<8x4xbf16>
    %69 = vector.shape_cast %68 : vector<8x4xbf16> to vector<1x8x4xbf16>
    %70 = vector.extract_strided_slice %64 {offsets = [0, 4], sizes = [8, 4], strides = [1, 1]} : vector<8x12xf32> to vector<8x4xf32>
    %71 = arith.truncf %70 : vector<8x4xf32> to vector<8x4xbf16>
    %72 = vector.shape_cast %71 : vector<8x4xbf16> to vector<1x8x4xbf16>
    %73 = vector.extract_strided_slice %64 {offsets = [0, 8], sizes = [8, 4], strides = [1, 1]} : vector<8x12xf32> to vector<8x4xf32>
    %74 = arith.truncf %73 : vector<8x4xf32> to vector<8x4xbf16>
    %75 = vector.shape_cast %74 : vector<8x4xbf16> to vector<1x8x4xbf16>
    "tpu.trace_start"() <{level = 10 : i32, message = "bnd,bmd->bnm"}> : () -> ()
    %cst_25 = arith.constant dense<0.000000e+00> : vector<1x8x8xf32>
    %76 = tpu.matmul %69, %72, %cst_25 {dimension_numbers = #tpu.dot_dimension_numbers<[2], [2], [1], [1], [0, 0, 0, 1, 1, 1], [0], [0]>} : vector<1x8x4xbf16>, vector<1x8x4xbf16>, vector<1x8x8xf32> -> vector<1x8x8xf32>
    "tpu.trace_stop"() : () -> ()
    %cst_26 = arith.constant dense<0xFF800000> : vector<1x8xf32>
    %77 = vector.multi_reduction <maximumf>, %76, %cst_26 [2] : vector<1x8x8xf32> to vector<1x8xf32>
    %78 = vector.shape_cast %77 : vector<1x8xf32> to vector<1x8x1xf32>
    %79 = vector.broadcast %78 : vector<1x8x1xf32> to vector<1x8x8xf32>
    %80 = arith.subf %76, %79 : vector<1x8x8xf32>
    %81 = math.exp %80 : vector<1x8x8xf32>
    %cst_27 = arith.constant dense<0.000000e+00> : vector<1x8xf32>
    %82 = vector.multi_reduction <add>, %81, %cst_27 [2] : vector<1x8x8xf32> to vector<1x8xf32>
    %83 = vector.shape_cast %82 : vector<1x8xf32> to vector<1x8x1xf32>
    %84 = arith.truncf %81 : vector<1x8x8xf32> to vector<1x8x8xbf16>
    "tpu.trace_start"() <{level = 10 : i32, message = "bnm,bmd->bnd"}> : () -> ()
    %cst_28 = arith.constant dense<0.000000e+00> : vector<1x8x4xf32>
    %85 = tpu.matmul %84, %75, %cst_28 {dimension_numbers = #tpu.dot_dimension_numbers<[2], [1], [1], [2], [0, 0, 0, 1, 1, 2], [0], [0]>} : vector<1x8x8xbf16>, vector<1x8x4xbf16>, vector<1x8x4xf32> -> vector<1x8x4xf32>
    "tpu.trace_stop"() : () -> ()
    %86 = tpu.reciprocal %83 {approx = true} : vector<1x8x1xf32> -> vector<1x8x1xf32>
    %87 = vector.broadcast %86 : vector<1x8x1xf32> to vector<1x8x4xf32>
    %88 = arith.mulf %85, %87 : vector<1x8x4xf32>
    %89 = vector.shape_cast %88 : vector<1x8x4xf32> to vector<8x4xf32>
    %90 = arith.truncf %89 : vector<8x4xf32> to vector<8x4xbf16>
    %c0_29 = arith.constant 0 : index
    %c8 = arith.constant 8 : index
    %91 = vector.load %arg6[%c0_29, %c8] : memref<8x32xbf16, #tpu.memory_space<vmem>>, vector<8x4xbf16>
    tpu.vector_store %arg6[%c0_29, %c8], %90 {strides = array<i32>} : memref<8x32xbf16, #tpu.memory_space<vmem>>, vector<8x4xbf16>,
    %c3 = arith.constant 3 : index
    %c0_30 = arith.constant 0 : index
    %c0_31 = arith.constant 0 : index
    %92 = vector.load %arg2[%c3, %c0_30, %c0_31] : memref<8x32x12xbf16, #tpu.memory_space<vmem>>, vector<1x32x12xbf16>
    %93 = vector.shape_cast %92 : vector<1x32x12xbf16> to vector<32x12xbf16>
    %cst_32 = arith.constant dense<0.000000e+00> : vector<8x12xf32>
    %94 = tpu.matmul %1, %93, %cst_32 {dimension_numbers = #tpu.dot_dimension_numbers<[1], [0], [0], [1], [0, 0, 1, 1], [], []>} : vector<8x32xbf16>, vector<32x12xbf16>, vector<8x12xf32> -> vector<8x12xf32>
    %95 = vector.extract_strided_slice %94 {offsets = [0, 0], sizes = [8, 4], strides = [1, 1]} : vector<8x12xf32> to vector<8x4xf32>
    %cst_33 = arith.constant 5.000000e-01 : f32
    %96 = vector.broadcast %cst_33 : f32 to vector<8x4xf32>
    %97 = arith.mulf %95, %96 : vector<8x4xf32>
    %98 = arith.truncf %97 : vector<8x4xf32> to vector<8x4xbf16>
    %99 = vector.shape_cast %98 : vector<8x4xbf16> to vector<1x8x4xbf16>
    %100 = vector.extract_strided_slice %94 {offsets = [0, 4], sizes = [8, 4], strides = [1, 1]} : vector<8x12xf32> to vector<8x4xf32>
    %101 = arith.truncf %100 : vector<8x4xf32> to vector<8x4xbf16>
    %102 = vector.shape_cast %101 : vector<8x4xbf16> to vector<1x8x4xbf16>
    %103 = vector.extract_strided_slice %94 {offsets = [0, 8], sizes = [8, 4], strides = [1, 1]} : vector<8x12xf32> to vector<8x4xf32>
    %104 = arith.truncf %103 : vector<8x4xf32> to vector<8x4xbf16>
    %105 = vector.shape_cast %104 : vector<8x4xbf16> to vector<1x8x4xbf16>
    "tpu.trace_start"() <{level = 10 : i32, message = "bnd,bmd->bnm"}> : () -> ()
    %cst_34 = arith.constant dense<0.000000e+00> : vector<1x8x8xf32>
    %106 = tpu.matmul %99, %102, %cst_34 {dimension_numbers = #tpu.dot_dimension_numbers<[2], [2], [1], [1], [0, 0, 0, 1, 1, 1], [0], [0]>} : vector<1x8x4xbf16>, vector<1x8x4xbf16>, vector<1x8x8xf32> -> vector<1x8x8xf32>
    "tpu.trace_stop"() : () -> ()
    %cst_35 = arith.constant dense<0xFF800000> : vector<1x8xf32>
    %107 = vector.multi_reduction <maximumf>, %106, %cst_35 [2] : vector<1x8x8xf32> to vector<1x8xf32>
    %108 = vector.shape_cast %107 : vector<1x8xf32> to vector<1x8x1xf32>
    %109 = vector.broadcast %108 : vector<1x8x1xf32> to vector<1x8x8xf32>
    %110 = arith.subf %106, %109 : vector<1x8x8xf32>
    %111 = math.exp %110 : vector<1x8x8xf32>
    %cst_36 = arith.constant dense<0.000000e+00> : vector<1x8xf32>
    %112 = vector.multi_reduction <add>, %111, %cst_36 [2] : vector<1x8x8xf32> to vector<1x8xf32>
    %113 = vector.shape_cast %112 : vector<1x8xf32> to vector<1x8x1xf32>
    %114 = arith.truncf %111 : vector<1x8x8xf32> to vector<1x8x8xbf16>
    "tpu.trace_start"() <{level = 10 : i32, message = "bnm,bmd->bnd"}> : () -> ()
    %cst_37 = arith.constant dense<0.000000e+00> : vector<1x8x4xf32>
    %115 = tpu.matmul %114, %105, %cst_37 {dimension_numbers = #tpu.dot_dimension_numbers<[2], [1], [1], [2], [0, 0, 0, 1, 1, 2], [0], [0]>} : vector<1x8x8xbf16>, vector<1x8x4xbf16>, vector<1x8x4xf32> -> vector<1x8x4xf32>
    "tpu.trace_stop"() : () -> ()
    %116 = tpu.reciprocal %113 {approx = true} : vector<1x8x1xf32> -> vector<1x8x1xf32>
    %117 = vector.broadcast %116 : vector<1x8x1xf32> to vector<1x8x4xf32>
    %118 = arith.mulf %115, %117 : vector<1x8x4xf32>
    %119 = vector.shape_cast %118 : vector<1x8x4xf32> to vector<8x4xf32>
    %120 = arith.truncf %119 : vector<8x4xf32> to vector<8x4xbf16>
    %c0_38 = arith.constant 0 : index
    %c12 = arith.constant 12 : index
    %121 = vector.load %arg6[%c0_38, %c12] : memref<8x32xbf16, #tpu.memory_space<vmem>>, vector<8x4xbf16>
    tpu.vector_store %arg6[%c0_38, %c12], %120 {strides = array<i32>} : memref<8x32xbf16, #tpu.memory_space<vmem>>, vector<8x4xbf16>,
    %c4_39 = arith.constant 4 : index
    %c0_40 = arith.constant 0 : index
    %c0_41 = arith.constant 0 : index
    %122 = vector.load %arg2[%c4_39, %c0_40, %c0_41] : memref<8x32x12xbf16, #tpu.memory_space<vmem>>, vector<1x32x12xbf16>
    %123 = vector.shape_cast %122 : vector<1x32x12xbf16> to vector<32x12xbf16>
    %cst_42 = arith.constant dense<0.000000e+00> : vector<8x12xf32>
    %124 = tpu.matmul %1, %123, %cst_42 {dimension_numbers = #tpu.dot_dimension_numbers<[1], [0], [0], [1], [0, 0, 1, 1], [], []>} : vector<8x32xbf16>, vector<32x12xbf16>, vector<8x12xf32> -> vector<8x12xf32>
    %125 = vector.extract_strided_slice %124 {offsets = [0, 0], sizes = [8, 4], strides = [1, 1]} : vector<8x12xf32> to vector<8x4xf32>
    %cst_43 = arith.constant 5.000000e-01 : f32
    %126 = vector.broadcast %cst_43 : f32 to vector<8x4xf32>
    %127 = arith.mulf %125, %126 : vector<8x4xf32>
    %128 = arith.truncf %127 : vector<8x4xf32> to vector<8x4xbf16>
    %129 = vector.shape_cast %128 : vector<8x4xbf16> to vector<1x8x4xbf16>
    %130 = vector.extract_strided_slice %124 {offsets = [0, 4], sizes = [8, 4], strides = [1, 1]} : vector<8x12xf32> to vector<8x4xf32>
    %131 = arith.truncf %130 : vector<8x4xf32> to vector<8x4xbf16>
    %132 = vector.shape_cast %131 : vector<8x4xbf16> to vector<1x8x4xbf16>
    %133 = vector.extract_strided_slice %124 {offsets = [0, 8], sizes = [8, 4], strides = [1, 1]} : vector<8x12xf32> to vector<8x4xf32>
    %134 = arith.truncf %133 : vector<8x4xf32> to vector<8x4xbf16>
    %135 = vector.shape_cast %134 : vector<8x4xbf16> to vector<1x8x4xbf16>
    "tpu.trace_start"() <{level = 10 : i32, message = "bnd,bmd->bnm"}> : () -> ()
    %cst_44 = arith.constant dense<0.000000e+00> : vector<1x8x8xf32>
    %136 = tpu.matmul %129, %132, %cst_44 {dimension_numbers = #tpu.dot_dimension_numbers<[2], [2], [1], [1], [0, 0, 0, 1, 1, 1], [0], [0]>} : vector<1x8x4xbf16>, vector<1x8x4xbf16>, vector<1x8x8xf32> -> vector<1x8x8xf32>
    "tpu.trace_stop"() : () -> ()
    %cst_45 = arith.constant dense<0xFF800000> : vector<1x8xf32>
    %137 = vector.multi_reduction <maximumf>, %136, %cst_45 [2] : vector<1x8x8xf32> to vector<1x8xf32>
    %138 = vector.shape_cast %137 : vector<1x8xf32> to vector<1x8x1xf32>
    %139 = vector.broadcast %138 : vector<1x8x1xf32> to vector<1x8x8xf32>
    %140 = arith.subf %136, %139 : vector<1x8x8xf32>
    %141 = math.exp %140 : vector<1x8x8xf32>
    %cst_46 = arith.constant dense<0.000000e+00> : vector<1x8xf32>
    %142 = vector.multi_reduction <add>, %141, %cst_46 [2] : vector<1x8x8xf32> to vector<1x8xf32>
    %143 = vector.shape_cast %142 : vector<1x8xf32> to vector<1x8x1xf32>
    %144 = arith.truncf %141 : vector<1x8x8xf32> to vector<1x8x8xbf16>
    "tpu.trace_start"() <{level = 10 : i32, message = "bnm,bmd->bnd"}> : () -> ()
    %cst_47 = arith.constant dense<0.000000e+00> : vector<1x8x4xf32>
    %145 = tpu.matmul %144, %135, %cst_47 {dimension_numbers = #tpu.dot_dimension_numbers<[2], [1], [1], [2], [0, 0, 0, 1, 1, 2], [0], [0]>} : vector<1x8x8xbf16>, vector<1x8x4xbf16>, vector<1x8x4xf32> -> vector<1x8x4xf32>
    "tpu.trace_stop"() : () -> ()
    %146 = tpu.reciprocal %143 {approx = true} : vector<1x8x1xf32> -> vector<1x8x1xf32>
    %147 = vector.broadcast %146 : vector<1x8x1xf32> to vector<1x8x4xf32>
    %148 = arith.mulf %145, %147 : vector<1x8x4xf32>
    %149 = vector.shape_cast %148 : vector<1x8x4xf32> to vector<8x4xf32>
    %150 = arith.truncf %149 : vector<8x4xf32> to vector<8x4xbf16>
    %c0_48 = arith.constant 0 : index
    %c16 = arith.constant 16 : index
    %151 = vector.load %arg6[%c0_48, %c16] : memref<8x32xbf16, #tpu.memory_space<vmem>>, vector<8x4xbf16>
    tpu.vector_store %arg6[%c0_48, %c16], %150 {strides = array<i32>} : memref<8x32xbf16, #tpu.memory_space<vmem>>, vector<8x4xbf16>,
    %c5 = arith.constant 5 : index
    %c0_49 = arith.constant 0 : index
    %c0_50 = arith.constant 0 : index
    %152 = vector.load %arg2[%c5, %c0_49, %c0_50] : memref<8x32x12xbf16, #tpu.memory_space<vmem>>, vector<1x32x12xbf16>
    %153 = vector.shape_cast %152 : vector<1x32x12xbf16> to vector<32x12xbf16>
    %cst_51 = arith.constant dense<0.000000e+00> : vector<8x12xf32>
    %154 = tpu.matmul %1, %153, %cst_51 {dimension_numbers = #tpu.dot_dimension_numbers<[1], [0], [0], [1], [0, 0, 1, 1], [], []>} : vector<8x32xbf16>, vector<32x12xbf16>, vector<8x12xf32> -> vector<8x12xf32>
    %155 = vector.extract_strided_slice %154 {offsets = [0, 0], sizes = [8, 4], strides = [1, 1]} : vector<8x12xf32> to vector<8x4xf32>
    %cst_52 = arith.constant 5.000000e-01 : f32
    %156 = vector.broadcast %cst_52 : f32 to vector<8x4xf32>
    %157 = arith.mulf %155, %156 : vector<8x4xf32>
    %158 = arith.truncf %157 : vector<8x4xf32> to vector<8x4xbf16>
    %159 = vector.shape_cast %158 : vector<8x4xbf16> to vector<1x8x4xbf16>
    %160 = vector.extract_strided_slice %154 {offsets = [0, 4], sizes = [8, 4], strides = [1, 1]} : vector<8x12xf32> to vector<8x4xf32>
    %161 = arith.truncf %160 : vector<8x4xf32> to vector<8x4xbf16>
    %162 = vector.shape_cast %161 : vector<8x4xbf16> to vector<1x8x4xbf16>
    %163 = vector.extract_strided_slice %154 {offsets = [0, 8], sizes = [8, 4], strides = [1, 1]} : vector<8x12xf32> to vector<8x4xf32>
    %164 = arith.truncf %163 : vector<8x4xf32> to vector<8x4xbf16>
    %165 = vector.shape_cast %164 : vector<8x4xbf16> to vector<1x8x4xbf16>
    "tpu.trace_start"() <{level = 10 : i32, message = "bnd,bmd->bnm"}> : () -> ()
    %cst_53 = arith.constant dense<0.000000e+00> : vector<1x8x8xf32>
    %166 = tpu.matmul %159, %162, %cst_53 {dimension_numbers = #tpu.dot_dimension_numbers<[2], [2], [1], [1], [0, 0, 0, 1, 1, 1], [0], [0]>} : vector<1x8x4xbf16>, vector<1x8x4xbf16>, vector<1x8x8xf32> -> vector<1x8x8xf32>
    "tpu.trace_stop"() : () -> ()
    %cst_54 = arith.constant dense<0xFF800000> : vector<1x8xf32>
    %167 = vector.multi_reduction <maximumf>, %166, %cst_54 [2] : vector<1x8x8xf32> to vector<1x8xf32>
    %168 = vector.shape_cast %167 : vector<1x8xf32> to vector<1x8x1xf32>
    %169 = vector.broadcast %168 : vector<1x8x1xf32> to vector<1x8x8xf32>
    %170 = arith.subf %166, %169 : vector<1x8x8xf32>
    %171 = math.exp %170 : vector<1x8x8xf32>
    %cst_55 = arith.constant dense<0.000000e+00> : vector<1x8xf32>
    %172 = vector.multi_reduction <add>, %171, %cst_55 [2] : vector<1x8x8xf32> to vector<1x8xf32>
    %173 = vector.shape_cast %172 : vector<1x8xf32> to vector<1x8x1xf32>
    %174 = arith.truncf %171 : vector<1x8x8xf32> to vector<1x8x8xbf16>
    "tpu.trace_start"() <{level = 10 : i32, message = "bnm,bmd->bnd"}> : () -> ()
    %cst_56 = arith.constant dense<0.000000e+00> : vector<1x8x4xf32>
    %175 = tpu.matmul %174, %165, %cst_56 {dimension_numbers = #tpu.dot_dimension_numbers<[2], [1], [1], [2], [0, 0, 0, 1, 1, 2], [0], [0]>} : vector<1x8x8xbf16>, vector<1x8x4xbf16>, vector<1x8x4xf32> -> vector<1x8x4xf32>
    "tpu.trace_stop"() : () -> ()
    %176 = tpu.reciprocal %173 {approx = true} : vector<1x8x1xf32> -> vector<1x8x1xf32>
    %177 = vector.broadcast %176 : vector<1x8x1xf32> to vector<1x8x4xf32>
    %178 = arith.mulf %175, %177 : vector<1x8x4xf32>
    %179 = vector.shape_cast %178 : vector<1x8x4xf32> to vector<8x4xf32>
    %180 = arith.truncf %179 : vector<8x4xf32> to vector<8x4xbf16>
    %c0_57 = arith.constant 0 : index
    %c20 = arith.constant 20 : index
    %181 = vector.load %arg6[%c0_57, %c20] : memref<8x32xbf16, #tpu.memory_space<vmem>>, vector<8x4xbf16>
    tpu.vector_store %arg6[%c0_57, %c20], %180 {strides = array<i32>} : memref<8x32xbf16, #tpu.memory_space<vmem>>, vector<8x4xbf16>,
    %c6 = arith.constant 6 : index
    %c0_58 = arith.constant 0 : index
    %c0_59 = arith.constant 0 : index
    %182 = vector.load %arg2[%c6, %c0_58, %c0_59] : memref<8x32x12xbf16, #tpu.memory_space<vmem>>, vector<1x32x12xbf16>
    %183 = vector.shape_cast %182 : vector<1x32x12xbf16> to vector<32x12xbf16>
    %cst_60 = arith.constant dense<0.000000e+00> : vector<8x12xf32>
    %184 = tpu.matmul %1, %183, %cst_60 {dimension_numbers = #tpu.dot_dimension_numbers<[1], [0], [0], [1], [0, 0, 1, 1], [], []>} : vector<8x32xbf16>, vector<32x12xbf16>, vector<8x12xf32> -> vector<8x12xf32>
    %185 = vector.extract_strided_slice %184 {offsets = [0, 0], sizes = [8, 4], strides = [1, 1]} : vector<8x12xf32> to vector<8x4xf32>
    %cst_61 = arith.constant 5.000000e-01 : f32
    %186 = vector.broadcast %cst_61 : f32 to vector<8x4xf32>
    %187 = arith.mulf %185, %186 : vector<8x4xf32>
    %188 = arith.truncf %187 : vector<8x4xf32> to vector<8x4xbf16>
    %189 = vector.shape_cast %188 : vector<8x4xbf16> to vector<1x8x4xbf16>
    %190 = vector.extract_strided_slice %184 {offsets = [0, 4], sizes = [8, 4], strides = [1, 1]} : vector<8x12xf32> to vector<8x4xf32>
    %191 = arith.truncf %190 : vector<8x4xf32> to vector<8x4xbf16>
    %192 = vector.shape_cast %191 : vector<8x4xbf16> to vector<1x8x4xbf16>
    %193 = vector.extract_strided_slice %184 {offsets = [0, 8], sizes = [8, 4], strides = [1, 1]} : vector<8x12xf32> to vector<8x4xf32>
    %194 = arith.truncf %193 : vector<8x4xf32> to vector<8x4xbf16>
    %195 = vector.shape_cast %194 : vector<8x4xbf16> to vector<1x8x4xbf16>
    "tpu.trace_start"() <{level = 10 : i32, message = "bnd,bmd->bnm"}> : () -> ()
    %cst_62 = arith.constant dense<0.000000e+00> : vector<1x8x8xf32>
    %196 = tpu.matmul %189, %192, %cst_62 {dimension_numbers = #tpu.dot_dimension_numbers<[2], [2], [1], [1], [0, 0, 0, 1, 1, 1], [0], [0]>} : vector<1x8x4xbf16>, vector<1x8x4xbf16>, vector<1x8x8xf32> -> vector<1x8x8xf32>
    "tpu.trace_stop"() : () -> ()
    %cst_63 = arith.constant dense<0xFF800000> : vector<1x8xf32>
    %197 = vector.multi_reduction <maximumf>, %196, %cst_63 [2] : vector<1x8x8xf32> to vector<1x8xf32>
    %198 = vector.shape_cast %197 : vector<1x8xf32> to vector<1x8x1xf32>
    %199 = vector.broadcast %198 : vector<1x8x1xf32> to vector<1x8x8xf32>
    %200 = arith.subf %196, %199 : vector<1x8x8xf32>
    %201 = math.exp %200 : vector<1x8x8xf32>
    %cst_64 = arith.constant dense<0.000000e+00> : vector<1x8xf32>
    %202 = vector.multi_reduction <add>, %201, %cst_64 [2] : vector<1x8x8xf32> to vector<1x8xf32>
    %203 = vector.shape_cast %202 : vector<1x8xf32> to vector<1x8x1xf32>
    %204 = arith.truncf %201 : vector<1x8x8xf32> to vector<1x8x8xbf16>
    "tpu.trace_start"() <{level = 10 : i32, message = "bnm,bmd->bnd"}> : () -> ()
    %cst_65 = arith.constant dense<0.000000e+00> : vector<1x8x4xf32>
    %205 = tpu.matmul %204, %195, %cst_65 {dimension_numbers = #tpu.dot_dimension_numbers<[2], [1], [1], [2], [0, 0, 0, 1, 1, 2], [0], [0]>} : vector<1x8x8xbf16>, vector<1x8x4xbf16>, vector<1x8x4xf32> -> vector<1x8x4xf32>
    "tpu.trace_stop"() : () -> ()
    %206 = tpu.reciprocal %203 {approx = true} : vector<1x8x1xf32> -> vector<1x8x1xf32>
    %207 = vector.broadcast %206 : vector<1x8x1xf32> to vector<1x8x4xf32>
    %208 = arith.mulf %205, %207 : vector<1x8x4xf32>
    %209 = vector.shape_cast %208 : vector<1x8x4xf32> to vector<8x4xf32>
    %210 = arith.truncf %209 : vector<8x4xf32> to vector<8x4xbf16>
    %c0_66 = arith.constant 0 : index
    %c24 = arith.constant 24 : index
    %211 = vector.load %arg6[%c0_66, %c24] : memref<8x32xbf16, #tpu.memory_space<vmem>>, vector<8x4xbf16>
    tpu.vector_store %arg6[%c0_66, %c24], %210 {strides = array<i32>} : memref<8x32xbf16, #tpu.memory_space<vmem>>, vector<8x4xbf16>,
    %c7 = arith.constant 7 : index
    %c0_67 = arith.constant 0 : index
    %c0_68 = arith.constant 0 : index
    %212 = vector.load %arg2[%c7, %c0_67, %c0_68] : memref<8x32x12xbf16, #tpu.memory_space<vmem>>, vector<1x32x12xbf16>
    %213 = vector.shape_cast %212 : vector<1x32x12xbf16> to vector<32x12xbf16>
    %cst_69 = arith.constant dense<0.000000e+00> : vector<8x12xf32>
    %214 = tpu.matmul %1, %213, %cst_69 {dimension_numbers = #tpu.dot_dimension_numbers<[1], [0], [0], [1], [0, 0, 1, 1], [], []>} : vector<8x32xbf16>, vector<32x12xbf16>, vector<8x12xf32> -> vector<8x12xf32>
    %215 = vector.extract_strided_slice %214 {offsets = [0, 0], sizes = [8, 4], strides = [1, 1]} : vector<8x12xf32> to vector<8x4xf32>
    %cst_70 = arith.constant 5.000000e-01 : f32
    %216 = vector.broadcast %cst_70 : f32 to vector<8x4xf32>
    %217 = arith.mulf %215, %216 : vector<8x4xf32>
    %218 = arith.truncf %217 : vector<8x4xf32> to vector<8x4xbf16>
    %219 = vector.shape_cast %218 : vector<8x4xbf16> to vector<1x8x4xbf16>
    %220 = vector.extract_strided_slice %214 {offsets = [0, 4], sizes = [8, 4], strides = [1, 1]} : vector<8x12xf32> to vector<8x4xf32>
    %221 = arith.truncf %220 : vector<8x4xf32> to vector<8x4xbf16>
    %222 = vector.shape_cast %221 : vector<8x4xbf16> to vector<1x8x4xbf16>
    %223 = vector.extract_strided_slice %214 {offsets = [0, 8], sizes = [8, 4], strides = [1, 1]} : vector<8x12xf32> to vector<8x4xf32>
    %224 = arith.truncf %223 : vector<8x4xf32> to vector<8x4xbf16>
    %225 = vector.shape_cast %224 : vector<8x4xbf16> to vector<1x8x4xbf16>
    "tpu.trace_start"() <{level = 10 : i32, message = "bnd,bmd->bnm"}> : () -> ()
    %cst_71 = arith.constant dense<0.000000e+00> : vector<1x8x8xf32>
    %226 = tpu.matmul %219, %222, %cst_71 {dimension_numbers = #tpu.dot_dimension_numbers<[2], [2], [1], [1], [0, 0, 0, 1, 1, 1], [0], [0]>} : vector<1x8x4xbf16>, vector<1x8x4xbf16>, vector<1x8x8xf32> -> vector<1x8x8xf32>
    "tpu.trace_stop"() : () -> ()
    %cst_72 = arith.constant dense<0xFF800000> : vector<1x8xf32>
    %227 = vector.multi_reduction <maximumf>, %226, %cst_72 [2] : vector<1x8x8xf32> to vector<1x8xf32>
    %228 = vector.shape_cast %227 : vector<1x8xf32> to vector<1x8x1xf32>
    %229 = vector.broadcast %228 : vector<1x8x1xf32> to vector<1x8x8xf32>
    %230 = arith.subf %226, %229 : vector<1x8x8xf32>
    %231 = math.exp %230 : vector<1x8x8xf32>
    %cst_73 = arith.constant dense<0.000000e+00> : vector<1x8xf32>
    %232 = vector.multi_reduction <add>, %231, %cst_73 [2] : vector<1x8x8xf32> to vector<1x8xf32>
    %233 = vector.shape_cast %232 : vector<1x8xf32> to vector<1x8x1xf32>
    %234 = arith.truncf %231 : vector<1x8x8xf32> to vector<1x8x8xbf16>
    "tpu.trace_start"() <{level = 10 : i32, message = "bnm,bmd->bnd"}> : () -> ()
    %cst_74 = arith.constant dense<0.000000e+00> : vector<1x8x4xf32>
    %235 = tpu.matmul %234, %225, %cst_74 {dimension_numbers = #tpu.dot_dimension_numbers<[2], [1], [1], [2], [0, 0, 0, 1, 1, 2], [0], [0]>} : vector<1x8x8xbf16>, vector<1x8x4xbf16>, vector<1x8x4xf32> -> vector<1x8x4xf32>
    "tpu.trace_stop"() : () -> ()
    %236 = tpu.reciprocal %233 {approx = true} : vector<1x8x1xf32> -> vector<1x8x1xf32>
    %237 = vector.broadcast %236 : vector<1x8x1xf32> to vector<1x8x4xf32>
    %238 = arith.mulf %235, %237 : vector<1x8x4xf32>
    %239 = vector.shape_cast %238 : vector<1x8x4xf32> to vector<8x4xf32>
    %240 = arith.truncf %239 : vector<8x4xf32> to vector<8x4xbf16>
    %c0_75 = arith.constant 0 : index
    %c28 = arith.constant 28 : index
    %241 = vector.load %arg6[%c0_75, %c28] : memref<8x32xbf16, #tpu.memory_space<vmem>>, vector<8x4xbf16>
    tpu.vector_store %arg6[%c0_75, %c28], %240 {strides = array<i32>} : memref<8x32xbf16, #tpu.memory_space<vmem>>, vector<8x4xbf16>,
    %c0_76 = arith.constant 0 : index
    %c0_77 = arith.constant 0 : index
    %242 = vector.load %arg6[%c0_76, %c0_77] : memref<8x32xbf16, #tpu.memory_space<vmem>>, vector<8x32xbf16>
    %c0_78 = arith.constant 0 : index
    %c0_79 = arith.constant 0 : index
    %243 = vector.load %arg3[%c0_78, %c0_79] : memref<32x32xbf16, #tpu.memory_space<vmem>>, vector<32x32xbf16>
    %cst_80 = arith.constant dense<0.000000e+00> : vector<8x32xf32>
    %244 = tpu.matmul %242, %243, %cst_80 {dimension_numbers = #tpu.dot_dimension_numbers<[1], [0], [0], [1], [0, 0, 1, 1], [], []>} : vector<8x32xbf16>, vector<32x32xbf16>, vector<8x32xf32> -> vector<8x32xf32>
    %c0_81 = arith.constant 0 : index
    %c0_82 = arith.constant 0 : index
    %245 = vector.load %arg4[%c0_81, %c0_82] : memref<1x32xf32, #tpu.memory_space<vmem>>, vector<1x32xf32>
    %246 = vector.broadcast %245 : vector<1x32xf32> to vector<8x32xf32>
    %247 = arith.addf %244, %246 : vector<8x32xf32>
    %248 = vector.shape_cast %247 : vector<8x32xf32> to vector<1x8x32xf32>
    %c0_83 = arith.constant 0 : index
    %c0_84 = arith.constant 0 : index
    %c0_85 = arith.constant 0 : index
    %249 = vector.load %arg5[%c0_83, %c0_84, %c0_85] : memref<1x8x32xf32, #tpu.memory_space<vmem>>, vector<1x8x32xf32>
    tpu.vector_store %arg5[%c0_83, %c0_84, %c0_85], %248 {strides = array<i32>} : memref<1x8x32xf32, #tpu.memory_space<vmem>>, vector<1x8x32xf32>,
    return
  }
  func.func @transform_0(%arg0: i32) -> (i32, i32, i32) {
    %c0_i32 = arith.constant 0 : i32
    %c0_i32_0 = arith.constant 0 : i32
    %c0_i32_1 = arith.constant 0 : i32
    return %arg0, %c0_i32, %c0_i32_0 : i32, i32, i32
  }
  func.func @transform_1(%arg0: i32) -> (i32, i32, i32) {
    %c0_i32 = arith.constant 0 : i32
    %c0_i32_0 = arith.constant 0 : i32
    %c0_i32_1 = arith.constant 0 : i32
    %c0_i32_2 = arith.constant 0 : i32
    return %c0_i32, %c0_i32_0, %c0_i32_1 : i32, i32, i32
  }
  func.func @transform_2(%arg0: i32) -> (i32, i32) {
    %c0_i32 = arith.constant 0 : i32
    %c0_i32_0 = arith.constant 0 : i32
    %c0_i32_1 = arith.constant 0 : i32
    return %c0_i32, %c0_i32_0 : i32, i32
  }
  func.func @transform_3(%arg0: i32) -> (i32, i32) {
    %c0_i32 = arith.constant 0 : i32
    %c0_i32_0 = arith.constant 0 : i32
    %c0_i32_1 = arith.constant 0 : i32
    return %c0_i32, %c0_i32_0 : i32, i32
  }
  func.func @transform_4(%arg0: i32) -> (i32, i32, i32) {
    %c0_i32 = arith.constant 0 : i32
    %c0_i32_0 = arith.constant 0 : i32
    %c0_i32_1 = arith.constant 0 : i32
    return %arg0, %c0_i32, %c0_i32_0 : i32, i32, i32
  }
}

</mosaic_0001>

<llo_original>
// kernel: tpu_custom_call.1
$region0: #{tpu_custom_call.1}
  #allocation0 [shape = 'u32[]', space=smem, size = 0x4, offset = 0x4, fixed_abs, tag = 'smem constant byte address 0x4 - core index']
  #allocation1 [shape = 'u32[144,128]{1,0:T(1,128)}', space=vmem, size = 0x12000, scoped, tag = 'internal scratch']
  #allocation2 [shape = 'bf16[8,32]{1,0:T(8,128)(2,1)}', space=vmem, size = 0x800, scoped, tag = 'scratch operand']
  %s0 = inlined_call_operand.hbm [shape: bf16[2,8,32], index: 0, kind: input, shape index: {}]
  %s1 = inlined_call_operand.hbm [shape: bf16[8,32,12], index: 1, kind: input, shape index: {}]
  %s2 = inlined_call_operand.hbm [shape: bf16[32,32], index: 2, kind: input, shape index: {}]
  %s3 = inlined_call_operand.hbm [shape: f32[1,32], index: 3, kind: input, shape index: {}]
  %s4 = inlined_call_operand.hbm [shape: f32[2,8,32], index: 4, kind: output, shape index: {}]
  %s5 = sld [smem:[#allocation0]]
  $region65: #{tpu_custom_call.1} parent=0
    _
  %s7 = ssub.s32 1, %s5
  %s8 = scalar_select 0, %s7, %s5
  $region1: #{tpu_custom_call.1} parent=0
    #allocation3 [shape = 'u8[4096]{0}', space=vmem, size = 0x1000, scoped, tag = 'input window, operand 0']
    #allocation4 [shape = 's32[2]{0}', space=sflag, size = 0x8, scoped, tag = 'scoped memory for tpu_custom_call.1']
    #allocation5 [shape = 's32[2]{0}', space=sflag, size = 0x8, scoped, tag = 'scoped memory for tpu_custom_call.1']
    #allocation6 [shape = 'u8[65536]{0}', space=vmem, size = 0x10000, scoped, tag = 'input window, operand 1, single buffered']
    #allocation7 [shape = 's32[1]{0}', space=sflag, size = 0x4, scoped, tag = 'scoped memory for tpu_custom_call.1']
    #allocation8 [shape = 'u8[8192]{0}', space=vmem, size = 0x2000, scoped, tag = 'input window, operand 2, single buffered']
    #allocation9 [shape = 'u8[512]{0}', space=vmem, size = 0x400, scoped, tag = 'input window, operand 3, single buffered']
    #allocation10 [shape = 's32[1]{0}', space=sflag, size = 0x4, scoped, tag = 'scoped memory for tpu_custom_call.1']
    #allocation11 [shape = 'u8[8192]{0}', space=vmem, size = 0x2000, scoped, tag = 'output window, operand 0']
    %9 = vsyncpa [#allocation4], 0
    %s10 = scalar_lea.sflag [#allocation4], 1
    %11 = vsyncpa %s10, 0
    %12 = vsyncpa [#allocation7], 0
    %13 = vsyncpa [#allocation10], 0
    %14 = vsyncpa [#allocation5], 0
    %s15 = scalar_lea.sflag [#allocation5], 1
    %16 = vsyncpa %s15, 0
    loop: start=0, step=1, limit=4
    $region2: #{tpu_custom_call.1} parent=1 // loop_pre_header
      _
    $region3: #{tpu_custom_call.1} parent=1 // loop_header
      %s18 = sphi 0, %s22
      %p19 = scmp.ge.s32.totalorder %s18, 4
      %s28 = sphi 0, %s30
      %s31 = sphi 0, %s28
      %s32 = sphi 0, %s31
      %s48 = sphi 0, %s32
      %s52 = sphi 0, %s52
      %s54 = sphi 0, %s52
      %s55 = sphi 0, %s54
      %s69 = sphi 0, %s55
      %s73 = sphi 0, %s73
      %s75 = sphi 0, %s73
      %s76 = sphi 0, %s75
      %s90 = sphi 0, %s76
      %s94 = sphi 0, %s94
      %s96 = sphi 0, %s94
      %s97 = sphi 0, %s96
      %s111 = sphi 0, %s97
      %s117 = sphi 0, %s119
      %s120 = sphi 0, %s117
      %s121 = sphi 0, %s120
      %s137 = sphi 0, %s121
    $region4: #{tpu_custom_call.1} parent=1 // loop_header_branch
      %21 = sbr.rel (%p19) target = $region8
    $region5: #{tpu_custom_call.1} parent=1 // loop_body
      %s23 = ssub.s32 %s18, 1
      %s24 = ssub.s32 %s18, 2
      %s25 = sadd.s32 %s18, 1
      %s26 = ssub.s32 %s18, %s25
      %p27 = scmp.eq.s32.totalorder %s26, 0
      %s29 = sadd.s32 %s28, 1
      %s30 = scalar_select %p27, %s28, %s29
      %p33 = pneg %p27
      %p34 = scmp.eq.s32.totalorder %s18, 1
      %p35 = por %p33, %p34
      %p36 = scmp.ne.s32.totalorder %s28, %s31
      %p37 = scmp.eq.s32.totalorder %s18, 0
      %p38 = por %p36, %p37
      %p39 = scmp.ne.s32.totalorder %s28, %s31
      %p40 = scmp.eq.s32.totalorder %s23, 1
      %p41 = por %p39, %p40
      %p42 = scmp.ne.s32.totalorder %s31, %s32
      %p43 = scmp.eq.s32.totalorder %s23, 0
      %p44 = por %p42, %p43
      %p45 = scmp.ne.s32.totalorder %s31, %s32
      %p46 = scmp.eq.s32.totalorder %s24, 1
      %p47 = por %p45, %p46
      %p49 = scmp.ne.s32.totalorder %s32, %s48
      %p50 = scmp.eq.s32.totalorder %s24, 0
      %p51 = por %p49, %p50
      %s53 = sadd.s32 %s52, 1
      %p56 = scmp.eq.s32.totalorder %s18, 1
      %p57 = scmp.ne.s32.totalorder %s52, %s54
      %p58 = scmp.eq.s32.totalorder %s18, 0
      %p59 = por %p57, %p58
      %p60 = scmp.ne.s32.totalorder %s52, %s54
      %p61 = scmp.eq.s32.totalorder %s23, 1
      %p62 = por %p60, %p61
      %p63 = scmp.ne.s32.totalorder %s54, %s55
      %p64 = scmp.eq.s32.totalorder %s23, 0
      %p65 = por %p63, %p64
      %p66 = scmp.ne.s32.totalorder %s54, %s55
      %p67 = scmp.eq.s32.totalorder %s24, 1
      %p68 = por %p66, %p67
      %p70 = scmp.ne.s32.totalorder %s55, %s69
      %p71 = scmp.eq.s32.totalorder %s24, 0
      %p72 = por %p70, %p71
      %s74 = sadd.s32 %s73, 1
      %p77 = scmp.eq.s32.totalorder %s18, 1
      %p78 = scmp.ne.s32.totalorder %s73, %s75
      %p79 = scmp.eq.s32.totalorder %s18, 0
      %p80 = por %p78, %p79
      %p81 = scmp.ne.s32.totalorder %s73, %s75
      %p82 = scmp.eq.s32.totalorder %s23, 1
      %p83 = por %p81, %p82
      %p84 = scmp.ne.s32.totalorder %s75, %s76
      %p85 = scmp.eq.s32.totalorder %s23, 0
      %p86 = por %p84, %p85
      %p87 = scmp.ne.s32.totalorder %s75, %s76
      %p88 = scmp.eq.s32.totalorder %s24, 1
      %p89 = por %p87, %p88
      %p91 = scmp.ne.s32.totalorder %s76, %s90
      %p92 = scmp.eq.s32.totalorder %s24, 0
      %p93 = por %p91, %p92
      %s95 = sadd.s32 %s94, 1
      %p98 = scmp.eq.s32.totalorder %s18, 1
      %p99 = scmp.ne.s32.totalorder %s94, %s96
      %p100 = scmp.eq.s32.totalorder %s18, 0
      %p101 = por %p99, %p100
      %p102 = scmp.ne.s32.totalorder %s94, %s96
      %p103 = scmp.eq.s32.totalorder %s23, 1
      %p104 = por %p102, %p103
      %p105 = scmp.ne.s32.totalorder %s96, %s97
      %p106 = scmp.eq.s32.totalorder %s23, 0
      %p107 = por %p105, %p106
      %p108 = scmp.ne.s32.totalorder %s96, %s97
      %p109 = scmp.eq.s32.totalorder %s24, 1
      %p110 = por %p108, %p109
      %p112 = scmp.ne.s32.totalorder %s97, %s111
      %p113 = scmp.eq.s32.totalorder %s24, 0
      %p114 = por %p112, %p113
      %s115 = ssub.s32 %s18, %s25
      %p116 = scmp.eq.s32.totalorder %s115, 0
      %s118 = sadd.s32 %s117, 1
      %s119 = scalar_select %p116, %s117, %s118
      %p122 = pneg %p116
      %p123 = scmp.eq.s32.totalorder %s18, 1
      %p124 = por %p122, %p123
      %p125 = scmp.ne.s32.totalorder %s117, %s120
      %p126 = scmp.eq.s32.totalorder %s18, 0
      %p127 = por %p125, %p126
      %p128 = scmp.ne.s32.totalorder %s117, %s120
      %p129 = scmp.eq.s32.totalorder %s23, 1
      %p130 = por %p128, %p129
      %p131 = scmp.ne.s32.totalorder %s120, %s121
      %p132 = scmp.eq.s32.totalorder %s23, 0
      %p133 = por %p131, %p132
      %p134 = scmp.ne.s32.totalorder %s120, %s121
      %p135 = scmp.eq.s32.totalorder %s24, 1
      %p136 = por %p134, %p135
      %p138 = scmp.ne.s32.totalorder %s121, %s137
      %p139 = scmp.eq.s32.totalorder %s24, 0
      %p140 = por %p138, %p139
      %p141 = scmp.le.s32.totalorder 1, %s18
      %p142 = scmp.lt.s32.totalorder %s18, 3
      %p143 = pnand %p141, %p142
      %p144 = pneg %p143
      // Predicated region
      $region9: #{tpu_custom_call.1} parent=5 // pred_check
        _
      $region10: #{tpu_custom_call.1} parent=5 // pred_check_branch
        %146 = sbr.rel (%p143) target = $region12
      $region11: #{tpu_custom_call.1} parent=5 // pred_region
        %s147 = ssub.s32 %s18, 1
        // Predicated region
        $region13: #{tpu_custom_call.1} parent=11 // pred_check
          %p148 = pneg %p65
        $region14: #{tpu_custom_call.1} parent=11 // pred_check_branch
          %150 = sbr.rel (%p148) target = $region16
        $region15: #{tpu_custom_call.1} parent=11 // pred_region
          %s152 = ssub.s32 2048, 2048
          %153 = vsyncadd [#allocation7], %s152
          %s154 = sshll.u32 [#allocation6], 4
          %s155 = int_to_ptr.vmem [resolvable:$true] %s154
          %160 = dma.hbm_to_vmem [thread:$0]  %s1, 2048, %s155, [#allocation7], 64, 64, 4
        $region16: #{tpu_custom_call.1} parent=11 // pred_fallthru
          _
        // Predicated region
        $region17: #{tpu_custom_call.1} parent=11 // pred_check
          %p161 = pneg %p86
        $region18: #{tpu_custom_call.1} parent=11 // pred_check_branch
          %163 = sbr.rel (%p161) target = $region20
        $region19: #{tpu_custom_call.1} parent=11 // pred_region
          %s165 = ssub.s32 256, 256
          %166 = vsyncadd [#allocation7], %s165
          %s167 = sshll.u32 [#allocation8], 4
          %s168 = int_to_ptr.vmem [resolvable:$true] %s167
          %173 = dma.hbm_to_vmem [thread:$0]  %s2, 256, %s168, [#allocation7], 64, 64, 4
        $region20: #{tpu_custom_call.1} parent=11 // pred_fallthru
          _
        // Predicated region
        $region21: #{tpu_custom_call.1} parent=11 // pred_check
          %p174 = pneg %p107
        $region22: #{tpu_custom_call.1} parent=11 // pred_check_branch
          %176 = sbr.rel (%p174) target = $region24
        $region23: #{tpu_custom_call.1} parent=11 // pred_region
          %s178 = ssub.s32 16, 16
          %179 = vsyncadd [#allocation10], %s178
          %s181 = sshll.u32 [#allocation9], 4
          %s182 = int_to_ptr.vmem [resolvable:$true] %s181
          %184 = dma.hbm_to_vmem [thread:$0]  %s3, 16, %s182, [#allocation10]
        $region24: #{tpu_custom_call.1} parent=11 // pred_fallthru
          _
      $region12: #{tpu_custom_call.1} parent=5 // pred_fallthru
        _
      %p185 = scmp.lt.s32.totalorder %s18, 2
      // Predicated region
      $region25: #{tpu_custom_call.1} parent=5 // pred_check
        %p186 = pneg %p185
      $region26: #{tpu_custom_call.1} parent=5 // pred_check_branch
        %188 = sbr.rel (%p186) target = $region28
      $region27: #{tpu_custom_call.1} parent=5 // pred_region
        // Predicated region
        $region29: #{tpu_custom_call.1} parent=27 // pred_check
          %p189 = pneg %p38
        $region30: #{tpu_custom_call.1} parent=27 // pred_check_branch
          %191 = sbr.rel (%p189) target = $region32
        $region31: #{tpu_custom_call.1} parent=27 // pred_region
          %s192 = sand.u32 %s28, 1
          %s193 = scalar_lea.sflag [#allocation4], %s192
          %s194 = sand.u32 %s28, 1
          %s195 = smul.addr %s194, 4
          %s196 = scalar_lea.vmem [#allocation3], %s195
          %s198 = ssub.s32 64, 64
          %199 = vsyncadd %s193, %s198
          %s200 = smul.addr %s18, 64
          %s201 = scalar_lea.hbm %s0, %s200
          %s203 = sshll.u32 %s196, 4
          %s204 = int_to_ptr.vmem [resolvable:$true] %s203
          %206 = dma.hbm_to_vmem [thread:$0]  %s201, 64, %s204, %s193
        $region32: #{tpu_custom_call.1} parent=27 // pred_fallthru
          _
      $region28: #{tpu_custom_call.1} parent=5 // pred_fallthru
        _
      %p207 = scmp.le.s32.totalorder 1, %s18
      %p208 = scmp.lt.s32.totalorder %s18, 3
      %p209 = pnand %p207, %p208
      %p210 = pneg %p209
      // Predicated region
      $region33: #{tpu_custom_call.1} parent=5 // pred_check
        _
      $region34: #{tpu_custom_call.1} parent=5 // pred_check_branch
        %212 = sbr.rel (%p209) target = $region36
      $region35: #{tpu_custom_call.1} parent=5 // pred_region
        %s213 = ssub.s32 %s18, 1
        %s214 = sand.u32 %s31, 1
        %s215 = scalar_lea.sflag [#allocation4], %s214
        %s216 = sand.u32 %s31, 1
        %s217 = smul.addr %s216, 4
        %s218 = scalar_lea.vmem [#allocation3], %s217
        // Predicated region
        $region37: #{tpu_custom_call.1} parent=35 // pred_check
          %p219 = pneg %p44
        $region38: #{tpu_custom_call.1} parent=35 // pred_check_branch
          %221 = sbr.rel (%p219) target = $region40
        $region39: #{tpu_custom_call.1} parent=35 // pred_region
          %222 = dma.done %s215, 64
        $region40: #{tpu_custom_call.1} parent=35 // pred_fallthru
          _
        // Predicated region
        $region41: #{tpu_custom_call.1} parent=35 // pred_check
          %p223 = pneg %p65
        $region42: #{tpu_custom_call.1} parent=35 // pred_check_branch
          %225 = sbr.rel (%p223) target = $region44
        $region43: #{tpu_custom_call.1} parent=35 // pred_region
          %226 = dma.done [#allocation7], 2048
        $region44: #{tpu_custom_call.1} parent=35 // pred_fallthru
          _
        // Predicated region
        $region45: #{tpu_custom_call.1} parent=35 // pred_check
          %p227 = pneg %p86
        $region46: #{tpu_custom_call.1} parent=35 // pred_check_branch
          %229 = sbr.rel (%p227) target = $region48
        $region47: #{tpu_custom_call.1} parent=35 // pred_region
          %230 = dma.done [#allocation7], 256
        $region48: #{tpu_custom_call.1} parent=35 // pred_fallthru
          _
        // Predicated region
        $region49: #{tpu_custom_call.1} parent=35 // pred_check
          %p231 = pneg %p107
        $region50: #{tpu_custom_call.1} parent=35 // pred_check_branch
          %233 = sbr.rel (%p231) target = $region52
        $region51: #{tpu_custom_call.1} parent=35 // pred_region
          %234 = dma.done [#allocation10], 16
        $region52: #{tpu_custom_call.1} parent=35 // pred_fallthru
          _
        %s235 = sand.u32 %s31, 1
        %s236 = scalar_lea.sflag [#allocation4], %s235
        %s237 = sand.u32 %s31, 1
        %s238 = smul.addr %s237, 4
        %s239 = scalar_lea.vmem [#allocation3], %s238
        %p240 = pneg %p44
        %p241 = pneg %p41
        %p242 = pneg %p65
        %p243 = pneg %p62
        %p244 = pneg %p86
        %p245 = pneg %p83
        %p246 = pneg %p107
        %p247 = pneg %p104
        %p248 = pneg %p133
        %p249 = pneg %p130
        %s250 = sand.u32 %s120, 1
        %s251 = scalar_lea.sflag [#allocation5], %s250
        %s252 = sand.u32 %s120, 1
        %s253 = smul.addr %s252, 8
        %s254 = scalar_lea.vmem [#allocation11], %s253
        %v256 = vld [vmem:[%s218] sm:$0xf]
        %v257 = vld [vmem:[#allocation6] sm:$0xf]
        %v258 = vld [vmem:[#allocation6 + $0x4] sm:$0xf]
        %v259 = vld [vmem:[#allocation6 + $0x8] sm:$0xf]
        %v260 = vld [vmem:[#allocation6 + $0xc] sm:$0xf]
        %v265 = vunpack.c.l.b16 %v257
        %v266 = vunpack.c.l.b16 %v258
        %v267 = vunpack.c.l.b16 %v259
        %v268 = vunpack.c.l.b16 %v260
        %v269 = vpack.c.b16 %v266, %v265
        %v270 = vpack.c.b16 %v268, %v267
        %vm273 = vcmask 261120
        %v275 = vsel %vm273, %v256, 0
        %277 = vmatprep.subr.bf16.mxu0 0
        %278 = vmatpush1.bf16.msra.mxu0 %v269
        %279 = vmatprep.subr.bf16.mxu0 0
        %280 = vmatpush1.bf16.msra.mxu0 %v270
        %281 = vmatprep.subr.bf16.mxu0 0
        %282 = vmatpush1.bf16.msra.mxu0 0
        %283 = vmatprep.subr.bf16.mxu0 0
        %284 = vmatpush1.bf16.msra.mxu0 0
        %285 = vmatprep.subr.bf16.mxu0 0
        %286 = vmatpush1.bf16.msra.mxu0 0
        %287 = vmatprep.subr.bf16.mxu0 0
        %288 = vmatpush1.bf16.msra.mxu0 0
        %289 = vmatprep.subr.bf16.mxu0 0
        %290 = vmatpush1.bf16.msra.mxu0 0
        %291 = vmatprep.subr.bf16.mxu0 0
        %292 = vmatpush1.bf16.msra.mxu0 0
        %293 = vmatprep.subr.bf16.mxu0 0
        %294 = vmatpush1.bf16.msra.mxu0 0
        %295 = vmatprep.subr.bf16.mxu0 0
        %296 = vmatpush1.bf16.msra.mxu0 0
        %297 = vmatprep.subr.bf16.mxu0 0
        %298 = vmatpush1.bf16.msra.mxu0 0
        %299 = vmatprep.subr.bf16.mxu0 0
        %300 = vmatpush1.bf16.msra.mxu0 0
        %301 = vmatprep.subr.bf16.mxu0 0
        %302 = vmatpush1.bf16.msra.mxu0 0
        %303 = vmatprep.subr.bf16.mxu0 0
        %304 = vmatpush1.bf16.msra.mxu0 0
        %305 = vmatprep.subr.bf16.mxu0 0
        %306 = vmatpush1.bf16.msra.mxu0 0
        %307 = vmatprep.subr.bf16.mxu0 0
        %308 = vmatpush1.bf16.msra.mxu0 0
        %309 = vmatprep.mubr.bf16.mxu0 0
        %310 = vmatmul.mubr.bf16.gmra.mrb[0].mxu0 %v275
        %v311 = vpop.f32.mrb[0].mxu0
        %v312 = vadd.f32 0.0, %v311
        %v313 = vpop.f32.mrb[0].mxu0
        %v314 = vpop.f32.mrb[0].mxu0
        %v315 = vpop.f32.mrb[0].mxu0
        %316 = vdwg.mxu0
        %v317 = vmul.f32 %v312, 0.5
        %v318 = vpack.c.bf16 %v317, %v317
        %v319 = vpack.c.bf16 %v312, %v312
        %321 = vrot.lane.b32.xlu0 %v319, 124
        %v322 = vpop.permute.xlu0 %321
        %vm323 = vcmask 31744
        %v325 = vsel %vm323, %v318, 0
        %v328 = vsel %vm323, %v322, 0
        %330 = vmatprep.subr.bf16.mxu0 0
        %331 = vmatpush1.bf16.xpose.msra.mxu0 %v328
        %332 = vmatprep.subr.bf16.mxu0 0
        %333 = vmatpush1.bf16.xpose.msra.mxu0 0
        %334 = vmatprep.subr.bf16.mxu0 0
        %335 = vmatpush1.bf16.xpose.msra.mxu0 0
        %336 = vmatprep.subr.bf16.mxu0 0
        %337 = vmatpush1.bf16.xpose.msra.mxu0 0
        %338 = vmatprep.subr.bf16.mxu0 0
        %339 = vmatpush1.bf16.xpose.msra.mxu0 0
        %340 = vmatprep.subr.bf16.mxu0 0
        %341 = vmatpush1.bf16.xpose.msra.mxu0 0
        %342 = vmatprep.subr.bf16.mxu0 0
        %343 = vmatpush1.bf16.xpose.msra.mxu0 0
        %344 = vmatprep.subr.bf16.mxu0 0
        %345 = vmatpush1.bf16.xpose.msra.mxu0 0
        %346 = vmatprep.subr.bf16.mxu0 0
        %347 = vmatpush1.bf16.xpose.msra.mxu0 0
        %348 = vmatprep.subr.bf16.mxu0 0
        %349 = vmatpush1.bf16.xpose.msra.mxu0 0
        %350 = vmatprep.subr.bf16.mxu0 0
        %351 = vmatpush1.bf16.xpose.msra.mxu0 0
        %352 = vmatprep.subr.bf16.mxu0 0
        %353 = vmatpush1.bf16.xpose.msra.mxu0 0
        %354 = vmatprep.subr.bf16.mxu0 0
        %355 = vmatpush1.bf16.xpose.msra.mxu0 0
        %356 = vmatprep.subr.bf16.mxu0 0
        %357 = vmatpush1.bf16.xpose.msra.mxu0 0
        %358 = vmatprep.subr.bf16.mxu0 0
        %359 = vmatpush1.bf16.xpose.msra.mxu0 0
        %360 = vmatprep.subr.bf16.mxu0 0
        %361 = vmatpush1.bf16.xpose.msra.mxu0 0
        %362 = vmatprep.mubr.bf16.mxu0 0
        %363 = vmatmul.mubr.bf16.gmra.mrb[0].mxu0 %v325
        %v364 = vpop.f32.mrb[0].mxu0
        %v365 = vadd.f32 0.0, %v364
        %v366 = vpop.f32.mrb[0].mxu0
        %v367 = vpop.f32.mrb[0].mxu0
        %v368 = vpop.f32.mrb[0].mxu0
        %369 = vdwg.mxu0
        %vm370 = vcmask 64512
        %v371 = vsel %vm370, %v365, -inf
        %372 = vmax.xlane.f32.xlu0 %v371
        %v373 = vpop.xlane.xlu0 %372
        %v374 = vsub.f32 %v365, %v373
        %v375 = vmul.f32 %v374, 1.442695
        %v376 = vpow.pop %v375
        %v377 = vsel %vm370, %v376, 0.0
        %378 = vadd.xlane.f32.xlu0 %v377
        %v379 = vpop.xlane.xlu0 %378
        %v380 = vpack.c.bf16 %v376, %v376
        %381 = vrot.lane.b32.xlu0 %v319, 120
        %v382 = vpop.permute.xlu0 %381
        %v384 = vsel %vm370, %v380, 0
        %vm386 = vcmask 1043456
        %v388 = vsel %vm386, %v382, 0
        %390 = vmatprep.subr.bf16.mxu0 0
        %391 = vmatpush1.bf16.msra.mxu0 %v388
        %392 = vmatprep.subr.bf16.mxu0 0
        %393 = vmatpush1.bf16.msra.mxu0 0
        %394 = vmatprep.subr.bf16.mxu0 0
        %395 = vmatpush1.bf16.msra.mxu0 0
        %396 = vmatprep.subr.bf16.mxu0 0
        %397 = vmatpush1.bf16.msra.mxu0 0
        %398 = vmatprep.subr.bf16.mxu0 0
        %399 = vmatpush1.bf16.msra.mxu0 0
        %400 = vmatprep.subr.bf16.mxu0 0
        %401 = vmatpush1.bf16.msra.mxu0 0
        %402 = vmatprep.subr.bf16.mxu0 0
        %403 = vmatpush1.bf16.msra.mxu0 0
        %404 = vmatprep.subr.bf16.mxu0 0
        %405 = vmatpush1.bf16.msra.mxu0 0
        %406 = vmatprep.subr.bf16.mxu0 0
        %407 = vmatpush1.bf16.msra.mxu0 0
        %408 = vmatprep.subr.bf16.mxu0 0
        %409 = vmatpush1.bf16.msra.mxu0 0
        %410 = vmatprep.subr.bf16.mxu0 0
        %411 = vmatpush1.bf16.msra.mxu0 0
        %412 = vmatprep.subr.bf16.mxu0 0
        %413 = vmatpush1.bf16.msra.mxu0 0
        %414 = vmatprep.subr.bf16.mxu0 0
        %415 = vmatpush1.bf16.msra.mxu0 0
        %416 = vmatprep.subr.bf16.mxu0 0
        %417 = vmatpush1.bf16.msra.mxu0 0
        %418 = vmatprep.subr.bf16.mxu0 0
        %419 = vmatpush1.bf16.msra.mxu0 0
        %420 = vmatprep.subr.bf16.mxu0 0
        %421 = vmatpush1.bf16.msra.mxu0 0
        %422 = vmatprep.mubr.bf16.mxu0 0
        %423 = vmatmul.mubr.bf16.gmra.mrb[0].mxu0 %v384
        %v424 = vpop.f32.mrb[0].mxu0
        %v425 = vadd.f32 0.0, %v424
        %v426 = vpop.f32.mrb[0].mxu0
        %v427 = vpop.f32.mrb[0].mxu0
        %v428 = vpop.f32.mrb[0].mxu0
        %429 = vdwg.mxu0
        %v430 = vrcp.pop %v379
        %v431 = vmul.f32 %v425, %v430
        %v432 = vpack.c.bf16 %v431, %v431
        %vm433 = vcmask 27648
        %434 = vst.msk [vmem:[#allocation2] sm:$0xf] %vm433, %v432
        %s435 = scalar_lea.vmem [#allocation6], 16
        %v436 = vld [vmem:[%s435] sm:$0xf]
        %v437 = vld [vmem:[%s435 + $0x4] sm:$0xf]
        %v438 = vld [vmem:[%s435 + $0x8] sm:$0xf]
        %v439 = vld [vmem:[%s435 + $0xc] sm:$0xf]
        %v444 = vunpack.c.l.b16 %v436
        %v445 = vunpack.c.l.b16 %v437
        %v446 = vunpack.c.l.b16 %v438
        %v447 = vunpack.c.l.b16 %v439
        %v448 = vpack.c.b16 %v445, %v444
        %v449 = vpack.c.b16 %v447, %v446
        %452 = vmatprep.subr.bf16.mxu0 0
        %453 = vmatpush1.bf16.msra.mxu0 %v448
        %454 = vmatprep.subr.bf16.mxu0 0
        %455 = vmatpush1.bf16.msra.mxu0 %v449
        %456 = vmatprep.subr.bf16.mxu0 0
        %457 = vmatpush1.bf16.msra.mxu0 0
        %458 = vmatprep.subr.bf16.mxu0 0
        %459 = vmatpush1.bf16.msra.mxu0 0
        %460 = vmatprep.subr.bf16.mxu0 0
        %461 = vmatpush1.bf16.msra.mxu0 0
        %462 = vmatprep.subr.bf16.mxu0 0
        %463 = vmatpush1.bf16.msra.mxu0 0
        %464 = vmatprep.subr.bf16.mxu0 0
        %465 = vmatpush1.bf16.msra.mxu0 0
        %466 = vmatprep.subr.bf16.mxu0 0
        %467 = vmatpush1.bf16.msra.mxu0 0
        %468 = vmatprep.subr.bf16.mxu0 0
        %469 = vmatpush1.bf16.msra.mxu0 0
        %470 = vmatprep.subr.bf16.mxu0 0
        %471 = vmatpush1.bf16.msra.mxu0 0
        %472 = vmatprep.subr.bf16.mxu0 0
        %473 = vmatpush1.bf16.msra.mxu0 0
        %474 = vmatprep.subr.bf16.mxu0 0
        %475 = vmatpush1.bf16.msra.mxu0 0
        %476 = vmatprep.subr.bf16.mxu0 0
        %477 = vmatpush1.bf16.msra.mxu0 0
        %478 = vmatprep.subr.bf16.mxu0 0
        %479 = vmatpush1.bf16.msra.mxu0 0
        %480 = vmatprep.subr.bf16.mxu0 0
        %481 = vmatpush1.bf16.msra.mxu0 0
        %482 = vmatprep.subr.bf16.mxu0 0
        %483 = vmatpush1.bf16.msra.mxu0 0
        %484 = vmatprep.mubr.bf16.mxu0 0
        %485 = vmatmul.mubr.bf16.gmra.mrb[0].mxu0 %v275
        %v486 = vpop.f32.mrb[0].mxu0
        %v487 = vadd.f32 0.0, %v486
        %v488 = vpop.f32.mrb[0].mxu0
        %v489 = vpop.f32.mrb[0].mxu0
        %v490 = vpop.f32.mrb[0].mxu0
        %491 = vdwg.mxu0
        %v492 = vmul.f32 %v487, 0.5
        %v493 = vpack.c.bf16 %v492, %v492
        %v494 = vpack.c.bf16 %v487, %v487
        %496 = vrot.lane.b32.xlu0 %v494, 124
        %v497 = vpop.permute.xlu0 %496
        %v499 = vsel %vm323, %v493, 0
        %v502 = vsel %vm323, %v497, 0
        %504 = vmatprep.subr.bf16.mxu0 0
        %505 = vmatpush1.bf16.xpose.msra.mxu0 %v502
        %506 = vmatprep.subr.bf16.mxu0 0
        %507 = vmatpush1.bf16.xpose.msra.mxu0 0
        %508 = vmatprep.subr.bf16.mxu0 0
        %509 = vmatpush1.bf16.xpose.msra.mxu0 0
        %510 = vmatprep.subr.bf16.mxu0 0
        %511 = vmatpush1.bf16.xpose.msra.mxu0 0
        %512 = vmatprep.subr.bf16.mxu0 0
        %513 = vmatpush1.bf16.xpose.msra.mxu0 0
        %514 = vmatprep.subr.bf16.mxu0 0
        %515 = vmatpush1.bf16.xpose.msra.mxu0 0
        %516 = vmatprep.subr.bf16.mxu0 0
        %517 = vmatpush1.bf16.xpose.msra.mxu0 0
        %518 = vmatprep.subr.bf16.mxu0 0
        %519 = vmatpush1.bf16.xpose.msra.mxu0 0
        %520 = vmatprep.subr.bf16.mxu0 0
        %521 = vmatpush1.bf16.xpose.msra.mxu0 0
        %522 = vmatprep.subr.bf16.mxu0 0
        %523 = vmatpush1.bf16.xpose.msra.mxu0 0
        %524 = vmatprep.subr.bf16.mxu0 0
        %525 = vmatpush1.bf16.xpose.msra.mxu0 0
        %526 = vmatprep.subr.bf16.mxu0 0
        %527 = vmatpush1.bf16.xpose.msra.mxu0 0
        %528 = vmatprep.subr.bf16.mxu0 0
        %529 = vmatpush1.bf16.xpose.msra.mxu0 0
        %530 = vmatprep.subr.bf16.mxu0 0
        %531 = vmatpush1.bf16.xpose.msra.mxu0 0
        %532 = vmatprep.subr.bf16.mxu0 0
        %533 = vmatpush1.bf16.xpose.msra.mxu0 0
        %534 = vmatprep.subr.bf16.mxu0 0
        %535 = vmatpush1.bf16.xpose.msra.mxu0 0
        %536 = vmatprep.mubr.bf16.mxu0 0
        %537 = vmatmul.mubr.bf16.gmra.mrb[0].mxu0 %v499
        %v538 = vpop.f32.mrb[0].mxu0
        %v539 = vadd.f32 0.0, %v538
        %v540 = vpop.f32.mrb[0].mxu0
        %v541 = vpop.f32.mrb[0].mxu0
        %v542 = vpop.f32.mrb[0].mxu0
        %543 = vdwg.mxu0
        %v544 = vsel %vm370, %v539, -inf
        %545 = vmax.xlane.f32.xlu0 %v544
        %v546 = vpop.xlane.xlu0 %545
        %v547 = vsub.f32 %v539, %v546
        %v548 = vmul.f32 %v547, 1.442695
        %v549 = vpow.pop %v548
        %v550 = vsel %vm370, %v549, 0.0
        %551 = vadd.xlane.f32.xlu0 %v550
        %v552 = vpop.xlane.xlu0 %551
        %v553 = vpack.c.bf16 %v549, %v549
        %554 = vrot.lane.b32.xlu0 %v494, 120
        %v555 = vpop.permute.xlu0 %554
        %v557 = vsel %vm370, %v553, 0
        %v560 = vsel %vm386, %v555, 0
        %562 = vmatprep.subr.bf16.mxu0 0
        %563 = vmatpush1.bf16.msra.mxu0 %v560
        %564 = vmatprep.subr.bf16.mxu0 0
        %565 = vmatpush1.bf16.msra.mxu0 0
        %566 = vmatprep.subr.bf16.mxu0 0
        %567 = vmatpush1.bf16.msra.mxu0 0
        %568 = vmatprep.subr.bf16.mxu0 0
        %569 = vmatpush1.bf16.msra.mxu0 0
        %570 = vmatprep.subr.bf16.mxu0 0
        %571 = vmatpush1.bf16.msra.mxu0 0
        %572 = vmatprep.subr.bf16.mxu0 0
        %573 = vmatpush1.bf16.msra.mxu0 0
        %574 = vmatprep.subr.bf16.mxu0 0
        %575 = vmatpush1.bf16.msra.mxu0 0
        %576 = vmatprep.subr.bf16.mxu0 0
        %577 = vmatpush1.bf16.msra.mxu0 0
        %578 = vmatprep.subr.bf16.mxu0 0
        %579 = vmatpush1.bf16.msra.mxu0 0
        %580 = vmatprep.subr.bf16.mxu0 0
        %581 = vmatpush1.bf16.msra.mxu0 0
        %582 = vmatprep.subr.bf16.mxu0 0
        %583 = vmatpush1.bf16.msra.mxu0 0
        %584 = vmatprep.subr.bf16.mxu0 0
        %585 = vmatpush1.bf16.msra.mxu0 0
        %586 = vmatprep.subr.bf16.mxu0 0
        %587 = vmatpush1.bf16.msra.mxu0 0
        %588 = vmatprep.subr.bf16.mxu0 0
        %589 = vmatpush1.bf16.msra.mxu0 0
        %590 = vmatprep.subr.bf16.mxu0 0
        %591 = vmatpush1.bf16.msra.mxu0 0
        %592 = vmatprep.subr.bf16.mxu0 0
        %593 = vmatpush1.bf16.msra.mxu0 0
        %594 = vmatprep.mubr.bf16.mxu0 0
        %595 = vmatmul.mubr.bf16.gmra.mrb[0].mxu0 %v557
        %v596 = vpop.f32.mrb[0].mxu0
        %v597 = vadd.f32 0.0, %v596
        %v598 = vpop.f32.mrb[0].mxu0
        %v599 = vpop.f32.mrb[0].mxu0
        %v600 = vpop.f32.mrb[0].mxu0
        %601 = vdwg.mxu0
        %v602 = vrcp.pop %v552
        %v603 = vmul.f32 %v597, %v602
        %v604 = vpack.c.bf16 %v603, %v603
        %v606 = vunpack.c.l.b16 %v604
        %v607 = vpack.c.b16 %v606, %v606
        %608 = vrot.lane.b32.xlu0 %v607, 4
        %v609 = vpop.permute.xlu0 %608
        %vm611 = vcmask 60448
        %612 = vst.msk [vmem:[#allocation2] sm:$0xf] %vm611, %v609
        %s613 = scalar_lea.vmem [#allocation6], 32
        %v614 = vld [vmem:[%s613] sm:$0xf]
        %v615 = vld [vmem:[%s613 + $0x4] sm:$0xf]
        %v616 = vld [vmem:[%s613 + $0x8] sm:$0xf]
        %v617 = vld [vmem:[%s613 + $0xc] sm:$0xf]
        %v622 = vunpack.c.l.b16 %v614
        %v623 = vunpack.c.l.b16 %v615
        %v624 = vunpack.c.l.b16 %v616
        %v625 = vunpack.c.l.b16 %v617
        %v626 = vpack.c.b16 %v623, %v622
        %v627 = vpack.c.b16 %v625, %v624
        %630 = vmatprep.subr.bf16.mxu0 0
        %631 = vmatpush1.bf16.msra.mxu0 %v626
        %632 = vmatprep.subr.bf16.mxu0 0
        %633 = vmatpush1.bf16.msra.mxu0 %v627
        %634 = vmatprep.subr.bf16.mxu0 0
        %635 = vmatpush1.bf16.msra.mxu0 0
        %636 = vmatprep.subr.bf16.mxu0 0
        %637 = vmatpush1.bf16.msra.mxu0 0
        %638 = vmatprep.subr.bf16.mxu0 0
        %639 = vmatpush1.bf16.msra.mxu0 0
        %640 = vmatprep.subr.bf16.mxu0 0
        %641 = vmatpush1.bf16.msra.mxu0 0
        %642 = vmatprep.subr.bf16.mxu0 0
        %643 = vmatpush1.bf16.msra.mxu0 0
        %644 = vmatprep.subr.bf16.mxu0 0
        %645 = vmatpush1.bf16.msra.mxu0 0
        %646 = vmatprep.subr.bf16.mxu0 0
        %647 = vmatpush1.bf16.msra.mxu0 0
        %648 = vmatprep.subr.bf16.mxu0 0
        %649 = vmatpush1.bf16.msra.mxu0 0
        %650 = vmatprep.subr.bf16.mxu0 0
        %651 = vmatpush1.bf16.msra.mxu0 0
        %652 = vmatprep.subr.bf16.mxu0 0
        %653 = vmatpush1.bf16.msra.mxu0 0
        %654 = vmatprep.subr.bf16.mxu0 0
        %655 = vmatpush1.bf16.msra.mxu0 0
        %656 = vmatprep.subr.bf16.mxu0 0
        %657 = vmatpush1.bf16.msra.mxu0 0
        %658 = vmatprep.subr.bf16.mxu0 0
        %659 = vmatpush1.bf16.msra.mxu0 0
        %660 = vmatprep.subr.bf16.mxu0 0
        %661 = vmatpush1.bf16.msra.mxu0 0
        %662 = vmatprep.mubr.bf16.mxu0 0
        %663 = vmatmul.mubr.bf16.gmra.mrb[0].mxu0 %v275
        %v664 = vpop.f32.mrb[0].mxu0
        %v665 = vadd.f32 0.0, %v664
        %v666 = vpop.f32.mrb[0].mxu0
        %v667 = vpop.f32.mrb[0].mxu0
        %v668 = vpop.f32.mrb[0].mxu0
        %669 = vdwg.mxu0
        %v670 = vmul.f32 %v665, 0.5
        %v671 = vpack.c.bf16 %v670, %v670
        %v672 = vpack.c.bf16 %v665, %v665
        %674 = vrot.lane.b32.xlu0 %v672, 124
        %v675 = vpop.permute.xlu0 %674
        %v677 = vsel %vm323, %v671, 0
        %v680 = vsel %vm323, %v675, 0
        %682 = vmatprep.subr.bf16.mxu0 0
        %683 = vmatpush1.bf16.xpose.msra.mxu0 %v680
        %684 = vmatprep.subr.bf16.mxu0 0
        %685 = vmatpush1.bf16.xpose.msra.mxu0 0
        %686 = vmatprep.subr.bf16.mxu0 0
        %687 = vmatpush1.bf16.xpose.msra.mxu0 0
        %688 = vmatprep.subr.bf16.mxu0 0
        %689 = vmatpush1.bf16.xpose.msra.mxu0 0
        %690 = vmatprep.subr.bf16.mxu0 0
        %691 = vmatpush1.bf16.xpose.msra.mxu0 0
        %692 = vmatprep.subr.bf16.mxu0 0
        %693 = vmatpush1.bf16.xpose.msra.mxu0 0
        %694 = vmatprep.subr.bf16.mxu0 0
        %695 = vmatpush1.bf16.xpose.msra.mxu0 0
        %696 = vmatprep.subr.bf16.mxu0 0
        %697 = vmatpush1.bf16.xpose.msra.mxu0 0
        %698 = vmatprep.subr.bf16.mxu0 0
        %699 = vmatpush1.bf16.xpose.msra.mxu0 0
        %700 = vmatprep.subr.bf16.mxu0 0
        %701 = vmatpush1.bf16.xpose.msra.mxu0 0
        %702 = vmatprep.subr.bf16.mxu0 0
        %703 = vmatpush1.bf16.xpose.msra.mxu0 0
        %704 = vmatprep.subr.bf16.mxu0 0
        %705 = vmatpush1.bf16.xpose.msra.mxu0 0
        %706 = vmatprep.subr.bf16.mxu0 0
        %707 = vmatpush1.bf16.xpose.msra.mxu0 0
        %708 = vmatprep.subr.bf16.mxu0 0
        %709 = vmatpush1.bf16.xpose.msra.mxu0 0
        %710 = vmatprep.subr.bf16.mxu0 0
        %711 = vmatpush1.bf16.xpose.msra.mxu0 0
        %712 = vmatprep.subr.bf16.mxu0 0
        %713 = vmatpush1.bf16.xpose.msra.mxu0 0
        %714 = vmatprep.mubr.bf16.mxu0 0
        %715 = vmatmul.mubr.bf16.gmra.mrb[0].mxu0 %v677
        %v716 = vpop.f32.mrb[0].mxu0
        %v717 = vadd.f32 0.0, %v716
        %v718 = vpop.f32.mrb[0].mxu0
        %v719 = vpop.f32.mrb[0].mxu0
        %v720 = vpop.f32.mrb[0].mxu0
        %721 = vdwg.mxu0
        %v722 = vsel %vm370, %v717, -inf
        %723 = vmax.xlane.f32.xlu0 %v722
        %v724 = vpop.xlane.xlu0 %723
        %v725 = vsub.f32 %v717, %v724
        %v726 = vmul.f32 %v725, 1.442695
        %v727 = vpow.pop %v726
        %v728 = vsel %vm370, %v727, 0.0
        %729 = vadd.xlane.f32.xlu0 %v728
        %v730 = vpop.xlane.xlu0 %729
        %v731 = vpack.c.bf16 %v727, %v727
        %732 = vrot.lane.b32.xlu0 %v672, 120
        %v733 = vpop.permute.xlu0 %732
        %v735 = vsel %vm370, %v731, 0
        %v738 = vsel %vm386, %v733, 0
        %740 = vmatprep.subr.bf16.mxu0 0
        %741 = vmatpush1.bf16.msra.mxu0 %v738
        %742 = vmatprep.subr.bf16.mxu0 0
        %743 = vmatpush1.bf16.msra.mxu0 0
        %744 = vmatprep.subr.bf16.mxu0 0
        %745 = vmatpush1.bf16.msra.mxu0 0
        %746 = vmatprep.subr.bf16.mxu0 0
        %747 = vmatpush1.bf16.msra.mxu0 0
        %748 = vmatprep.subr.bf16.mxu0 0
        %749 = vmatpush1.bf16.msra.mxu0 0
        %750 = vmatprep.subr.bf16.mxu0 0
        %751 = vmatpush1.bf16.msra.mxu0 0
        %752 = vmatprep.subr.bf16.mxu0 0
        %753 = vmatpush1.bf16.msra.mxu0 0
        %754 = vmatprep.subr.bf16.mxu0 0
        %755 = vmatpush1.bf16.msra.mxu0 0
        %756 = vmatprep.subr.bf16.mxu0 0
        %757 = vmatpush1.bf16.msra.mxu0 0
        %758 = vmatprep.subr.bf16.mxu0 0
        %759 = vmatpush1.bf16.msra.mxu0 0
        %760 = vmatprep.subr.bf16.mxu0 0
        %761 = vmatpush1.bf16.msra.mxu0 0
        %762 = vmatprep.subr.bf16.mxu0 0
        %763 = vmatpush1.bf16.msra.mxu0 0
        %764 = vmatprep.subr.bf16.mxu0 0
        %765 = vmatpush1.bf16.msra.mxu0 0
        %766 = vmatprep.subr.bf16.mxu0 0
        %767 = vmatpush1.bf16.msra.mxu0 0
        %768 = vmatprep.subr.bf16.mxu0 0
        %769 = vmatpush1.bf16.msra.mxu0 0
        %770 = vmatprep.subr.bf16.mxu0 0
        %771 = vmatpush1.bf16.msra.mxu0 0
        %772 = vmatprep.mubr.bf16.mxu0 0
        %773 = vmatmul.mubr.bf16.gmra.mrb[0].mxu0 %v735
        %v774 = vpop.f32.mrb[0].mxu0
        %v775 = vadd.f32 0.0, %v774
        %v776 = vpop.f32.mrb[0].mxu0
        %v777 = vpop.f32.mrb[0].mxu0
        %v778 = vpop.f32.mrb[0].mxu0
        %779 = vdwg.mxu0
        %v780 = vrcp.pop %v730
        %v781 = vmul.f32 %v775, %v780
        %v782 = vpack.c.bf16 %v781, %v781
        %v784 = vunpack.c.l.b16 %v782
        %v785 = vpack.c.b16 %v784, %v784
        %786 = vrot.lane.b32.xlu0 %v785, 8
        %v787 = vpop.permute.xlu0 %786
        %vm789 = vcmask 93248
        %790 = vst.msk [vmem:[#allocation2] sm:$0xf] %vm789, %v787
        %s791 = scalar_lea.vmem [#allocation6], 48
        %v792 = vld [vmem:[%s791] sm:$0xf]
        %v793 = vld [vmem:[%s791 + $0x4] sm:$0xf]
        %v794 = vld [vmem:[%s791 + $0x8] sm:$0xf]
        %v795 = vld [vmem:[%s791 + $0xc] sm:$0xf]
        %v800 = vunpack.c.l.b16 %v792
        %v801 = vunpack.c.l.b16 %v793
        %v802 = vunpack.c.l.b16 %v794
        %v803 = vunpack.c.l.b16 %v795
        %v804 = vpack.c.b16 %v801, %v800
        %v805 = vpack.c.b16 %v803, %v802
        %808 = vmatprep.subr.bf16.mxu0 0
        %809 = vmatpush1.bf16.msra.mxu0 %v804
        %810 = vmatprep.subr.bf16.mxu0 0
        %811 = vmatpush1.bf16.msra.mxu0 %v805
        %812 = vmatprep.subr.bf16.mxu0 0
        %813 = vmatpush1.bf16.msra.mxu0 0
        %814 = vmatprep.subr.bf16.mxu0 0
        %815 = vmatpush1.bf16.msra.mxu0 0
        %816 = vmatprep.subr.bf16.mxu0 0
        %817 = vmatpush1.bf16.msra.mxu0 0
        %818 = vmatprep.subr.bf16.mxu0 0
        %819 = vmatpush1.bf16.msra.mxu0 0
        %820 = vmatprep.subr.bf16.mxu0 0
        %821 = vmatpush1.bf16.msra.mxu0 0
        %822 = vmatprep.subr.bf16.mxu0 0
        %823 = vmatpush1.bf16.msra.mxu0 0
        %824 = vmatprep.subr.bf16.mxu0 0
        %825 = vmatpush1.bf16.msra.mxu0 0
        %826 = vmatprep.subr.bf16.mxu0 0
        %827 = vmatpush1.bf16.msra.mxu0 0
        %828 = vmatprep.subr.bf16.mxu0 0
        %829 = vmatpush1.bf16.msra.mxu0 0
        %830 = vmatprep.subr.bf16.mxu0 0
        %831 = vmatpush1.bf16.msra.mxu0 0
        %832 = vmatprep.subr.bf16.mxu0 0
        %833 = vmatpush1.bf16.msra.mxu0 0
        %834 = vmatprep.subr.bf16.mxu0 0
        %835 = vmatpush1.bf16.msra.mxu0 0
        %836 = vmatprep.subr.bf16.mxu0 0
        %837 = vmatpush1.bf16.msra.mxu0 0
        %838 = vmatprep.subr.bf16.mxu0 0
        %839 = vmatpush1.bf16.msra.mxu0 0
        %840 = vmatprep.mubr.bf16.mxu0 0
        %841 = vmatmul.mubr.bf16.gmra.mrb[0].mxu0 %v275
        %v842 = vpop.f32.mrb[0].mxu0
        %v843 = vadd.f32 0.0, %v842
        %v844 = vpop.f32.mrb[0].mxu0
        %v845 = vpop.f32.mrb[0].mxu0
        %v846 = vpop.f32.mrb[0].mxu0
        %847 = vdwg.mxu0
        %v848 = vmul.f32 %v843, 0.5
        %v849 = vpack.c.bf16 %v848, %v848
        %v850 = vpack.c.bf16 %v843, %v843
        %852 = vrot.lane.b32.xlu0 %v850, 124
        %v853 = vpop.permute.xlu0 %852
        %v855 = vsel %vm323, %v849, 0
        %v858 = vsel %vm323, %v853, 0
        %860 = vmatprep.subr.bf16.mxu0 0
        %861 = vmatpush1.bf16.xpose.msra.mxu0 %v858
        %862 = vmatprep.subr.bf16.mxu0 0
        %863 = vmatpush1.bf16.xpose.msra.mxu0 0
        %864 = vmatprep.subr.bf16.mxu0 0
        %865 = vmatpush1.bf16.xpose.msra.mxu0 0
        %866 = vmatprep.subr.bf16.mxu0 0
        %867 = vmatpush1.bf16.xpose.msra.mxu0 0
        %868 = vmatprep.subr.bf16.mxu0 0
        %869 = vmatpush1.bf16.xpose.msra.mxu0 0
        %870 = vmatprep.subr.bf16.mxu0 0
        %871 = vmatpush1.bf16.xpose.msra.mxu0 0
        %872 = vmatprep.subr.bf16.mxu0 0
        %873 = vmatpush1.bf16.xpose.msra.mxu0 0
        %874 = vmatprep.subr.bf16.mxu0 0
        %875 = vmatpush1.bf16.xpose.msra.mxu0 0
        %876 = vmatprep.subr.bf16.mxu0 0
        %877 = vmatpush1.bf16.xpose.msra.mxu0 0
        %878 = vmatprep.subr.bf16.mxu0 0
        %879 = vmatpush1.bf16.xpose.msra.mxu0 0
        %880 = vmatprep.subr.bf16.mxu0 0
        %881 = vmatpush1.bf16.xpose.msra.mxu0 0
        %882 = vmatprep.subr.bf16.mxu0 0
        %883 = vmatpush1.bf16.xpose.msra.mxu0 0
        %884 = vmatprep.subr.bf16.mxu0 0
        %885 = vmatpush1.bf16.xpose.msra.mxu0 0
        %886 = vmatprep.subr.bf16.mxu0 0
        %887 = vmatpush1.bf16.xpose.msra.mxu0 0
        %888 = vmatprep.subr.bf16.mxu0 0
        %889 = vmatpush1.bf16.xpose.msra.mxu0 0
        %890 = vmatprep.subr.bf16.mxu0 0
        %891 = vmatpush1.bf16.xpose.msra.mxu0 0
        %892 = vmatprep.mubr.bf16.mxu0 0
        %893 = vmatmul.mubr.bf16.gmra.mrb[0].mxu0 %v855
        %v894 = vpop.f32.mrb[0].mxu0
        %v895 = vadd.f32 0.0, %v894
        %v896 = vpop.f32.mrb[0].mxu0
        %v897 = vpop.f32.mrb[0].mxu0
        %v898 = vpop.f32.mrb[0].mxu0
        %899 = vdwg.mxu0
        %v900 = vsel %vm370, %v895, -inf
        %901 = vmax.xlane.f32.xlu0 %v900
        %v902 = vpop.xlane.xlu0 %901
        %v903 = vsub.f32 %v895, %v902
        %v904 = vmul.f32 %v903, 1.442695
        %v905 = vpow.pop %v904
        %v906 = vsel %vm370, %v905, 0.0
        %907 = vadd.xlane.f32.xlu0 %v906
        %v908 = vpop.xlane.xlu0 %907
        %v909 = vpack.c.bf16 %v905, %v905
        %910 = vrot.lane.b32.xlu0 %v850, 120
        %v911 = vpop.permute.xlu0 %910
        %v913 = vsel %vm370, %v909, 0
        %v916 = vsel %vm386, %v911, 0
        %918 = vmatprep.subr.bf16.mxu0 0
        %919 = vmatpush1.bf16.msra.mxu0 %v916
        %920 = vmatprep.subr.bf16.mxu0 0
        %921 = vmatpush1.bf16.msra.mxu0 0
        %922 = vmatprep.subr.bf16.mxu0 0
        %923 = vmatpush1.bf16.msra.mxu0 0
        %924 = vmatprep.subr.bf16.mxu0 0
        %925 = vmatpush1.bf16.msra.mxu0 0
        %926 = vmatprep.subr.bf16.mxu0 0
        %927 = vmatpush1.bf16.msra.mxu0 0
        %928 = vmatprep.subr.bf16.mxu0 0
        %929 = vmatpush1.bf16.msra.mxu0 0
        %930 = vmatprep.subr.bf16.mxu0 0
        %931 = vmatpush1.bf16.msra.mxu0 0
        %932 = vmatprep.subr.bf16.mxu0 0
        %933 = vmatpush1.bf16.msra.mxu0 0
        %934 = vmatprep.subr.bf16.mxu0 0
        %935 = vmatpush1.bf16.msra.mxu0 0
        %936 = vmatprep.subr.bf16.mxu0 0
        %937 = vmatpush1.bf16.msra.mxu0 0
        %938 = vmatprep.subr.bf16.mxu0 0
        %939 = vmatpush1.bf16.msra.mxu0 0
        %940 = vmatprep.subr.bf16.mxu0 0
        %941 = vmatpush1.bf16.msra.mxu0 0
        %942 = vmatprep.subr.bf16.mxu0 0
        %943 = vmatpush1.bf16.msra.mxu0 0
        %944 = vmatprep.subr.bf16.mxu0 0
        %945 = vmatpush1.bf16.msra.mxu0 0
        %946 = vmatprep.subr.bf16.mxu0 0
        %947 = vmatpush1.bf16.msra.mxu0 0
        %948 = vmatprep.subr.bf16.mxu0 0
        %949 = vmatpush1.bf16.msra.mxu0 0
        %950 = vmatprep.mubr.bf16.mxu0 0
        %951 = vmatmul.mubr.bf16.gmra.mrb[0].mxu0 %v913
        %v952 = vpop.f32.mrb[0].mxu0
        %v953 = vadd.f32 0.0, %v952
        %v954 = vpop.f32.mrb[0].mxu0
        %v955 = vpop.f32.mrb[0].mxu0
        %v956 = vpop.f32.mrb[0].mxu0
        %957 = vdwg.mxu0
        %v958 = vrcp.pop %v908
        %v959 = vmul.f32 %v953, %v958
        %v960 = vpack.c.bf16 %v959, %v959
        %v962 = vunpack.c.l.b16 %v960
        %v963 = vpack.c.b16 %v962, %v962
        %964 = vrot.lane.b32.xlu0 %v963, 12
        %v965 = vpop.permute.xlu0 %964
        %vm967 = vcmask 126048
        %968 = vst.msk [vmem:[#allocation2] sm:$0xf] %vm967, %v965
        %s969 = scalar_lea.vmem [#allocation6], 64
        %v970 = vld [vmem:[%s969] sm:$0xf]
        %v971 = vld [vmem:[%s969 + $0x4] sm:$0xf]
        %v972 = vld [vmem:[%s969 + $0x8] sm:$0xf]
        %v973 = vld [vmem:[%s969 + $0xc] sm:$0xf]
        %v978 = vunpack.c.l.b16 %v970
        %v979 = vunpack.c.l.b16 %v971
        %v980 = vunpack.c.l.b16 %v972
        %v981 = vunpack.c.l.b16 %v973
        %v982 = vpack.c.b16 %v979, %v978
        %v983 = vpack.c.b16 %v981, %v980
        %986 = vmatprep.subr.bf16.mxu0 0
        %987 = vmatpush1.bf16.msra.mxu0 %v982
        %988 = vmatprep.subr.bf16.mxu0 0
        %989 = vmatpush1.bf16.msra.mxu0 %v983
        %990 = vmatprep.subr.bf16.mxu0 0
        %991 = vmatpush1.bf16.msra.mxu0 0
        %992 = vmatprep.subr.bf16.mxu0 0
        %993 = vmatpush1.bf16.msra.mxu0 0
        %994 = vmatprep.subr.bf16.mxu0 0
        %995 = vmatpush1.bf16.msra.mxu0 0
        %996 = vmatprep.subr.bf16.mxu0 0
        %997 = vmatpush1.bf16.msra.mxu0 0
        %998 = vmatprep.subr.bf16.mxu0 0
        %999 = vmatpush1.bf16.msra.mxu0 0
        %1000 = vmatprep.subr.bf16.mxu0 0
        %1001 = vmatpush1.bf16.msra.mxu0 0
        %1002 = vmatprep.subr.bf16.mxu0 0
        %1003 = vmatpush1.bf16.msra.mxu0 0
        %1004 = vmatprep.subr.bf16.mxu0 0
        %1005 = vmatpush1.bf16.msra.mxu0 0
        %1006 = vmatprep.subr.bf16.mxu0 0
        %1007 = vmatpush1.bf16.msra.mxu0 0
        %1008 = vmatprep.subr.bf16.mxu0 0
        %1009 = vmatpush1.bf16.msra.mxu0 0
        %1010 = vmatprep.subr.bf16.mxu0 0
        %1011 = vmatpush1.bf16.msra.mxu0 0
        %1012 = vmatprep.subr.bf16.mxu0 0
        %1013 = vmatpush1.bf16.msra.mxu0 0
        %1014 = vmatprep.subr.bf16.mxu0 0
        %1015 = vmatpush1.bf16.msra.mxu0 0
        %1016 = vmatprep.subr.bf16.mxu0 0
        %1017 = vmatpush1.bf16.msra.mxu0 0
        %1018 = vmatprep.mubr.bf16.mxu0 0
        %1019 = vmatmul.mubr.bf16.gmra.mrb[0].mxu0 %v275
        %v1020 = vpop.f32.mrb[0].mxu0
        %v1021 = vadd.f32 0.0, %v1020
        %v1022 = vpop.f32.mrb[0].mxu0
        %v1023 = vpop.f32.mrb[0].mxu0
        %v1024 = vpop.f32.mrb[0].mxu0
        %1025 = vdwg.mxu0
        %v1026 = vmul.f32 %v1021, 0.5
        %v1027 = vpack.c.bf16 %v1026, %v1026
        %v1028 = vpack.c.bf16 %v1021, %v1021
        %1030 = vrot.lane.b32.xlu0 %v1028, 124
        %v1031 = vpop.permute.xlu0 %1030
        %v1033 = vsel %vm323, %v1027, 0
        %v1036 = vsel %vm323, %v1031, 0
        %1038 = vmatprep.subr.bf16.mxu0 0
        %1039 = vmatpush1.bf16.xpose.msra.mxu0 %v1036
        %1040 = vmatprep.subr.bf16.mxu0 0
        %1041 = vmatpush1.bf16.xpose.msra.mxu0 0
        %1042 = vmatprep.subr.bf16.mxu0 0
        %1043 = vmatpush1.bf16.xpose.msra.mxu0 0
        %1044 = vmatprep.subr.bf16.mxu0 0
        %1045 = vmatpush1.bf16.xpose.msra.mxu0 0
        %1046 = vmatprep.subr.bf16.mxu0 0
        %1047 = vmatpush1.bf16.xpose.msra.mxu0 0
        %1048 = vmatprep.subr.bf16.mxu0 0
        %1049 = vmatpush1.bf16.xpose.msra.mxu0 0
        %1050 = vmatprep.subr.bf16.mxu0 0
        %1051 = vmatpush1.bf16.xpose.msra.mxu0 0
        %1052 = vmatprep.subr.bf16.mxu0 0
        %1053 = vmatpush1.bf16.xpose.msra.mxu0 0
        %1054 = vmatprep.subr.bf16.mxu0 0
        %1055 = vmatpush1.bf16.xpose.msra.mxu0 0
        %1056 = vmatprep.subr.bf16.mxu0 0
        %1057 = vmatpush1.bf16.xpose.msra.mxu0 0
        %1058 = vmatprep.subr.bf16.mxu0 0
        %1059 = vmatpush1.bf16.xpose.msra.mxu0 0
        %1060 = vmatprep.subr.bf16.mxu0 0
        %1061 = vmatpush1.bf16.xpose.msra.mxu0 0
        %1062 = vmatprep.subr.bf16.mxu0 0
        %1063 = vmatpush1.bf16.xpose.msra.mxu0 0
        %1064 = vmatprep.subr.bf16.mxu0 0
        %1065 = vmatpush1.bf16.xpose.msra.mxu0 0
        %1066 = vmatprep.subr.bf16.mxu0 0
        %1067 = vmatpush1.bf16.xpose.msra.mxu0 0
        %1068 = vmatprep.subr.bf16.mxu0 0
        %1069 = vmatpush1.bf16.xpose.msra.mxu0 0
        %1070 = vmatprep.mubr.bf16.mxu0 0
        %1071 = vmatmul.mubr.bf16.gmra.mrb[0].mxu0 %v1033
        %v1072 = vpop.f32.mrb[0].mxu0
        %v1073 = vadd.f32 0.0, %v1072
        %v1074 = vpop.f32.mrb[0].mxu0
        %v1075 = vpop.f32.mrb[0].mxu0
        %v1076 = vpop.f32.mrb[0].mxu0
        %1077 = vdwg.mxu0
        %v1078 = vsel %vm370, %v1073, -inf
        %1079 = vmax.xlane.f32.xlu0 %v1078
        %v1080 = vpop.xlane.xlu0 %1079
        %v1081 = vsub.f32 %v1073, %v1080
        %v1082 = vmul.f32 %v1081, 1.442695
        %v1083 = vpow.pop %v1082
        %v1084 = vsel %vm370, %v1083, 0.0
        %1085 = vadd.xlane.f32.xlu0 %v1084
        %v1086 = vpop.xlane.xlu0 %1085
        %v1087 = vpack.c.bf16 %v1083, %v1083
        %1088 = vrot.lane.b32.xlu0 %v1028, 120
        %v1089 = vpop.permute.xlu0 %1088
        %v1091 = vsel %vm370, %v1087, 0
        %v1094 = vsel %vm386, %v1089, 0
        %1096 = vmatprep.subr.bf16.mxu0 0
        %1097 = vmatpush1.bf16.msra.mxu0 %v1094
        %1098 = vmatprep.subr.bf16.mxu0 0
        %1099 = vmatpush1.bf16.msra.mxu0 0
        %1100 = vmatprep.subr.bf16.mxu0 0
        %1101 = vmatpush1.bf16.msra.mxu0 0
        %1102 = vmatprep.subr.bf16.mxu0 0
        %1103 = vmatpush1.bf16.msra.mxu0 0
        %1104 = vmatprep.subr.bf16.mxu0 0
        %1105 = vmatpush1.bf16.msra.mxu0 0
        %1106 = vmatprep.subr.bf16.mxu0 0
        %1107 = vmatpush1.bf16.msra.mxu0 0
        %1108 = vmatprep.subr.bf16.mxu0 0
        %1109 = vmatpush1.bf16.msra.mxu0 0
        %1110 = vmatprep.subr.bf16.mxu0 0
        %1111 = vmatpush1.bf16.msra.mxu0 0
        %1112 = vmatprep.subr.bf16.mxu0 0
        %1113 = vmatpush1.bf16.msra.mxu0 0
        %1114 = vmatprep.subr.bf16.mxu0 0
        %1115 = vmatpush1.bf16.msra.mxu0 0
        %1116 = vmatprep.subr.bf16.mxu0 0
        %1117 = vmatpush1.bf16.msra.mxu0 0
        %1118 = vmatprep.subr.bf16.mxu0 0
        %1119 = vmatpush1.bf16.msra.mxu0 0
        %1120 = vmatprep.subr.bf16.mxu0 0
        %1121 = vmatpush1.bf16.msra.mxu0 0
        %1122 = vmatprep.subr.bf16.mxu0 0
        %1123 = vmatpush1.bf16.msra.mxu0 0
        %1124 = vmatprep.subr.bf16.mxu0 0
        %1125 = vmatpush1.bf16.msra.mxu0 0
        %1126 = vmatprep.subr.bf16.mxu0 0
        %1127 = vmatpush1.bf16.msra.mxu0 0
        %1128 = vmatprep.mubr.bf16.mxu0 0
        %1129 = vmatmul.mubr.bf16.gmra.mrb[0].mxu0 %v1091
        %v1130 = vpop.f32.mrb[0].mxu0
        %v1131 = vadd.f32 0.0, %v1130
        %v1132 = vpop.f32.mrb[0].mxu0
        %v1133 = vpop.f32.mrb[0].mxu0
        %v1134 = vpop.f32.mrb[0].mxu0
        %1135 = vdwg.mxu0
        %v1136 = vrcp.pop %v1086
        %v1137 = vmul.f32 %v1131, %v1136
        %v1138 = vpack.c.bf16 %v1137, %v1137
        %v1140 = vunpack.c.l.b16 %v1138
        %v1141 = vpack.c.b16 %v1140, %v1140
        %1142 = vrot.lane.b32.xlu0 %v1141, 16
        %v1143 = vpop.permute.xlu0 %1142
        %vm1145 = vcmask 158848
        %1146 = vst.msk [vmem:[#allocation2] sm:$0xf] %vm1145, %v1143
        %s1147 = scalar_lea.vmem [#allocation6], 80
        %v1148 = vld [vmem:[%s1147] sm:$0xf]
        %v1149 = vld [vmem:[%s1147 + $0x4] sm:$0xf]
        %v1150 = vld [vmem:[%s1147 + $0x8] sm:$0xf]
        %v1151 = vld [vmem:[%s1147 + $0xc] sm:$0xf]
        %v1156 = vunpack.c.l.b16 %v1148
        %v1157 = vunpack.c.l.b16 %v1149
        %v1158 = vunpack.c.l.b16 %v1150
        %v1159 = vunpack.c.l.b16 %v1151
        %v1160 = vpack.c.b16 %v1157, %v1156
        %v1161 = vpack.c.b16 %v1159, %v1158
        %1164 = vmatprep.subr.bf16.mxu0 0
        %1165 = vmatpush1.bf16.msra.mxu0 %v1160
        %1166 = vmatprep.subr.bf16.mxu0 0
        %1167 = vmatpush1.bf16.msra.mxu0 %v1161
        %1168 = vmatprep.subr.bf16.mxu0 0
        %1169 = vmatpush1.bf16.msra.mxu0 0
        %1170 = vmatprep.subr.bf16.mxu0 0
        %1171 = vmatpush1.bf16.msra.mxu0 0
        %1172 = vmatprep.subr.bf16.mxu0 0
        %1173 = vmatpush1.bf16.msra.mxu0 0
        %1174 = vmatprep.subr.bf16.mxu0 0
        %1175 = vmatpush1.bf16.msra.mxu0 0
        %1176 = vmatprep.subr.bf16.mxu0 0
        %1177 = vmatpush1.bf16.msra.mxu0 0
        %1178 = vmatprep.subr.bf16.mxu0 0
        %1179 = vmatpush1.bf16.msra.mxu0 0
        %1180 = vmatprep.subr.bf16.mxu0 0
        %1181 = vmatpush1.bf16.msra.mxu0 0
        %1182 = vmatprep.subr.bf16.mxu0 0
        %1183 = vmatpush1.bf16.msra.mxu0 0
        %1184 = vmatprep.subr.bf16.mxu0 0
        %1185 = vmatpush1.bf16.msra.mxu0 0
        %1186 = vmatprep.subr.bf16.mxu0 0
        %1187 = vmatpush1.bf16.msra.mxu0 0
        %1188 = vmatprep.subr.bf16.mxu0 0
        %1189 = vmatpush1.bf16.msra.mxu0 0
        %1190 = vmatprep.subr.bf16.mxu0 0
        %1191 = vmatpush1.bf16.msra.mxu0 0
        %1192 = vmatprep.subr.bf16.mxu0 0
        %1193 = vmatpush1.bf16.msra.mxu0 0
        %1194 = vmatprep.subr.bf16.mxu0 0
        %1195 = vmatpush1.bf16.msra.mxu0 0
        %1196 = vmatprep.mubr.bf16.mxu0 0
        %1197 = vmatmul.mubr.bf16.gmra.mrb[0].mxu0 %v275
        %v1198 = vpop.f32.mrb[0].mxu0
        %v1199 = vadd.f32 0.0, %v1198
        %v1200 = vpop.f32.mrb[0].mxu0
        %v1201 = vpop.f32.mrb[0].mxu0
        %v1202 = vpop.f32.mrb[0].mxu0
        %1203 = vdwg.mxu0
        %v1204 = vmul.f32 %v1199, 0.5
        %v1205 = vpack.c.bf16 %v1204, %v1204
        %v1206 = vpack.c.bf16 %v1199, %v1199
        %1208 = vrot.lane.b32.xlu0 %v1206, 124
        %v1209 = vpop.permute.xlu0 %1208
        %v1211 = vsel %vm323, %v1205, 0
        %v1214 = vsel %vm323, %v1209, 0
        %1216 = vmatprep.subr.bf16.mxu0 0
        %1217 = vmatpush1.bf16.xpose.msra.mxu0 %v1214
        %1218 = vmatprep.subr.bf16.mxu0 0
        %1219 = vmatpush1.bf16.xpose.msra.mxu0 0
        %1220 = vmatprep.subr.bf16.mxu0 0
        %1221 = vmatpush1.bf16.xpose.msra.mxu0 0
        %1222 = vmatprep.subr.bf16.mxu0 0
        %1223 = vmatpush1.bf16.xpose.msra.mxu0 0
        %1224 = vmatprep.subr.bf16.mxu0 0
        %1225 = vmatpush1.bf16.xpose.msra.mxu0 0
        %1226 = vmatprep.subr.bf16.mxu0 0
        %1227 = vmatpush1.bf16.xpose.msra.mxu0 0
        %1228 = vmatprep.subr.bf16.mxu0 0
        %1229 = vmatpush1.bf16.xpose.msra.mxu0 0
        %1230 = vmatprep.subr.bf16.mxu0 0
        %1231 = vmatpush1.bf16.xpose.msra.mxu0 0
        %1232 = vmatprep.subr.bf16.mxu0 0
        %1233 = vmatpush1.bf16.xpose.msra.mxu0 0
        %1234 = vmatprep.subr.bf16.mxu0 0
        %1235 = vmatpush1.bf16.xpose.msra.mxu0 0
        %1236 = vmatprep.subr.bf16.mxu0 0
        %1237 = vmatpush1.bf16.xpose.msra.mxu0 0
        %1238 = vmatprep.subr.bf16.mxu0 0
        %1239 = vmatpush1.bf16.xpose.msra.mxu0 0
        %1240 = vmatprep.subr.bf16.mxu0 0
        %1241 = vmatpush1.bf16.xpose.msra.mxu0 0
        %1242 = vmatprep.subr.bf16.mxu0 0
        %1243 = vmatpush1.bf16.xpose.msra.mxu0 0
        %1244 = vmatprep.subr.bf16.mxu0 0
        %1245 = vmatpush1.bf16.xpose.msra.mxu0 0
        %1246 = vmatprep.subr.bf16.mxu0 0
        %1247 = vmatpush1.bf16.xpose.msra.mxu0 0
        %1248 = vmatprep.mubr.bf16.mxu0 0
        %1249 = vmatmul.mubr.bf16.gmra.mrb[0].mxu0 %v1211
        %v1250 = vpop.f32.mrb[0].mxu0
        %v1251 = vadd.f32 0.0, %v1250
        %v1252 = vpop.f32.mrb[0].mxu0
        %v1253 = vpop.f32.mrb[0].mxu0
        %v1254 = vpop.f32.mrb[0].mxu0
        %1255 = vdwg.mxu0
        %v1256 = vsel %vm370, %v1251, -inf
        %1257 = vmax.xlane.f32.xlu0 %v1256
        %v1258 = vpop.xlane.xlu0 %1257
        %v1259 = vsub.f32 %v1251, %v1258
        %v1260 = vmul.f32 %v1259, 1.442695
        %v1261 = vpow.pop %v1260
        %v1262 = vsel %vm370, %v1261, 0.0
        %1263 = vadd.xlane.f32.xlu0 %v1262
        %v1264 = vpop.xlane.xlu0 %1263
        %v1265 = vpack.c.bf16 %v1261, %v1261
        %1266 = vrot.lane.b32.xlu0 %v1206, 120
        %v1267 = vpop.permute.xlu0 %1266
        %v1269 = vsel %vm370, %v1265, 0
        %v1272 = vsel %vm386, %v1267, 0
        %1274 = vmatprep.subr.bf16.mxu0 0
        %1275 = vmatpush1.bf16.msra.mxu0 %v1272
        %1276 = vmatprep.subr.bf16.mxu0 0
        %1277 = vmatpush1.bf16.msra.mxu0 0
        %1278 = vmatprep.subr.bf16.mxu0 0
        %1279 = vmatpush1.bf16.msra.mxu0 0
        %1280 = vmatprep.subr.bf16.mxu0 0
        %1281 = vmatpush1.bf16.msra.mxu0 0
        %1282 = vmatprep.subr.bf16.mxu0 0
        %1283 = vmatpush1.bf16.msra.mxu0 0
        %1284 = vmatprep.subr.bf16.mxu0 0
        %1285 = vmatpush1.bf16.msra.mxu0 0
        %1286 = vmatprep.subr.bf16.mxu0 0
        %1287 = vmatpush1.bf16.msra.mxu0 0
        %1288 = vmatprep.subr.bf16.mxu0 0
        %1289 = vmatpush1.bf16.msra.mxu0 0
        %1290 = vmatprep.subr.bf16.mxu0 0
        %1291 = vmatpush1.bf16.msra.mxu0 0
        %1292 = vmatprep.subr.bf16.mxu0 0
        %1293 = vmatpush1.bf16.msra.mxu0 0
        %1294 = vmatprep.subr.bf16.mxu0 0
        %1295 = vmatpush1.bf16.msra.mxu0 0
        %1296 = vmatprep.subr.bf16.mxu0 0
        %1297 = vmatpush1.bf16.msra.mxu0 0
        %1298 = vmatprep.subr.bf16.mxu0 0
        %1299 = vmatpush1.bf16.msra.mxu0 0
        %1300 = vmatprep.subr.bf16.mxu0 0
        %1301 = vmatpush1.bf16.msra.mxu0 0
        %1302 = vmatprep.subr.bf16.mxu0 0
        %1303 = vmatpush1.bf16.msra.mxu0 0
        %1304 = vmatprep.subr.bf16.mxu0 0
        %1305 = vmatpush1.bf16.msra.mxu0 0
        %1306 = vmatprep.mubr.bf16.mxu0 0
        %1307 = vmatmul.mubr.bf16.gmra.mrb[0].mxu0 %v1269
        %v1308 = vpop.f32.mrb[0].mxu0
        %v1309 = vadd.f32 0.0, %v1308
        %v1310 = vpop.f32.mrb[0].mxu0
        %v1311 = vpop.f32.mrb[0].mxu0
        %v1312 = vpop.f32.mrb[0].mxu0
        %1313 = vdwg.mxu0
        %v1314 = vrcp.pop %v1264
        %v1315 = vmul.f32 %v1309, %v1314
        %v1316 = vpack.c.bf16 %v1315, %v1315
        %v1318 = vunpack.c.l.b16 %v1316
        %v1319 = vpack.c.b16 %v1318, %v1318
        %1320 = vrot.lane.b32.xlu0 %v1319, 20
        %v1321 = vpop.permute.xlu0 %1320
        %vm1323 = vcmask 191648
        %1324 = vst.msk [vmem:[#allocation2] sm:$0xf] %vm1323, %v1321
        %s1325 = scalar_lea.vmem [#allocation6], 96
        %v1326 = vld [vmem:[%s1325] sm:$0xf]
        %v1327 = vld [vmem:[%s1325 + $0x4] sm:$0xf]
        %v1328 = vld [vmem:[%s1325 + $0x8] sm:$0xf]
        %v1329 = vld [vmem:[%s1325 + $0xc] sm:$0xf]
        %v1334 = vunpack.c.l.b16 %v1326
        %v1335 = vunpack.c.l.b16 %v1327
        %v1336 = vunpack.c.l.b16 %v1328
        %v1337 = vunpack.c.l.b16 %v1329
        %v1338 = vpack.c.b16 %v1335, %v1334
        %v1339 = vpack.c.b16 %v1337, %v1336
        %1342 = vmatprep.subr.bf16.mxu0 0
        %1343 = vmatpush1.bf16.msra.mxu0 %v1338
        %1344 = vmatprep.subr.bf16.mxu0 0
        %1345 = vmatpush1.bf16.msra.mxu0 %v1339
        %1346 = vmatprep.subr.bf16.mxu0 0
        %1347 = vmatpush1.bf16.msra.mxu0 0
        %1348 = vmatprep.subr.bf16.mxu0 0
        %1349 = vmatpush1.bf16.msra.mxu0 0
        %1350 = vmatprep.subr.bf16.mxu0 0
        %1351 = vmatpush1.bf16.msra.mxu0 0
        %1352 = vmatprep.subr.bf16.mxu0 0
        %1353 = vmatpush1.bf16.msra.mxu0 0
        %1354 = vmatprep.subr.bf16.mxu0 0
        %1355 = vmatpush1.bf16.msra.mxu0 0
        %1356 = vmatprep.subr.bf16.mxu0 0
        %1357 = vmatpush1.bf16.msra.mxu0 0
        %1358 = vmatprep.subr.bf16.mxu0 0
        %1359 = vmatpush1.bf16.msra.mxu0 0
        %1360 = vmatprep.subr.bf16.mxu0 0
        %1361 = vmatpush1.bf16.msra.mxu0 0
        %1362 = vmatprep.subr.bf16.mxu0 0
        %1363 = vmatpush1.bf16.msra.mxu0 0
        %1364 = vmatprep.subr.bf16.mxu0 0
        %1365 = vmatpush1.bf16.msra.mxu0 0
        %1366 = vmatprep.subr.bf16.mxu0 0
        %1367 = vmatpush1.bf16.msra.mxu0 0
        %1368 = vmatprep.subr.bf16.mxu0 0
        %1369 = vmatpush1.bf16.msra.mxu0 0
        %1370 = vmatprep.subr.bf16.mxu0 0
        %1371 = vmatpush1.bf16.msra.mxu0 0
        %1372 = vmatprep.subr.bf16.mxu0 0
        %1373 = vmatpush1.bf16.msra.mxu0 0
        %1374 = vmatprep.mubr.bf16.mxu0 0
        %1375 = vmatmul.mubr.bf16.gmra.mrb[0].mxu0 %v275
        %v1376 = vpop.f32.mrb[0].mxu0
        %v1377 = vadd.f32 0.0, %v1376
        %v1378 = vpop.f32.mrb[0].mxu0
        %v1379 = vpop.f32.mrb[0].mxu0
        %v1380 = vpop.f32.mrb[0].mxu0
        %1381 = vdwg.mxu0
        %v1382 = vmul.f32 %v1377, 0.5
        %v1383 = vpack.c.bf16 %v1382, %v1382
        %v1384 = vpack.c.bf16 %v1377, %v1377
        %1386 = vrot.lane.b32.xlu0 %v1384, 124
        %v1387 = vpop.permute.xlu0 %1386
        %v1389 = vsel %vm323, %v1383, 0
        %v1392 = vsel %vm323, %v1387, 0
        %1394 = vmatprep.subr.bf16.mxu0 0
        %1395 = vmatpush1.bf16.xpose.msra.mxu0 %v1392
        %1396 = vmatprep.subr.bf16.mxu0 0
        %1397 = vmatpush1.bf16.xpose.msra.mxu0 0
        %1398 = vmatprep.subr.bf16.mxu0 0
        %1399 = vmatpush1.bf16.xpose.msra.mxu0 0
        %1400 = vmatprep.subr.bf16.mxu0 0
        %1401 = vmatpush1.bf16.xpose.msra.mxu0 0
        %1402 = vmatprep.subr.bf16.mxu0 0
        %1403 = vmatpush1.bf16.xpose.msra.mxu0 0
        %1404 = vmatprep.subr.bf16.mxu0 0
        %1405 = vmatpush1.bf16.xpose.msra.mxu0 0
        %1406 = vmatprep.subr.bf16.mxu0 0
        %1407 = vmatpush1.bf16.xpose.msra.mxu0 0
        %1408 = vmatprep.subr.bf16.mxu0 0
        %1409 = vmatpush1.bf16.xpose.msra.mxu0 0
        %1410 = vmatprep.subr.bf16.mxu0 0
        %1411 = vmatpush1.bf16.xpose.msra.mxu0 0
        %1412 = vmatprep.subr.bf16.mxu0 0
        %1413 = vmatpush1.bf16.xpose.msra.mxu0 0
        %1414 = vmatprep.subr.bf16.mxu0 0
        %1415 = vmatpush1.bf16.xpose.msra.mxu0 0
        %1416 = vmatprep.subr.bf16.mxu0 0
        %1417 = vmatpush1.bf16.xpose.msra.mxu0 0
        %1418 = vmatprep.subr.bf16.mxu0 0
        %1419 = vmatpush1.bf16.xpose.msra.mxu0 0
        %1420 = vmatprep.subr.bf16.mxu0 0
        %1421 = vmatpush1.bf16.xpose.msra.mxu0 0
        %1422 = vmatprep.subr.bf16.mxu0 0
        %1423 = vmatpush1.bf16.xpose.msra.mxu0 0
        %1424 = vmatprep.subr.bf16.mxu0 0
        %1425 = vmatpush1.bf16.xpose.msra.mxu0 0
        %1426 = vmatprep.mubr.bf16.mxu0 0
        %1427 = vmatmul.mubr.bf16.gmra.mrb[0].mxu0 %v1389
        %v1428 = vpop.f32.mrb[0].mxu0
        %v1429 = vadd.f32 0.0, %v1428
        %v1430 = vpop.f32.mrb[0].mxu0
        %v1431 = vpop.f32.mrb[0].mxu0
        %v1432 = vpop.f32.mrb[0].mxu0
        %1433 = vdwg.mxu0
        %v1434 = vsel %vm370, %v1429, -inf
        %1435 = vmax.xlane.f32.xlu0 %v1434
        %v1436 = vpop.xlane.xlu0 %1435
        %v1437 = vsub.f32 %v1429, %v1436
        %v1438 = vmul.f32 %v1437, 1.442695
        %v1439 = vpow.pop %v1438
        %v1440 = vsel %vm370, %v1439, 0.0
        %1441 = vadd.xlane.f32.xlu0 %v1440
        %v1442 = vpop.xlane.xlu0 %1441
        %v1443 = vpack.c.bf16 %v1439, %v1439
        %1444 = vrot.lane.b32.xlu0 %v1384, 120
        %v1445 = vpop.permute.xlu0 %1444
        %v1447 = vsel %vm370, %v1443, 0
        %v1450 = vsel %vm386, %v1445, 0
        %1452 = vmatprep.subr.bf16.mxu0 0
        %1453 = vmatpush1.bf16.msra.mxu0 %v1450
        %1454 = vmatprep.subr.bf16.mxu0 0
        %1455 = vmatpush1.bf16.msra.mxu0 0
        %1456 = vmatprep.subr.bf16.mxu0 0
        %1457 = vmatpush1.bf16.msra.mxu0 0
        %1458 = vmatprep.subr.bf16.mxu0 0
        %1459 = vmatpush1.bf16.msra.mxu0 0
        %1460 = vmatprep.subr.bf16.mxu0 0
        %1461 = vmatpush1.bf16.msra.mxu0 0
        %1462 = vmatprep.subr.bf16.mxu0 0
        %1463 = vmatpush1.bf16.msra.mxu0 0
        %1464 = vmatprep.subr.bf16.mxu0 0
        %1465 = vmatpush1.bf16.msra.mxu0 0
        %1466 = vmatprep.subr.bf16.mxu0 0
        %1467 = vmatpush1.bf16.msra.mxu0 0
        %1468 = vmatprep.subr.bf16.mxu0 0
        %1469 = vmatpush1.bf16.msra.mxu0 0
        %1470 = vmatprep.subr.bf16.mxu0 0
        %1471 = vmatpush1.bf16.msra.mxu0 0
        %1472 = vmatprep.subr.bf16.mxu0 0
        %1473 = vmatpush1.bf16.msra.mxu0 0
        %1474 = vmatprep.subr.bf16.mxu0 0
        %1475 = vmatpush1.bf16.msra.mxu0 0
        %1476 = vmatprep.subr.bf16.mxu0 0
        %1477 = vmatpush1.bf16.msra.mxu0 0
        %1478 = vmatprep.subr.bf16.mxu0 0
        %1479 = vmatpush1.bf16.msra.mxu0 0
        %1480 = vmatprep.subr.bf16.mxu0 0
        %1481 = vmatpush1.bf16.msra.mxu0 0
        %1482 = vmatprep.subr.bf16.mxu0 0
        %1483 = vmatpush1.bf16.msra.mxu0 0
        %1484 = vmatprep.mubr.bf16.mxu0 0
        %1485 = vmatmul.mubr.bf16.gmra.mrb[0].mxu0 %v1447
        %v1486 = vpop.f32.mrb[0].mxu0
        %v1487 = vadd.f32 0.0, %v1486
        %v1488 = vpop.f32.mrb[0].mxu0
        %v1489 = vpop.f32.mrb[0].mxu0
        %v1490 = vpop.f32.mrb[0].mxu0
        %1491 = vdwg.mxu0
        %v1492 = vrcp.pop %v1442
        %v1493 = vmul.f32 %v1487, %v1492
        %v1494 = vpack.c.bf16 %v1493, %v1493
        %v1496 = vunpack.c.l.b16 %v1494
        %v1497 = vpack.c.b16 %v1496, %v1496
        %1498 = vrot.lane.b32.xlu0 %v1497, 24
        %v1499 = vpop.permute.xlu0 %1498
        %vm1501 = vcmask 224448
        %1502 = vst.msk [vmem:[#allocation2] sm:$0xf] %vm1501, %v1499
        %s1503 = scalar_lea.vmem [#allocation6], 112
        %v1504 = vld [vmem:[%s1503] sm:$0xf]
        %v1505 = vld [vmem:[%s1503 + $0x4] sm:$0xf]
        %v1506 = vld [vmem:[%s1503 + $0x8] sm:$0xf]
        %v1507 = vld [vmem:[%s1503 + $0xc] sm:$0xf]
        %v1512 = vunpack.c.l.b16 %v1504
        %v1513 = vunpack.c.l.b16 %v1505
        %v1514 = vunpack.c.l.b16 %v1506
        %v1515 = vunpack.c.l.b16 %v1507
        %v1516 = vpack.c.b16 %v1513, %v1512
        %v1517 = vpack.c.b16 %v1515, %v1514
        %1520 = vmatprep.subr.bf16.mxu0 0
        %1521 = vmatpush1.bf16.msra.mxu0 %v1516
        %1522 = vmatprep.subr.bf16.mxu0 0
        %1523 = vmatpush1.bf16.msra.mxu0 %v1517
        %1524 = vmatprep.subr.bf16.mxu0 0
        %1525 = vmatpush1.bf16.msra.mxu0 0
        %1526 = vmatprep.subr.bf16.mxu0 0
        %1527 = vmatpush1.bf16.msra.mxu0 0
        %1528 = vmatprep.subr.bf16.mxu0 0
        %1529 = vmatpush1.bf16.msra.mxu0 0
        %1530 = vmatprep.subr.bf16.mxu0 0
        %1531 = vmatpush1.bf16.msra.mxu0 0
        %1532 = vmatprep.subr.bf16.mxu0 0
        %1533 = vmatpush1.bf16.msra.mxu0 0
        %1534 = vmatprep.subr.bf16.mxu0 0
        %1535 = vmatpush1.bf16.msra.mxu0 0
        %1536 = vmatprep.subr.bf16.mxu0 0
        %1537 = vmatpush1.bf16.msra.mxu0 0
        %1538 = vmatprep.subr.bf16.mxu0 0
        %1539 = vmatpush1.bf16.msra.mxu0 0
        %1540 = vmatprep.subr.bf16.mxu0 0
        %1541 = vmatpush1.bf16.msra.mxu0 0
        %1542 = vmatprep.subr.bf16.mxu0 0
        %1543 = vmatpush1.bf16.msra.mxu0 0
        %1544 = vmatprep.subr.bf16.mxu0 0
        %1545 = vmatpush1.bf16.msra.mxu0 0
        %1546 = vmatprep.subr.bf16.mxu0 0
        %1547 = vmatpush1.bf16.msra.mxu0 0
        %1548 = vmatprep.subr.bf16.mxu0 0
        %1549 = vmatpush1.bf16.msra.mxu0 0
        %1550 = vmatprep.subr.bf16.mxu0 0
        %1551 = vmatpush1.bf16.msra.mxu0 0
        %1552 = vmatprep.mubr.bf16.mxu0 0
        %1553 = vmatmul.mubr.bf16.gmra.mrb[0].mxu0 %v275
        %v1554 = vpop.f32.mrb[0].mxu0
        %v1555 = vadd.f32 0.0, %v1554
        %v1556 = vpop.f32.mrb[0].mxu0
        %v1557 = vpop.f32.mrb[0].mxu0
        %v1558 = vpop.f32.mrb[0].mxu0
        %1559 = vdwg.mxu0
        %v1560 = vmul.f32 %v1555, 0.5
        %v1561 = vpack.c.bf16 %v1560, %v1560
        %v1562 = vpack.c.bf16 %v1555, %v1555
        %1564 = vrot.lane.b32.xlu0 %v1562, 124
        %v1565 = vpop.permute.xlu0 %1564
        %v1567 = vsel %vm323, %v1561, 0
        %v1570 = vsel %vm323, %v1565, 0
        %1572 = vmatprep.subr.bf16.mxu0 0
        %1573 = vmatpush1.bf16.xpose.msra.mxu0 %v1570
        %1574 = vmatprep.subr.bf16.mxu0 0
        %1575 = vmatpush1.bf16.xpose.msra.mxu0 0
        %1576 = vmatprep.subr.bf16.mxu0 0
        %1577 = vmatpush1.bf16.xpose.msra.mxu0 0
        %1578 = vmatprep.subr.bf16.mxu0 0
        %1579 = vmatpush1.bf16.xpose.msra.mxu0 0
        %1580 = vmatprep.subr.bf16.mxu0 0
        %1581 = vmatpush1.bf16.xpose.msra.mxu0 0
        %1582 = vmatprep.subr.bf16.mxu0 0
        %1583 = vmatpush1.bf16.xpose.msra.mxu0 0
        %1584 = vmatprep.subr.bf16.mxu0 0
        %1585 = vmatpush1.bf16.xpose.msra.mxu0 0
        %1586 = vmatprep.subr.bf16.mxu0 0
        %1587 = vmatpush1.bf16.xpose.msra.mxu0 0
        %1588 = vmatprep.subr.bf16.mxu0 0
        %1589 = vmatpush1.bf16.xpose.msra.mxu0 0
        %1590 = vmatprep.subr.bf16.mxu0 0
        %1591 = vmatpush1.bf16.xpose.msra.mxu0 0
        %1592 = vmatprep.subr.bf16.mxu0 0
        %1593 = vmatpush1.bf16.xpose.msra.mxu0 0
        %1594 = vmatprep.subr.bf16.mxu0 0
        %1595 = vmatpush1.bf16.xpose.msra.mxu0 0
        %1596 = vmatprep.subr.bf16.mxu0 0
        %1597 = vmatpush1.bf16.xpose.msra.mxu0 0
        %1598 = vmatprep.subr.bf16.mxu0 0
        %1599 = vmatpush1.bf16.xpose.msra.mxu0 0
        %1600 = vmatprep.subr.bf16.mxu0 0
        %1601 = vmatpush1.bf16.xpose.msra.mxu0 0
        %1602 = vmatprep.subr.bf16.mxu0 0
        %1603 = vmatpush1.bf16.xpose.msra.mxu0 0
        %1604 = vmatprep.mubr.bf16.mxu0 0
        %1605 = vmatmul.mubr.bf16.gmra.mrb[0].mxu0 %v1567
        %v1606 = vpop.f32.mrb[0].mxu0
        %v1607 = vadd.f32 0.0, %v1606
        %v1608 = vpop.f32.mrb[0].mxu0
        %v1609 = vpop.f32.mrb[0].mxu0
        %v1610 = vpop.f32.mrb[0].mxu0
        %1611 = vdwg.mxu0
        %v1612 = vsel %vm370, %v1607, -inf
        %1613 = vmax.xlane.f32.xlu0 %v1612
        %v1614 = vpop.xlane.xlu0 %1613
        %v1615 = vsub.f32 %v1607, %v1614
        %v1616 = vmul.f32 %v1615, 1.442695
        %v1617 = vpow.pop %v1616
        %v1618 = vsel %vm370, %v1617, 0.0
        %1619 = vadd.xlane.f32.xlu0 %v1618
        %v1620 = vpop.xlane.xlu0 %1619
        %v1621 = vpack.c.bf16 %v1617, %v1617
        %1622 = vrot.lane.b32.xlu0 %v1562, 120
        %v1623 = vpop.permute.xlu0 %1622
        %v1625 = vsel %vm370, %v1621, 0
        %v1628 = vsel %vm386, %v1623, 0
        %1630 = vmatprep.subr.bf16.mxu0 0
        %1631 = vmatpush1.bf16.msra.mxu0 %v1628
        %1632 = vmatprep.subr.bf16.mxu0 0
        %1633 = vmatpush1.bf16.msra.mxu0 0
        %1634 = vmatprep.subr.bf16.mxu0 0
        %1635 = vmatpush1.bf16.msra.mxu0 0
        %1636 = vmatprep.subr.bf16.mxu0 0
        %1637 = vmatpush1.bf16.msra.mxu0 0
        %1638 = vmatprep.subr.bf16.mxu0 0
        %1639 = vmatpush1.bf16.msra.mxu0 0
        %1640 = vmatprep.subr.bf16.mxu0 0
        %1641 = vmatpush1.bf16.msra.mxu0 0
        %1642 = vmatprep.subr.bf16.mxu0 0
        %1643 = vmatpush1.bf16.msra.mxu0 0
        %1644 = vmatprep.subr.bf16.mxu0 0
        %1645 = vmatpush1.bf16.msra.mxu0 0
        %1646 = vmatprep.subr.bf16.mxu0 0
        %1647 = vmatpush1.bf16.msra.mxu0 0
        %1648 = vmatprep.subr.bf16.mxu0 0
        %1649 = vmatpush1.bf16.msra.mxu0 0
        %1650 = vmatprep.subr.bf16.mxu0 0
        %1651 = vmatpush1.bf16.msra.mxu0 0
        %1652 = vmatprep.subr.bf16.mxu0 0
        %1653 = vmatpush1.bf16.msra.mxu0 0
        %1654 = vmatprep.subr.bf16.mxu0 0
        %1655 = vmatpush1.bf16.msra.mxu0 0
        %1656 = vmatprep.subr.bf16.mxu0 0
        %1657 = vmatpush1.bf16.msra.mxu0 0
        %1658 = vmatprep.subr.bf16.mxu0 0
        %1659 = vmatpush1.bf16.msra.mxu0 0
        %1660 = vmatprep.subr.bf16.mxu0 0
        %1661 = vmatpush1.bf16.msra.mxu0 0
        %1662 = vmatprep.mubr.bf16.mxu0 0
        %1663 = vmatmul.mubr.bf16.gmra.mrb[0].mxu0 %v1625
        %v1664 = vpop.f32.mrb[0].mxu0
        %v1665 = vadd.f32 0.0, %v1664
        %v1666 = vpop.f32.mrb[0].mxu0
        %v1667 = vpop.f32.mrb[0].mxu0
        %v1668 = vpop.f32.mrb[0].mxu0
        %1669 = vdwg.mxu0
        %v1670 = vrcp.pop %v1620
        %v1671 = vmul.f32 %v1665, %v1670
        %v1672 = vpack.c.bf16 %v1671, %v1671
        %v1674 = vunpack.c.l.b16 %v1672
        %v1675 = vpack.c.b16 %v1674, %v1674
        %1676 = vrot.lane.b32.xlu0 %v1675, 28
        %v1677 = vpop.permute.xlu0 %1676
        %vm1679 = vcmask 257248
        %1680 = vst.msk [vmem:[#allocation2] sm:$0xf] %vm1679, %v1677
        %v1681 = vld [vmem:[#allocation2] sm:$0xf]
        %v1682 = vld [vmem:[#allocation8] sm:$0xf]
        %v1683 = vld [vmem:[#allocation8 + $0x4] sm:$0xf]
        %v1684 = vld [vmem:[#allocation8 + $0x8] sm:$0xf]
        %v1685 = vld [vmem:[#allocation8 + $0xc] sm:$0xf]
        %v1686 = vld [vmem:[#allocation9] sm:$0x1]
        %v1688 = vlaneseq
        %v1689 = vshrl.u32 %v1688, 7
        %v1690 = vsub.s32 0, %v1689
        %v1691 = vrot.slane %v1686, %v1690
        %v1697 = vunpack.c.l.b16 %v1682
        %v1698 = vunpack.c.l.b16 %v1683
        %v1699 = vunpack.c.l.b16 %v1684
        %v1700 = vunpack.c.l.b16 %v1685
        %v1701 = vpack.c.b16 %v1698, %v1697
        %v1702 = vpack.c.b16 %v1700, %v1699
        %v1706 = vsel %vm273, %v1681, 0
        %1708 = vmatprep.subr.bf16.mxu0 0
        %1709 = vmatpush1.bf16.msra.mxu0 %v1701
        %1710 = vmatprep.subr.bf16.mxu0 0
        %1711 = vmatpush1.bf16.msra.mxu0 %v1702
        %1712 = vmatprep.subr.bf16.mxu0 0
        %1713 = vmatpush1.bf16.msra.mxu0 0
        %1714 = vmatprep.subr.bf16.mxu0 0
        %1715 = vmatpush1.bf16.msra.mxu0 0
        %1716 = vmatprep.subr.bf16.mxu0 0
        %1717 = vmatpush1.bf16.msra.mxu0 0
        %1718 = vmatprep.subr.bf16.mxu0 0
        %1719 = vmatpush1.bf16.msra.mxu0 0
        %1720 = vmatprep.subr.bf16.mxu0 0
        %1721 = vmatpush1.bf16.msra.mxu0 0
        %1722 = vmatprep.subr.bf16.mxu0 0
        %1723 = vmatpush1.bf16.msra.mxu0 0
        %1724 = vmatprep.subr.bf16.mxu0 0
        %1725 = vmatpush1.bf16.msra.mxu0 0
        %1726 = vmatprep.subr.bf16.mxu0 0
        %1727 = vmatpush1.bf16.msra.mxu0 0
        %1728 = vmatprep.subr.bf16.mxu0 0
        %1729 = vmatpush1.bf16.msra.mxu0 0
        %1730 = vmatprep.subr.bf16.mxu0 0
        %1731 = vmatpush1.bf16.msra.mxu0 0
        %1732 = vmatprep.subr.bf16.mxu0 0
        %1733 = vmatpush1.bf16.msra.mxu0 0
        %1734 = vmatprep.subr.bf16.mxu0 0
        %1735 = vmatpush1.bf16.msra.mxu0 0
        %1736 = vmatprep.subr.bf16.mxu0 0
        %1737 = vmatpush1.bf16.msra.mxu0 0
        %1738 = vmatprep.subr.bf16.mxu0 0
        %1739 = vmatpush1.bf16.msra.mxu0 0
        %1740 = vmatprep.mubr.bf16.mxu0 0
        %1741 = vmatmul.mubr.bf16.gmra.mrb[0].mxu0 %v1706
        %v1742 = vpop.f32.mrb[0].mxu0
        %v1743 = vadd.f32 %v1691, %v1742
        %v1744 = vpop.f32.mrb[0].mxu0
        %v1745 = vpop.f32.mrb[0].mxu0
        %v1746 = vpop.f32.mrb[0].mxu0
        %1747 = vdwg.mxu0
        %1748 = vst.msk [vmem:[%s254] sm:$0xff] %vm273, %v1743
        %s1749 = sand.u32 %s120, 1
        %s1750 = scalar_lea.sflag [#allocation5], %s1749
        %s1751 = sand.u32 %s120, 1
        %s1752 = smul.addr %s1751, 8
        %s1753 = scalar_lea.vmem [#allocation11], %s1752
        // Predicated region
        $region53: #{tpu_custom_call.1} parent=35 // pred_check
          %p1754 = pneg %p130
        $region54: #{tpu_custom_call.1} parent=35 // pred_check_branch
          %1756 = sbr.rel (%p1754) target = $region56
        $region55: #{tpu_custom_call.1} parent=35 // pred_region
          %s1758 = ssub.s32 128, 128
          %1759 = vsyncadd %s1750, %s1758
          %s1760 = smul.addr %s23, 128
          %s1761 = scalar_lea.hbm %s4, %s1760
          %s1763 = sshll.u32 %s1753, 4
          %s1764 = int_to_ptr.vmem [resolvable:$true] %s1763
          %1766 = dma.vmem_to_hbm [thread:$0]  %s1764, 128, %s1761, %s1750
        $region56: #{tpu_custom_call.1} parent=35 // pred_fallthru
          _
      $region36: #{tpu_custom_call.1} parent=5 // pred_fallthru
        _
      %p1767 = scmp.le.s32.totalorder 2, %s18
      // Predicated region
      $region57: #{tpu_custom_call.1} parent=5 // pred_check
        %p1768 = pneg %p1767
      $region58: #{tpu_custom_call.1} parent=5 // pred_check_branch
        %1770 = sbr.rel (%p1768) target = $region60
      $region59: #{tpu_custom_call.1} parent=5 // pred_region
        %s1771 = ssub.s32 %s18, 2
        // Predicated region
        $region61: #{tpu_custom_call.1} parent=59 // pred_check
          %p1772 = pneg %p136
        $region62: #{tpu_custom_call.1} parent=59 // pred_check_branch
          %1774 = sbr.rel (%p1772) target = $region64
        $region63: #{tpu_custom_call.1} parent=59 // pred_region
          %s1775 = sand.u32 %s121, 1
          %s1776 = scalar_lea.sflag [#allocation5], %s1775
          %s1777 = sand.u32 %s121, 1
          %s1778 = smul.addr %s1777, 8
          %s1779 = scalar_lea.vmem [#allocation11], %s1778
          %1780 = dma.done %s1776, 128
        $region64: #{tpu_custom_call.1} parent=59 // pred_fallthru
          _
      $region60: #{tpu_custom_call.1} parent=5 // pred_fallthru
        _
    $region6: #{tpu_custom_call.1} parent=1 // loop_footer
      %s22 = sadd.s32 1, %s18
    $region7: #{tpu_custom_call.1} parent=1 // loop_footer_branch
      %17 = sbr.rel target = $region3
    $region8: #{tpu_custom_call.1} parent=1 // loop_exit
      _
    %1781 = vsyncpa [#allocation4], 1
    %s1782 = scalar_lea.sflag [#allocation4], 1
    %1783 = vsyncpa %s1782, 1
    %1784 = vsyncpa [#allocation7], 1
    %1785 = vsyncpa [#allocation10], 1
    %1786 = vsyncpa [#allocation5], 1
    %s1787 = scalar_lea.sflag [#allocation5], 1
    %1788 = vsyncpa %s1787, 1

// kernel: tpu_custom_call.1
$region0: #{tpu_custom_call.1}
  #allocation0 [shape = 'u32[]', space=smem, size = 0x4, offset = 0x4, fixed_abs, tag = 'smem constant byte address 0x4 - core index']
  #allocation1 [shape = 'u32[144,128]{1,0:T(1,128)}', space=vmem, size = 0x12000, scoped, tag = 'internal scratch']
  #allocation2 [shape = 'bf16[8,32]{1,0:T(8,128)(2,1)}', space=vmem, size = 0x800, scoped, tag = 'scratch operand']
  %s0 = inlined_call_operand.hbm [shape: bf16[2,8,32], index: 0, kind: input, shape index: {}]
  %s1 = inlined_call_operand.hbm [shape: bf16[8,32,12], index: 1, kind: input, shape index: {}]
  %s2 = inlined_call_operand.hbm [shape: bf16[32,32], index: 2, kind: input, shape index: {}]
  %s3 = inlined_call_operand.hbm [shape: f32[1,32], index: 3, kind: input, shape index: {}]
  %s4 = inlined_call_operand.hbm [shape: f32[2,8,32], index: 4, kind: output, shape index: {}]
  %s5 = sld [smem:[#allocation0]]
  $region65: #{tpu_custom_call.1} parent=0
    _
  %s7 = ssub.s32 1, %s5
  %s8 = scalar_select 0, %s7, %s5
  $region1: #{tpu_custom_call.1} parent=0
    #allocation3 [shape = 'u8[4096]{0}', space=vmem, size = 0x1000, scoped, tag = 'input window, operand 0']
    #allocation4 [shape = 's32[2]{0}', space=sflag, size = 0x8, scoped, tag = 'scoped memory for tpu_custom_call.1']
    #allocation5 [shape = 's32[2]{0}', space=sflag, size = 0x8, scoped, tag = 'scoped memory for tpu_custom_call.1']
    #allocation6 [shape = 'u8[65536]{0}', space=vmem, size = 0x10000, scoped, tag = 'input window, operand 1, single buffered']
    #allocation7 [shape = 's32[1]{0}', space=sflag, size = 0x4, scoped, tag = 'scoped memory for tpu_custom_call.1']
    #allocation8 [shape = 'u8[8192]{0}', space=vmem, size = 0x2000, scoped, tag = 'input window, operand 2, single buffered']
    #allocation9 [shape = 'u8[512]{0}', space=vmem, size = 0x400, scoped, tag = 'input window, operand 3, single buffered']
    #allocation10 [shape = 's32[1]{0}', space=sflag, size = 0x4, scoped, tag = 'scoped memory for tpu_custom_call.1']
    #allocation11 [shape = 'u8[8192]{0}', space=vmem, size = 0x2000, scoped, tag = 'output window, operand 0']
    %9 = vsyncpa [#allocation4], 0
    %s10 = scalar_lea.sflag [#allocation4], 1
    %11 = vsyncpa %s10, 0
    %12 = vsyncpa [#allocation7], 0
    %13 = vsyncpa [#allocation10], 0
    %14 = vsyncpa [#allocation5], 0
    %s15 = scalar_lea.sflag [#allocation5], 1
    %16 = vsyncpa %s15, 0
    loop: start=0, step=1, limit=4
    $region2: #{tpu_custom_call.1} parent=1 // loop_pre_header
      _
    $region3: #{tpu_custom_call.1} parent=1 // loop_header
      %s18 = sphi 0, %s22
      %p19 = scmp.ge.s32.totalorder %s18, 4
      %s28 = sphi 0, %s30
      %s31 = sphi 0, %s28
      %s32 = sphi 0, %s31
      %s48 = sphi 0, %s32
      %s52 = sphi 0, %s52
      %s54 = sphi 0, %s52
      %s55 = sphi 0, %s54
      %s69 = sphi 0, %s55
      %s73 = sphi 0, %s73
      %s75 = sphi 0, %s73
      %s76 = sphi 0, %s75
      %s90 = sphi 0, %s76
      %s94 = sphi 0, %s94
      %s96 = sphi 0, %s94
      %s97 = sphi 0, %s96
      %s111 = sphi 0, %s97
      %s117 = sphi 0, %s119
      %s120 = sphi 0, %s117
      %s121 = sphi 0, %s120
      %s137 = sphi 0, %s121
    $region4: #{tpu_custom_call.1} parent=1 // loop_header_branch
      %21 = sbr.rel (%p19) target = $region8
    $region5: #{tpu_custom_call.1} parent=1 // loop_body
      %s23 = ssub.s32 %s18, 1
      %s24 = ssub.s32 %s18, 2
      %s25 = sadd.s32 %s18, 1
      %s26 = ssub.s32 %s18, %s25
      %p27 = scmp.eq.s32.totalorder %s26, 0
      %s29 = sadd.s32 %s28, 1
      %s30 = scalar_select %p27, %s28, %s29
      %p33 = pneg %p27
      %p34 = scmp.eq.s32.totalorder %s18, 1
      %p35 = por %p33, %p34
      %p36 = scmp.ne.s32.totalorder %s28, %s31
      %p37 = scmp.eq.s32.totalorder %s18, 0
      %p38 = por %p36, %p37
      %p39 = scmp.ne.s32.totalorder %s28, %s31
      %p40 = scmp.eq.s32.totalorder %s23, 1
      %p41 = por %p39, %p40
      %p42 = scmp.ne.s32.totalorder %s31, %s32
      %p43 = scmp.eq.s32.totalorder %s23, 0
      %p44 = por %p42, %p43
      %p45 = scmp.ne.s32.totalorder %s31, %s32
      %p46 = scmp.eq.s32.totalorder %s24, 1
      %p47 = por %p45, %p46
      %p49 = scmp.ne.s32.totalorder %s32, %s48
      %p50 = scmp.eq.s32.totalorder %s24, 0
      %p51 = por %p49, %p50
      %s53 = sadd.s32 %s52, 1
      %p56 = scmp.eq.s32.totalorder %s18, 1
      %p57 = scmp.ne.s32.totalorder %s52, %s54
      %p58 = scmp.eq.s32.totalorder %s18, 0
      %p59 = por %p57, %p58
      %p60 = scmp.ne.s32.totalorder %s52, %s54
      %p61 = scmp.eq.s32.totalorder %s23, 1
      %p62 = por %p60, %p61
      %p63 = scmp.ne.s32.totalorder %s54, %s55
      %p64 = scmp.eq.s32.totalorder %s23, 0
      %p65 = por %p63, %p64
      %p66 = scmp.ne.s32.totalorder %s54, %s55
      %p67 = scmp.eq.s32.totalorder %s24, 1
      %p68 = por %p66, %p67
      %p70 = scmp.ne.s32.totalorder %s55, %s69
      %p71 = scmp.eq.s32.totalorder %s24, 0
      %p72 = por %p70, %p71
      %s74 = sadd.s32 %s73, 1
      %p77 = scmp.eq.s32.totalorder %s18, 1
      %p78 = scmp.ne.s32.totalorder %s73, %s75
      %p79 = scmp.eq.s32.totalorder %s18, 0
      %p80 = por %p78, %p79
      %p81 = scmp.ne.s32.totalorder %s73, %s75
      %p82 = scmp.eq.s32.totalorder %s23, 1
      %p83 = por %p81, %p82
      %p84 = scmp.ne.s32.totalorder %s75, %s76
      %p85 = scmp.eq.s32.totalorder %s23, 0
      %p86 = por %p84, %p85
      %p87 = scmp.ne.s32.totalorder %s75, %s76
      %p88 = scmp.eq.s32.totalorder %s24, 1
      %p89 = por %p87, %p88
      %p91 = scmp.ne.s32.totalorder %s76, %s90
      %p92 = scmp.eq.s32.totalorder %s24, 0
      %p93 = por %p91, %p92
      %s95 = sadd.s32 %s94, 1
      %p98 = scmp.eq.s32.totalorder %s18, 1
      %p99 = scmp.ne.s32.totalorder %s94, %s96
      %p100 = scmp.eq.s32.totalorder %s18, 0
      %p101 = por %p99, %p100
      %p102 = scmp.ne.s32.totalorder %s94, %s96
      %p103 = scmp.eq.s32.totalorder %s23, 1
      %p104 = por %p102, %p103
      %p105 = scmp.ne.s32.totalorder %s96, %s97
      %p106 = scmp.eq.s32.totalorder %s23, 0
      %p107 = por %p105, %p106
      %p108 = scmp.ne.s32.totalorder %s96, %s97
      %p109 = scmp.eq.s32.totalorder %s24, 1
      %p110 = por %p108, %p109
      %p112 = scmp.ne.s32.totalorder %s97, %s111
      %p113 = scmp.eq.s32.totalorder %s24, 0
      %p114 = por %p112, %p113
      %s115 = ssub.s32 %s18, %s25
      %p116 = scmp.eq.s32.totalorder %s115, 0
      %s118 = sadd.s32 %s117, 1
      %s119 = scalar_select %p116, %s117, %s118
      %p122 = pneg %p116
      %p123 = scmp.eq.s32.totalorder %s18, 1
      %p124 = por %p122, %p123
      %p125 = scmp.ne.s32.totalorder %s117, %s120
      %p126 = scmp.eq.s32.totalorder %s18, 0
      %p127 = por %p125, %p126
      %p128 = scmp.ne.s32.totalorder %s117, %s120
      %p129 = scmp.eq.s32.totalorder %s23, 1
      %p130 = por %p128, %p129
      %p131 = scmp.ne.s32.totalorder %s120, %s121
      %p132 = scmp.eq.s32.totalorder %s23, 0
      %p133 = por %p131, %p132
      %p134 = scmp.ne.s32.totalorder %s120, %s121
      %p135 = scmp.eq.s32.totalorder %s24, 1
      %p136 = por %p134, %p135
      %p138 = scmp.ne.s32.totalorder %s121, %s137
      %p139 = scmp.eq.s32.totalorder %s24, 0
      %p140 = por %p138, %p139
      %p141 = scmp.le.s32.totalorder 1, %s18
      %p142 = scmp.lt.s32.totalorder %s18, 3
      %p143 = pnand %p141, %p142
      %p144 = pneg %p143
      // Predicated region
      $region9: #{tpu_custom_call.1} parent=5 // pred_check
        _
      $region10: #{tpu_custom_call.1} parent=5 // pred_check_branch
        %146 = sbr.rel (%p143) target = $region12
      $region11: #{tpu_custom_call.1} parent=5 // pred_region
        %s147 = ssub.s32 %s18, 1
        // Predicated region
        $region13: #{tpu_custom_call.1} parent=11 // pred_check
          %p148 = pneg %p65
        $region14: #{tpu_custom_call.1} parent=11 // pred_check_branch
          %150 = sbr.rel (%p148) target = $region16
        $region15: #{tpu_custom_call.1} parent=11 // pred_region
          %s152 = ssub.s32 2048, 2048
          %153 = vsyncadd [#allocation7], %s152
          %s154 = sshll.u32 [#allocation6], 4
          %s155 = int_to_ptr.vmem [resolvable:$true] %s154
          %160 = dma.hbm_to_vmem [thread:$0]  %s1, 2048, %s155, [#allocation7], 64, 64, 4
        $region16: #{tpu_custom_call.1} parent=11 // pred_fallthru
          _
        // Predicated region
        $region17: #{tpu_custom_call.1} parent=11 // pred_check
          %p161 = pneg %p86
        $region18: #{tpu_custom_call.1} parent=11 // pred_check_branch
          %163 = sbr.rel (%p161) target = $region20
        $region19: #{tpu_custom_call.1} parent=11 // pred_region
          %s165 = ssub.s32 256, 256
          %166 = vsyncadd [#allocation7], %s165
          %s167 = sshll.u32 [#allocation8], 4
          %s168 = int_to_ptr.vmem [resolvable:$true] %s167
          %173 = dma.hbm_to_vmem [thread:$0]  %s2, 256, %s168, [#allocation7], 64, 64, 4
        $region20: #{tpu_custom_call.1} parent=11 // pred_fallthru
          _
        // Predicated region
        $region21: #{tpu_custom_call.1} parent=11 // pred_check
          %p174 = pneg %p107
        $region22: #{tpu_custom_call.1} parent=11 // pred_check_branch
          %176 = sbr.rel (%p174) target = $region24
        $region23: #{tpu_custom_call.1} parent=11 // pred_region
          %s178 = ssub.s32 16, 16
          %179 = vsyncadd [#allocation10], %s178
          %s181 = sshll.u32 [#allocation9], 4
          %s182 = int_to_ptr.vmem [resolvable:$true] %s181
          %184 = dma.hbm_to_vmem [thread:$0]  %s3, 16, %s182, [#allocation10]
        $region24: #{tpu_custom_call.1} parent=11 // pred_fallthru
          _
      $region12: #{tpu_custom_call.1} parent=5 // pred_fallthru
        _
      %p185 = scmp.lt.s32.totalorder %s18, 2
      // Predicated region
      $region25: #{tpu_custom_call.1} parent=5 // pred_check
        %p186 = pneg %p185
      $region26: #{tpu_custom_call.1} parent=5 // pred_check_branch
        %188 = sbr.rel (%p186) target = $region28
      $region27: #{tpu_custom_call.1} parent=5 // pred_region
        // Predicated region
        $region29: #{tpu_custom_call.1} parent=27 // pred_check
          %p189 = pneg %p38
        $region30: #{tpu_custom_call.1} parent=27 // pred_check_branch
          %191 = sbr.rel (%p189) target = $region32
        $region31: #{tpu_custom_call.1} parent=27 // pred_region
          %s192 = sand.u32 %s28, 1
          %s193 = scalar_lea.sflag [#allocation4], %s192
          %s194 = sand.u32 %s28, 1
          %s195 = smul.addr %s194, 4
          %s196 = scalar_lea.vmem [#allocation3], %s195
          %s198 = ssub.s32 64, 64
          %199 = vsyncadd %s193, %s198
          %s200 = smul.addr %s18, 64
          %s201 = scalar_lea.hbm %s0, %s200
          %s203 = sshll.u32 %s196, 4
          %s204 = int_to_ptr.vmem [resolvable:$true] %s203
          %206 = dma.hbm_to_vmem [thread:$0]  %s201, 64, %s204, %s193
        $region32: #{tpu_custom_call.1} parent=27 // pred_fallthru
          _
      $region28: #{tpu_custom_call.1} parent=5 // pred_fallthru
        _
      %p207 = scmp.le.s32.totalorder 1, %s18
      %p208 = scmp.lt.s32.totalorder %s18, 3
      %p209 = pnand %p207, %p208
      %p210 = pneg %p209
      // Predicated region
      $region33: #{tpu_custom_call.1} parent=5 // pred_check
        _
      $region34: #{tpu_custom_call.1} parent=5 // pred_check_branch
        %212 = sbr.rel (%p209) target = $region36
      $region35: #{tpu_custom_call.1} parent=5 // pred_region
        %s213 = ssub.s32 %s18, 1
        %s214 = sand.u32 %s31, 1
        %s215 = scalar_lea.sflag [#allocation4], %s214
        %s216 = sand.u32 %s31, 1
        %s217 = smul.addr %s216, 4
        %s218 = scalar_lea.vmem [#allocation3], %s217
        // Predicated region
        $region37: #{tpu_custom_call.1} parent=35 // pred_check
          %p219 = pneg %p44
        $region38: #{tpu_custom_call.1} parent=35 // pred_check_branch
          %221 = sbr.rel (%p219) target = $region40
        $region39: #{tpu_custom_call.1} parent=35 // pred_region
          %222 = dma.done %s215, 64
        $region40: #{tpu_custom_call.1} parent=35 // pred_fallthru
          _
        // Predicated region
        $region41: #{tpu_custom_call.1} parent=35 // pred_check
          %p223 = pneg %p65
        $region42: #{tpu_custom_call.1} parent=35 // pred_check_branch
          %225 = sbr.rel (%p223) target = $region44
        $region43: #{tpu_custom_call.1} parent=35 // pred_region
          %226 = dma.done [#allocation7], 2048
        $region44: #{tpu_custom_call.1} parent=35 // pred_fallthru
          _
        // Predicated region
        $region45: #{tpu_custom_call.1} parent=35 // pred_check
          %p227 = pneg %p86
        $region46: #{tpu_custom_call.1} parent=35 // pred_check_branch
          %229 = sbr.rel (%p227) target = $region48
        $region47: #{tpu_custom_call.1} parent=35 // pred_region
          %230 = dma.done [#allocation7], 256
        $region48: #{tpu_custom_call.1} parent=35 // pred_fallthru
          _
        // Predicated region
        $region49: #{tpu_custom_call.1} parent=35 // pred_check
          %p231 = pneg %p107
        $region50: #{tpu_custom_call.1} parent=35 // pred_check_branch
          %233 = sbr.rel (%p231) target = $region52
        $region51: #{tpu_custom_call.1} parent=35 // pred_region
          %234 = dma.done [#allocation10], 16
        $region52: #{tpu_custom_call.1} parent=35 // pred_fallthru
          _
        %s235 = sand.u32 %s31, 1
        %s236 = scalar_lea.sflag [#allocation4], %s235
        %s237 = sand.u32 %s31, 1
        %s238 = smul.addr %s237, 4
        %s239 = scalar_lea.vmem [#allocation3], %s238
        %p240 = pneg %p44
        %p241 = pneg %p41
        %p242 = pneg %p65
        %p243 = pneg %p62
        %p244 = pneg %p86
        %p245 = pneg %p83
        %p246 = pneg %p107
        %p247 = pneg %p104
        %p248 = pneg %p133
        %p249 = pneg %p130
        %s250 = sand.u32 %s120, 1
        %s251 = scalar_lea.sflag [#allocation5], %s250
        %s252 = sand.u32 %s120, 1
        %s253 = smul.addr %s252, 8
        %s254 = scalar_lea.vmem [#allocation11], %s253
        %v256 = vld [vmem:[%s218] sm:$0xf]
        %v257 = vld [vmem:[#allocation6] sm:$0xf]
        %v258 = vld [vmem:[#allocation6 + $0x4] sm:$0xf]
        %v259 = vld [vmem:[#allocation6 + $0x8] sm:$0xf]
        %v260 = vld [vmem:[#allocation6 + $0xc] sm:$0xf]
        %v265 = vunpack.c.l.b16 %v257
        %v266 = vunpack.c.l.b16 %v258
        %v267 = vunpack.c.l.b16 %v259
        %v268 = vunpack.c.l.b16 %v260
        %v269 = vpack.c.b16 %v266, %v265
        %v270 = vpack.c.b16 %v268, %v267
        %vm273 = vcmask 261120
        %v275 = vsel %vm273, %v256, 0
        %277 = vmatprep.subr.bf16.mxu0 0
        %278 = vmatpush1.bf16.msra.mxu0 %v269
        %279 = vmatprep.subr.bf16.mxu0 0
        %280 = vmatpush1.bf16.msra.mxu0 %v270
        %281 = vmatprep.subr.bf16.mxu0 0
        %282 = vmatpush1.bf16.msra.mxu0 0
        %283 = vmatprep.subr.bf16.mxu0 0
        %284 = vmatpush1.bf16.msra.mxu0 0
        %285 = vmatprep.subr.bf16.mxu0 0
        %286 = vmatpush1.bf16.msra.mxu0 0
        %287 = vmatprep.subr.bf16.mxu0 0
        %288 = vmatpush1.bf16.msra.mxu0 0
        %289 = vmatprep.subr.bf16.mxu0 0
        %290 = vmatpush1.bf16.msra.mxu0 0
        %291 = vmatprep.subr.bf16.mxu0 0
        %292 = vmatpush1.bf16.msra.mxu0 0
        %293 = vmatprep.subr.bf16.mxu0 0
        %294 = vmatpush1.bf16.msra.mxu0 0
        %295 = vmatprep.subr.bf16.mxu0 0
        %296 = vmatpush1.bf16.msra.mxu0 0
        %297 = vmatprep.subr.bf16.mxu0 0
        %298 = vmatpush1.bf16.msra.mxu0 0
        %299 = vmatprep.subr.bf16.mxu0 0
        %300 = vmatpush1.bf16.msra.mxu0 0
        %301 = vmatprep.subr.bf16.mxu0 0
        %302 = vmatpush1.bf16.msra.mxu0 0
        %303 = vmatprep.subr.bf16.mxu0 0
        %304 = vmatpush1.bf16.msra.mxu0 0
        %305 = vmatprep.subr.bf16.mxu0 0
        %306 = vmatpush1.bf16.msra.mxu0 0
        %307 = vmatprep.subr.bf16.mxu0 0
        %308 = vmatpush1.bf16.msra.mxu0 0
        %309 = vmatprep.mubr.bf16.mxu0 0
        %310 = vmatmul.mubr.bf16.gmra.mrb[0].mxu0 %v275
        %v311 = vpop.f32.mrb[0].mxu0
        %v312 = vadd.f32 0.0, %v311
        %v313 = vpop.f32.mrb[0].mxu0
        %v314 = vpop.f32.mrb[0].mxu0
        %v315 = vpop.f32.mrb[0].mxu0
        %316 = vdwg.mxu0
        %v317 = vmul.f32 %v312, 0.5
        %v318 = vpack.c.bf16 %v317, %v317
        %v319 = vpack.c.bf16 %v312, %v312
        %321 = vrot.lane.b32.xlu0 %v319, 124
        %v322 = vpop.permute.xlu0 %321
        %vm323 = vcmask 31744
        %v325 = vsel %vm323, %v318, 0
        %v328 = vsel %vm323, %v322, 0
        %330 = vmatprep.subr.bf16.mxu0 0
        %331 = vmatpush1.bf16.xpose.msra.mxu0 %v328
        %332 = vmatprep.subr.bf16.mxu0 0
        %333 = vmatpush1.bf16.xpose.msra.mxu0 0
        %334 = vmatprep.subr.bf16.mxu0 0
        %335 = vmatpush1.bf16.xpose.msra.mxu0 0
        %336 = vmatprep.subr.bf16.mxu0 0
        %337 = vmatpush1.bf16.xpose.msra.mxu0 0
        %338 = vmatprep.subr.bf16.mxu0 0
        %339 = vmatpush1.bf16.xpose.msra.mxu0 0
        %340 = vmatprep.subr.bf16.mxu0 0
        %341 = vmatpush1.bf16.xpose.msra.mxu0 0
        %342 = vmatprep.subr.bf16.mxu0 0
        %343 = vmatpush1.bf16.xpose.msra.mxu0 0
        %344 = vmatprep.subr.bf16.mxu0 0
        %345 = vmatpush1.bf16.xpose.msra.mxu0 0
        %346 = vmatprep.subr.bf16.mxu0 0
        %347 = vmatpush1.bf16.xpose.msra.mxu0 0
        %348 = vmatprep.subr.bf16.mxu0 0
        %349 = vmatpush1.bf16.xpose.msra.mxu0 0
        %350 = vmatprep.subr.bf16.mxu0 0
        %351 = vmatpush1.bf16.xpose.msra.mxu0 0
        %352 = vmatprep.subr.bf16.mxu0 0
        %353 = vmatpush1.bf16.xpose.msra.mxu0 0
        %354 = vmatprep.subr.bf16.mxu0 0
        %355 = vmatpush1.bf16.xpose.msra.mxu0 0
        %356 = vmatprep.subr.bf16.mxu0 0
        %357 = vmatpush1.bf16.xpose.msra.mxu0 0
        %358 = vmatprep.subr.bf16.mxu0 0
        %359 = vmatpush1.bf16.xpose.msra.mxu0 0
        %360 = vmatprep.subr.bf16.mxu0 0
        %361 = vmatpush1.bf16.xpose.msra.mxu0 0
        %362 = vmatprep.mubr.bf16.mxu0 0
        %363 = vmatmul.mubr.bf16.gmra.mrb[0].mxu0 %v325
        %v364 = vpop.f32.mrb[0].mxu0
        %v365 = vadd.f32 0.0, %v364
        %v366 = vpop.f32.mrb[0].mxu0
        %v367 = vpop.f32.mrb[0].mxu0
        %v368 = vpop.f32.mrb[0].mxu0
        %369 = vdwg.mxu0
        %vm370 = vcmask 64512
        %v371 = vsel %vm370, %v365, -inf
        %372 = vmax.xlane.f32.xlu0 %v371
        %v373 = vpop.xlane.xlu0 %372
        %v374 = vsub.f32 %v365, %v373
        %v375 = vmul.f32 %v374, 1.442695
        %v376 = vpow.pop %v375
        %v377 = vsel %vm370, %v376, 0.0
        %378 = vadd.xlane.f32.xlu0 %v377
        %v379 = vpop.xlane.xlu0 %378
        %v380 = vpack.c.bf16 %v376, %v376
        %381 = vrot.lane.b32.xlu0 %v319, 120
        %v382 = vpop.permute.xlu0 %381
        %v384 = vsel %vm370, %v380, 0
        %vm386 = vcmask 1043456
        %v388 = vsel %vm386, %v382, 0
        %390 = vmatprep.subr.bf16.mxu0 0
        %391 = vmatpush1.bf16.msra.mxu0 %v388
        %392 = vmatprep.subr.bf16.mxu0 0
        %393 = vmatpush1.bf16.msra.mxu0 0
        %394 = vmatprep.subr.bf16.mxu0 0
        %395 = vmatpush1.bf16.msra.mxu0 0
        %396 = vmatprep.subr.bf16.mxu0 0
        %397 = vmatpush1.bf16.msra.mxu0 0
        %398 = vmatprep.subr.bf16.mxu0 0
        %399 = vmatpush1.bf16.msra.mxu0 0
        %400 = vmatprep.subr.bf16.mxu0 0
        %401 = vmatpush1.bf16.msra.mxu0 0
        %402 = vmatprep.subr.bf16.mxu0 0
        %403 = vmatpush1.bf16.msra.mxu0 0
        %404 = vmatprep.subr.bf16.mxu0 0
        %405 = vmatpush1.bf16.msra.mxu0 0
        %406 = vmatprep.subr.bf16.mxu0 0
        %407 = vmatpush1.bf16.msra.mxu0 0
        %408 = vmatprep.subr.bf16.mxu0 0
        %409 = vmatpush1.bf16.msra.mxu0 0
        %410 = vmatprep.subr.bf16.mxu0 0
        %411 = vmatpush1.bf16.msra.mxu0 0
        %412 = vmatprep.subr.bf16.mxu0 0
        %413 = vmatpush1.bf16.msra.mxu0 0
        %414 = vmatprep.subr.bf16.mxu0 0
        %415 = vmatpush1.bf16.msra.mxu0 0
        %416 = vmatprep.subr.bf16.mxu0 0
        %417 = vmatpush1.bf16.msra.mxu0 0
        %418 = vmatprep.subr.bf16.mxu0 0
        %419 = vmatpush1.bf16.msra.mxu0 0
        %420 = vmatprep.subr.bf16.mxu0 0
        %421 = vmatpush1.bf16.msra.mxu0 0
        %422 = vmatprep.mubr.bf16.mxu0 0
        %423 = vmatmul.mubr.bf16.gmra.mrb[0].mxu0 %v384
        %v424 = vpop.f32.mrb[0].mxu0
        %v425 = vadd.f32 0.0, %v424
        %v426 = vpop.f32.mrb[0].mxu0
        %v427 = vpop.f32.mrb[0].mxu0
        %v428 = vpop.f32.mrb[0].mxu0
        %429 = vdwg.mxu0
        %v430 = vrcp.pop %v379
        %v431 = vmul.f32 %v425, %v430
        %v432 = vpack.c.bf16 %v431, %v431
        %vm433 = vcmask 27648
        %434 = vst.msk [vmem:[#allocation2] sm:$0xf] %vm433, %v432
        %s435 = scalar_lea.vmem [#allocation6], 16
        %v436 = vld [vmem:[%s435] sm:$0xf]
        %v437 = vld [vmem:[%s435 + $0x4] sm:$0xf]
        %v438 = vld [vmem:[%s435 + $0x8] sm:$0xf]
        %v439 = vld [vmem:[%s435 + $0xc] sm:$0xf]
        %v444 = vunpack.c.l.b16 %v436
        %v445 = vunpack.c.l.b16 %v437
        %v446 = vunpack.c.l.b16 %v438
        %v447 = vunpack.c.l.b16 %v439
        %v448 = vpack.c.b16 %v445, %v444
        %v449 = vpack.c.b16 %v447, %v446
        %452 = vmatprep.subr.bf16.mxu0 0
        %453 = vmatpush1.bf16.msra.mxu0 %v448
        %454 = vmatprep.subr.bf16.mxu0 0
        %455 = vmatpush1.bf16.msra.mxu0 %v449
        %456 = vmatprep.subr.bf16.mxu0 0
        %457 = vmatpush1.bf16.msra.mxu0 0
        %458 = vmatprep.subr.bf16.mxu0 0
        %459 = vmatpush1.bf16.msra.mxu0 0
        %460 = vmatprep.subr.bf16.mxu0 0
        %461 = vmatpush1.bf16.msra.mxu0 0
        %462 = vmatprep.subr.bf16.mxu0 0
        %463 = vmatpush1.bf16.msra.mxu0 0
        %464 = vmatprep.subr.bf16.mxu0 0
        %465 = vmatpush1.bf16.msra.mxu0 0
        %466 = vmatprep.subr.bf16.mxu0 0
        %467 = vmatpush1.bf16.msra.mxu0 0
        %468 = vmatprep.subr.bf16.mxu0 0
        %469 = vmatpush1.bf16.msra.mxu0 0
        %470 = vmatprep.subr.bf16.mxu0 0
        %471 = vmatpush1.bf16.msra.mxu0 0
        %472 = vmatprep.subr.bf16.mxu0 0
        %473 = vmatpush1.bf16.msra.mxu0 0
        %474 = vmatprep.subr.bf16.mxu0 0
        %475 = vmatpush1.bf16.msra.mxu0 0
        %476 = vmatprep.subr.bf16.mxu0 0
        %477 = vmatpush1.bf16.msra.mxu0 0
        %478 = vmatprep.subr.bf16.mxu0 0
        %479 = vmatpush1.bf16.msra.mxu0 0
        %480 = vmatprep.subr.bf16.mxu0 0
        %481 = vmatpush1.bf16.msra.mxu0 0
        %482 = vmatprep.subr.bf16.mxu0 0
        %483 = vmatpush1.bf16.msra.mxu0 0
        %484 = vmatprep.mubr.bf16.mxu0 0
        %485 = vmatmul.mubr.bf16.gmra.mrb[0].mxu0 %v275
        %v486 = vpop.f32.mrb[0].mxu0
        %v487 = vadd.f32 0.0, %v486
        %v488 = vpop.f32.mrb[0].mxu0
        %v489 = vpop.f32.mrb[0].mxu0
        %v490 = vpop.f32.mrb[0].mxu0
        %491 = vdwg.mxu0
        %v492 = vmul.f32 %v487, 0.5
        %v493 = vpack.c.bf16 %v492, %v492
        %v494 = vpack.c.bf16 %v487, %v487
        %496 = vrot.lane.b32.xlu0 %v494, 124
        %v497 = vpop.permute.xlu0 %496
        %v499 = vsel %vm323, %v493, 0
        %v502 = vsel %vm323, %v497, 0
        %504 = vmatprep.subr.bf16.mxu0 0
        %505 = vmatpush1.bf16.xpose.msra.mxu0 %v502
        %506 = vmatprep.subr.bf16.mxu0 0
        %507 = vmatpush1.bf16.xpose.msra.mxu0 0
        %508 = vmatprep.subr.bf16.mxu0 0
        %509 = vmatpush1.bf16.xpose.msra.mxu0 0
        %510 = vmatprep.subr.bf16.mxu0 0
        %511 = vmatpush1.bf16.xpose.msra.mxu0 0
        %512 = vmatprep.subr.bf16.mxu0 0
        %513 = vmatpush1.bf16.xpose.msra.mxu0 0
        %514 = vmatprep.subr.bf16.mxu0 0
        %515 = vmatpush1.bf16.xpose.msra.mxu0 0
        %516 = vmatprep.subr.bf16.mxu0 0
        %517 = vmatpush1.bf16.xpose.msra.mxu0 0
        %518 = vmatprep.subr.bf16.mxu0 0
        %519 = vmatpush1.bf16.xpose.msra.mxu0 0
        %520 = vmatprep.subr.bf16.mxu0 0
        %521 = vmatpush1.bf16.xpose.msra.mxu0 0
        %522 = vmatprep.subr.bf16.mxu0 0
        %523 = vmatpush1.bf16.xpose.msra.mxu0 0
        %524 = vmatprep.subr.bf16.mxu0 0
        %525 = vmatpush1.bf16.xpose.msra.mxu0 0
        %526 = vmatprep.subr.bf16.mxu0 0
        %527 = vmatpush1.bf16.xpose.msra.mxu0 0
        %528 = vmatprep.subr.bf16.mxu0 0
        %529 = vmatpush1.bf16.xpose.msra.mxu0 0
        %530 = vmatprep.subr.bf16.mxu0 0
        %531 = vmatpush1.bf16.xpose.msra.mxu0 0
        %532 = vmatprep.subr.bf16.mxu0 0
        %533 = vmatpush1.bf16.xpose.msra.mxu0 0
        %534 = vmatprep.subr.bf16.mxu0 0
        %535 = vmatpush1.bf16.xpose.msra.mxu0 0
        %536 = vmatprep.mubr.bf16.mxu0 0
        %537 = vmatmul.mubr.bf16.gmra.mrb[0].mxu0 %v499
        %v538 = vpop.f32.mrb[0].mxu0
        %v539 = vadd.f32 0.0, %v538
        %v540 = vpop.f32.mrb[0].mxu0
        %v541 = vpop.f32.mrb[0].mxu0
        %v542 = vpop.f32.mrb[0].mxu0
        %543 = vdwg.mxu0
        %v544 = vsel %vm370, %v539, -inf
        %545 = vmax.xlane.f32.xlu0 %v544
        %v546 = vpop.xlane.xlu0 %545
        %v547 = vsub.f32 %v539, %v546
        %v548 = vmul.f32 %v547, 1.442695
        %v549 = vpow.pop %v548
        %v550 = vsel %vm370, %v549, 0.0
        %551 = vadd.xlane.f32.xlu0 %v550
        %v552 = vpop.xlane.xlu0 %551
        %v553 = vpack.c.bf16 %v549, %v549
        %554 = vrot.lane.b32.xlu0 %v494, 120
        %v555 = vpop.permute.xlu0 %554
        %v557 = vsel %vm370, %v553, 0
        %v560 = vsel %vm386, %v555, 0
        %562 = vmatprep.subr.bf16.mxu0 0
        %563 = vmatpush1.bf16.msra.mxu0 %v560
        %564 = vmatprep.subr.bf16.mxu0 0
        %565 = vmatpush1.bf16.msra.mxu0 0
        %566 = vmatprep.subr.bf16.mxu0 0
        %567 = vmatpush1.bf16.msra.mxu0 0
        %568 = vmatprep.subr.bf16.mxu0 0
        %569 = vmatpush1.bf16.msra.mxu0 0
        %570 = vmatprep.subr.bf16.mxu0 0
        %571 = vmatpush1.bf16.msra.mxu0 0
        %572 = vmatprep.subr.bf16.mxu0 0
        %573 = vmatpush1.bf16.msra.mxu0 0
        %574 = vmatprep.subr.bf16.mxu0 0
        %575 = vmatpush1.bf16.msra.mxu0 0
        %576 = vmatprep.subr.bf16.mxu0 0
        %577 = vmatpush1.bf16.msra.mxu0 0
        %578 = vmatprep.subr.bf16.mxu0 0
        %579 = vmatpush1.bf16.msra.mxu0 0
        %580 = vmatprep.subr.bf16.mxu0 0
        %581 = vmatpush1.bf16.msra.mxu0 0
        %582 = vmatprep.subr.bf16.mxu0 0
        %583 = vmatpush1.bf16.msra.mxu0 0
        %584 = vmatprep.subr.bf16.mxu0 0
        %585 = vmatpush1.bf16.msra.mxu0 0
        %586 = vmatprep.subr.bf16.mxu0 0
        %587 = vmatpush1.bf16.msra.mxu0 0
        %588 = vmatprep.subr.bf16.mxu0 0
        %589 = vmatpush1.bf16.msra.mxu0 0
        %590 = vmatprep.subr.bf16.mxu0 0
        %591 = vmatpush1.bf16.msra.mxu0 0
        %592 = vmatprep.subr.bf16.mxu0 0
        %593 = vmatpush1.bf16.msra.mxu0 0
        %594 = vmatprep.mubr.bf16.mxu0 0
        %595 = vmatmul.mubr.bf16.gmra.mrb[0].mxu0 %v557
        %v596 = vpop.f32.mrb[0].mxu0
        %v597 = vadd.f32 0.0, %v596
        %v598 = vpop.f32.mrb[0].mxu0
        %v599 = vpop.f32.mrb[0].mxu0
        %v600 = vpop.f32.mrb[0].mxu0
        %601 = vdwg.mxu0
        %v602 = vrcp.pop %v552
        %v603 = vmul.f32 %v597, %v602
        %v604 = vpack.c.bf16 %v603, %v603
        %v606 = vunpack.c.l.b16 %v604
        %v607 = vpack.c.b16 %v606, %v606
        %608 = vrot.lane.b32.xlu0 %v607, 4
        %v609 = vpop.permute.xlu0 %608
        %vm611 = vcmask 60448
        %612 = vst.msk [vmem:[#allocation2] sm:$0xf] %vm611, %v609
        %s613 = scalar_lea.vmem [#allocation6], 32
        %v614 = vld [vmem:[%s613] sm:$0xf]
        %v615 = vld [vmem:[%s613 + $0x4] sm:$0xf]
        %v616 = vld [vmem:[%s613 + $0x8] sm:$0xf]
        %v617 = vld [vmem:[%s613 + $0xc] sm:$0xf]
        %v622 = vunpack.c.l.b16 %v614
        %v623 = vunpack.c.l.b16 %v615
        %v624 = vunpack.c.l.b16 %v616
        %v625 = vunpack.c.l.b16 %v617
        %v626 = vpack.c.b16 %v623, %v622
        %v627 = vpack.c.b16 %v625, %v624
        %630 = vmatprep.subr.bf16.mxu0 0
        %631 = vmatpush1.bf16.msra.mxu0 %v626
        %632 = vmatprep.subr.bf16.mxu0 0
        %633 = vmatpush1.bf16.msra.mxu0 %v627
        %634 = vmatprep.subr.bf16.mxu0 0
        %635 = vmatpush1.bf16.msra.mxu0 0
        %636 = vmatprep.subr.bf16.mxu0 0
        %637 = vmatpush1.bf16.msra.mxu0 0
        %638 = vmatprep.subr.bf16.mxu0 0
        %639 = vmatpush1.bf16.msra.mxu0 0
        %640 = vmatprep.subr.bf16.mxu0 0
        %641 = vmatpush1.bf16.msra.mxu0 0
        %642 = vmatprep.subr.bf16.mxu0 0
        %643 = vmatpush1.bf16.msra.mxu0 0
        %644 = vmatprep.subr.bf16.mxu0 0
        %645 = vmatpush1.bf16.msra.mxu0 0
        %646 = vmatprep.subr.bf16.mxu0 0
        %647 = vmatpush1.bf16.msra.mxu0 0
        %648 = vmatprep.subr.bf16.mxu0 0
        %649 = vmatpush1.bf16.msra.mxu0 0
        %650 = vmatprep.subr.bf16.mxu0 0
        %651 = vmatpush1.bf16.msra.mxu0 0
        %652 = vmatprep.subr.bf16.mxu0 0
        %653 = vmatpush1.bf16.msra.mxu0 0
        %654 = vmatprep.subr.bf16.mxu0 0
        %655 = vmatpush1.bf16.msra.mxu0 0
        %656 = vmatprep.subr.bf16.mxu0 0
        %657 = vmatpush1.bf16.msra.mxu0 0
        %658 = vmatprep.subr.bf16.mxu0 0
        %659 = vmatpush1.bf16.msra.mxu0 0
        %660 = vmatprep.subr.bf16.mxu0 0
        %661 = vmatpush1.bf16.msra.mxu0 0
        %662 = vmatprep.mubr.bf16.mxu0 0
        %663 = vmatmul.mubr.bf16.gmra.mrb[0].mxu0 %v275
        %v664 = vpop.f32.mrb[0].mxu0
        %v665 = vadd.f32 0.0, %v664
        %v666 = vpop.f32.mrb[0].mxu0
        %v667 = vpop.f32.mrb[0].mxu0
        %v668 = vpop.f32.mrb[0].mxu0
        %669 = vdwg.mxu0
        %v670 = vmul.f32 %v665, 0.5
        %v671 = vpack.c.bf16 %v670, %v670
        %v672 = vpack.c.bf16 %v665, %v665
        %674 = vrot.lane.b32.xlu0 %v672, 124
        %v675 = vpop.permute.xlu0 %674
        %v677 = vsel %vm323, %v671, 0
        %v680 = vsel %vm323, %v675, 0
        %682 = vmatprep.subr.bf16.mxu0 0
        %683 = vmatpush1.bf16.xpose.msra.mxu0 %v680
        %684 = vmatprep.subr.bf16.mxu0 0
        %685 = vmatpush1.bf16.xpose.msra.mxu0 0
        %686 = vmatprep.subr.bf16.mxu0 0
        %687 = vmatpush1.bf16.xpose.msra.mxu0 0
        %688 = vmatprep.subr.bf16.mxu0 0
        %689 = vmatpush1.bf16.xpose.msra.mxu0 0
        %690 = vmatprep.subr.bf16.mxu0 0
        %691 = vmatpush1.bf16.xpose.msra.mxu0 0
        %692 = vmatprep.subr.bf16.mxu0 0
        %693 = vmatpush1.bf16.xpose.msra.mxu0 0
        %694 = vmatprep.subr.bf16.mxu0 0
        %695 = vmatpush1.bf16.xpose.msra.mxu0 0
        %696 = vmatprep.subr.bf16.mxu0 0
        %697 = vmatpush1.bf16.xpose.msra.mxu0 0
        %698 = vmatprep.subr.bf16.mxu0 0
        %699 = vmatpush1.bf16.xpose.msra.mxu0 0
        %700 = vmatprep.subr.bf16.mxu0 0
        %701 = vmatpush1.bf16.xpose.msra.mxu0 0
        %702 = vmatprep.subr.bf16.mxu0 0
        %703 = vmatpush1.bf16.xpose.msra.mxu0 0
        %704 = vmatprep.subr.bf16.mxu0 0
        %705 = vmatpush1.bf16.xpose.msra.mxu0 0
        %706 = vmatprep.subr.bf16.mxu0 0
        %707 = vmatpush1.bf16.xpose.msra.mxu0 0
        %708 = vmatprep.subr.bf16.mxu0 0
        %709 = vmatpush1.bf16.xpose.msra.mxu0 0
        %710 = vmatprep.subr.bf16.mxu0 0
        %711 = vmatpush1.bf16.xpose.msra.mxu0 0
        %712 = vmatprep.subr.bf16.mxu0 0
        %713 = vmatpush1.bf16.xpose.msra.mxu0 0
        %714 = vmatprep.mubr.bf16.mxu0 0
        %715 = vmatmul.mubr.bf16.gmra.mrb[0].mxu0 %v677
        %v716 = vpop.f32.mrb[0].mxu0
        %v717 = vadd.f32 0.0, %v716
        %v718 = vpop.f32.mrb[0].mxu0
        %v719 = vpop.f32.mrb[0].mxu0
        %v720 = vpop.f32.mrb[0].mxu0
        %721 = vdwg.mxu0
        %v722 = vsel %vm370, %v717, -inf
        %723 = vmax.xlane.f32.xlu0 %v722
        %v724 = vpop.xlane.xlu0 %723
        %v725 = vsub.f32 %v717, %v724
        %v726 = vmul.f32 %v725, 1.442695
        %v727 = vpow.pop %v726
        %v728 = vsel %vm370, %v727, 0.0
        %729 = vadd.xlane.f32.xlu0 %v728
        %v730 = vpop.xlane.xlu0 %729
        %v731 = vpack.c.bf16 %v727, %v727
        %732 = vrot.lane.b32.xlu0 %v672, 120
        %v733 = vpop.permute.xlu0 %732
        %v735 = vsel %vm370, %v731, 0
        %v738 = vsel %vm386, %v733, 0
        %740 = vmatprep.subr.bf16.mxu0 0
        %741 = vmatpush1.bf16.msra.mxu0 %v738
        %742 = vmatprep.subr.bf16.mxu0 0
        %743 = vmatpush1.bf16.msra.mxu0 0
        %744 = vmatprep.subr.bf16.mxu0 0
        %745 = vmatpush1.bf16.msra.mxu0 0
        %746 = vmatprep.subr.bf16.mxu0 0
        %747 = vmatpush1.bf16.msra.mxu0 0
        %748 = vmatprep.subr.bf16.mxu0 0
        %749 = vmatpush1.bf16.msra.mxu0 0
        %750 = vmatprep.subr.bf16.mxu0 0
        %751 = vmatpush1.bf16.msra.mxu0 0
        %752 = vmatprep.subr.bf16.mxu0 0
        %753 = vmatpush1.bf16.msra.mxu0 0
        %754 = vmatprep.subr.bf16.mxu0 0
        %755 = vmatpush1.bf16.msra.mxu0 0
        %756 = vmatprep.subr.bf16.mxu0 0
        %757 = vmatpush1.bf16.msra.mxu0 0
        %758 = vmatprep.subr.bf16.mxu0 0
        %759 = vmatpush1.bf16.msra.mxu0 0
        %760 = vmatprep.subr.bf16.mxu0 0
        %761 = vmatpush1.bf16.msra.mxu0 0
        %762 = vmatprep.subr.bf16.mxu0 0
        %763 = vmatpush1.bf16.msra.mxu0 0
        %764 = vmatprep.subr.bf16.mxu0 0
        %765 = vmatpush1.bf16.msra.mxu0 0
        %766 = vmatprep.subr.bf16.mxu0 0
        %767 = vmatpush1.bf16.msra.mxu0 0
        %768 = vmatprep.subr.bf16.mxu0 0
        %769 = vmatpush1.bf16.msra.mxu0 0
        %770 = vmatprep.subr.bf16.mxu0 0
        %771 = vmatpush1.bf16.msra.mxu0 0
        %772 = vmatprep.mubr.bf16.mxu0 0
        %773 = vmatmul.mubr.bf16.gmra.mrb[0].mxu0 %v735
        %v774 = vpop.f32.mrb[0].mxu0
        %v775 = vadd.f32 0.0, %v774
        %v776 = vpop.f32.mrb[0].mxu0
        %v777 = vpop.f32.mrb[0].mxu0
        %v778 = vpop.f32.mrb[0].mxu0
        %779 = vdwg.mxu0
        %v780 = vrcp.pop %v730
        %v781 = vmul.f32 %v775, %v780
        %v782 = vpack.c.bf16 %v781, %v781
        %v784 = vunpack.c.l.b16 %v782
        %v785 = vpack.c.b16 %v784, %v784
        %786 = vrot.lane.b32.xlu0 %v785, 8
        %v787 = vpop.permute.xlu0 %786
        %vm789 = vcmask 93248
        %790 = vst.msk [vmem:[#allocation2] sm:$0xf] %vm789, %v787
        %s791 = scalar_lea.vmem [#allocation6], 48
        %v792 = vld [vmem:[%s791] sm:$0xf]
        %v793 = vld [vmem:[%s791 + $0x4] sm:$0xf]
        %v794 = vld [vmem:[%s791 + $0x8] sm:$0xf]
        %v795 = vld [vmem:[%s791 + $0xc] sm:$0xf]
        %v800 = vunpack.c.l.b16 %v792
        %v801 = vunpack.c.l.b16 %v793
        %v802 = vunpack.c.l.b16 %v794
        %v803 = vunpack.c.l.b16 %v795
        %v804 = vpack.c.b16 %v801, %v800
        %v805 = vpack.c.b16 %v803, %v802
        %808 = vmatprep.subr.bf16.mxu0 0
        %809 = vmatpush1.bf16.msra.mxu0 %v804
        %810 = vmatprep.subr.bf16.mxu0 0
        %811 = vmatpush1.bf16.msra.mxu0 %v805
        %812 = vmatprep.subr.bf16.mxu0 0
        %813 = vmatpush1.bf16.msra.mxu0 0
        %814 = vmatprep.subr.bf16.mxu0 0
        %815 = vmatpush1.bf16.msra.mxu0 0
        %816 = vmatprep.subr.bf16.mxu0 0
        %817 = vmatpush1.bf16.msra.mxu0 0
        %818 = vmatprep.subr.bf16.mxu0 0
        %819 = vmatpush1.bf16.msra.mxu0 0
        %820 = vmatprep.subr.bf16.mxu0 0
        %821 = vmatpush1.bf16.msra.mxu0 0
        %822 = vmatprep.subr.bf16.mxu0 0
        %823 = vmatpush1.bf16.msra.mxu0 0
        %824 = vmatprep.subr.bf16.mxu0 0
        %825 = vmatpush1.bf16.msra.mxu0 0
        %826 = vmatprep.subr.bf16.mxu0 0
        %827 = vmatpush1.bf16.msra.mxu0 0
        %828 = vmatprep.subr.bf16.mxu0 0
        %829 = vmatpush1.bf16.msra.mxu0 0
        %830 = vmatprep.subr.bf16.mxu0 0
        %831 = vmatpush1.bf16.msra.mxu0 0
        %832 = vmatprep.subr.bf16.mxu0 0
        %833 = vmatpush1.bf16.msra.mxu0 0
        %834 = vmatprep.subr.bf16.mxu0 0
        %835 = vmatpush1.bf16.msra.mxu0 0
        %836 = vmatprep.subr.bf16.mxu0 0
        %837 = vmatpush1.bf16.msra.mxu0 0
        %838 = vmatprep.subr.bf16.mxu0 0
        %839 = vmatpush1.bf16.msra.mxu0 0
        %840 = vmatprep.mubr.bf16.mxu0 0
        %841 = vmatmul.mubr.bf16.gmra.mrb[0].mxu0 %v275
        %v842 = vpop.f32.mrb[0].mxu0
        %v843 = vadd.f32 0.0, %v842
        %v844 = vpop.f32.mrb[0].mxu0
        %v845 = vpop.f32.mrb[0].mxu0
        %v846 = vpop.f32.mrb[0].mxu0
        %847 = vdwg.mxu0
        %v848 = vmul.f32 %v843, 0.5
        %v849 = vpack.c.bf16 %v848, %v848
        %v850 = vpack.c.bf16 %v843, %v843
        %852 = vrot.lane.b32.xlu0 %v850, 124
        %v853 = vpop.permute.xlu0 %852
        %v855 = vsel %vm323, %v849, 0
        %v858 = vsel %vm323, %v853, 0
        %860 = vmatprep.subr.bf16.mxu0 0
        %861 = vmatpush1.bf16.xpose.msra.mxu0 %v858
        %862 = vmatprep.subr.bf16.mxu0 0
        %863 = vmatpush1.bf16.xpose.msra.mxu0 0
        %864 = vmatprep.subr.bf16.mxu0 0
        %865 = vmatpush1.bf16.xpose.msra.mxu0 0
        %866 = vmatprep.subr.bf16.mxu0 0
        %867 = vmatpush1.bf16.xpose.msra.mxu0 0
        %868 = vmatprep.subr.bf16.mxu0 0
        %869 = vmatpush1.bf16.xpose.msra.mxu0 0
        %870 = vmatprep.subr.bf16.mxu0 0
        %871 = vmatpush1.bf16.xpose.msra.mxu0 0
        %872 = vmatprep.subr.bf16.mxu0 0
        %873 = vmatpush1.bf16.xpose.msra.mxu0 0
        %874 = vmatprep.subr.bf16.mxu0 0
        %875 = vmatpush1.bf16.xpose.msra.mxu0 0
        %876 = vmatprep.subr.bf16.mxu0 0
        %877 = vmatpush1.bf16.xpose.msra.mxu0 0
        %878 = vmatprep.subr.bf16.mxu0 0
        %879 = vmatpush1.bf16.xpose.msra.mxu0 0
        %880 = vmatprep.subr.bf16.mxu0 0
        %881 = vmatpush1.bf16.xpose.msra.mxu0 0
        %882 = vmatprep.subr.bf16.mxu0 0
        %883 = vmatpush1.bf16.xpose.msra.mxu0 0
        %884 = vmatprep.subr.bf16.mxu0 0
        %885 = vmatpush1.bf16.xpose.msra.mxu0 0
        %886 = vmatprep.subr.bf16.mxu0 0
        %887 = vmatpush1.bf16.xpose.msra.mxu0 0
        %888 = vmatprep.subr.bf16.mxu0 0
        %889 = vmatpush1.bf16.xpose.msra.mxu0 0
        %890 = vmatprep.subr.bf16.mxu0 0
        %891 = vmatpush1.bf16.xpose.msra.mxu0 0
        %892 = vmatprep.mubr.bf16.mxu0 0
        %893 = vmatmul.mubr.bf16.gmra.mrb[0].mxu0 %v855
        %v894 = vpop.f32.mrb[0].mxu0
        %v895 = vadd.f32 0.0, %v894
        %v896 = vpop.f32.mrb[0].mxu0
        %v897 = vpop.f32.mrb[0].mxu0
        %v898 = vpop.f32.mrb[0].mxu0
        %899 = vdwg.mxu0
        %v900 = vsel %vm370, %v895, -inf
        %901 = vmax.xlane.f32.xlu0 %v900
        %v902 = vpop.xlane.xlu0 %901
        %v903 = vsub.f32 %v895, %v902
        %v904 = vmul.f32 %v903, 1.442695
        %v905 = vpow.pop %v904
        %v906 = vsel %vm370, %v905, 0.0
        %907 = vadd.xlane.f32.xlu0 %v906
        %v908 = vpop.xlane.xlu0 %907
        %v909 = vpack.c.bf16 %v905, %v905
        %910 = vrot.lane.b32.xlu0 %v850, 120
        %v911 = vpop.permute.xlu0 %910
        %v913 = vsel %vm370, %v909, 0
        %v916 = vsel %vm386, %v911, 0
        %918 = vmatprep.subr.bf16.mxu0 0
        %919 = vmatpush1.bf16.msra.mxu0 %v916
        %920 = vmatprep.subr.bf16.mxu0 0
        %921 = vmatpush1.bf16.msra.mxu0 0
        %922 = vmatprep.subr.bf16.mxu0 0
        %923 = vmatpush1.bf16.msra.mxu0 0
        %924 = vmatprep.subr.bf16.mxu0 0
        %925 = vmatpush1.bf16.msra.mxu0 0
        %926 = vmatprep.subr.bf16.mxu0 0
        %927 = vmatpush1.bf16.msra.mxu0 0
        %928 = vmatprep.subr.bf16.mxu0 0
        %929 = vmatpush1.bf16.msra.mxu0 0
        %930 = vmatprep.subr.bf16.mxu0 0
        %931 = vmatpush1.bf16.msra.mxu0 0
        %932 = vmatprep.subr.bf16.mxu0 0
        %933 = vmatpush1.bf16.msra.mxu0 0
        %934 = vmatprep.subr.bf16.mxu0 0
        %935 = vmatpush1.bf16.msra.mxu0 0
        %936 = vmatprep.subr.bf16.mxu0 0
        %937 = vmatpush1.bf16.msra.mxu0 0
        %938 = vmatprep.subr.bf16.mxu0 0
        %939 = vmatpush1.bf16.msra.mxu0 0
        %940 = vmatprep.subr.bf16.mxu0 0
        %941 = vmatpush1.bf16.msra.mxu0 0
        %942 = vmatprep.subr.bf16.mxu0 0
        %943 = vmatpush1.bf16.msra.mxu0 0
        %944 = vmatprep.subr.bf16.mxu0 0
        %945 = vmatpush1.bf16.msra.mxu0 0
        %946 = vmatprep.subr.bf16.mxu0 0
        %947 = vmatpush1.bf16.msra.mxu0 0
        %948 = vmatprep.subr.bf16.mxu0 0
        %949 = vmatpush1.bf16.msra.mxu0 0
        %950 = vmatprep.mubr.bf16.mxu0 0
        %951 = vmatmul.mubr.bf16.gmra.mrb[0].mxu0 %v913
        %v952 = vpop.f32.mrb[0].mxu0
        %v953 = vadd.f32 0.0, %v952
        %v954 = vpop.f32.mrb[0].mxu0
        %v955 = vpop.f32.mrb[0].mxu0
        %v956 = vpop.f32.mrb[0].mxu0
        %957 = vdwg.mxu0
        %v958 = vrcp.pop %v908
        %v959 = vmul.f32 %v953, %v958
        %v960 = vpack.c.bf16 %v959, %v959
        %v962 = vunpack.c.l.b16 %v960
        %v963 = vpack.c.b16 %v962, %v962
        %964 = vrot.lane.b32.xlu0 %v963, 12
        %v965 = vpop.permute.xlu0 %964
        %vm967 = vcmask 126048
        %968 = vst.msk [vmem:[#allocation2] sm:$0xf] %vm967, %v965
        %s969 = scalar_lea.vmem [#allocation6], 64
        %v970 = vld [vmem:[%s969] sm:$0xf]
        %v971 = vld [vmem:[%s969 + $0x4] sm:$0xf]
        %v972 = vld [vmem:[%s969 + $0x8] sm:$0xf]
        %v973 = vld [vmem:[%s969 + $0xc] sm:$0xf]
        %v978 = vunpack.c.l.b16 %v970
        %v979 = vunpack.c.l.b16 %v971
        %v980 = vunpack.c.l.b16 %v972
        %v981 = vunpack.c.l.b16 %v973
        %v982 = vpack.c.b16 %v979, %v978
        %v983 = vpack.c.b16 %v981, %v980
        %986 = vmatprep.subr.bf16.mxu0 0
        %987 = vmatpush1.bf16.msra.mxu0 %v982
        %988 = vmatprep.subr.bf16.mxu0 0
        %989 = vmatpush1.bf16.msra.mxu0 %v983
        %990 = vmatprep.subr.bf16.mxu0 0
        %991 = vmatpush1.bf16.msra.mxu0 0
        %992 = vmatprep.subr.bf16.mxu0 0
        %993 = vmatpush1.bf16.msra.mxu0 0
        %994 = vmatprep.subr.bf16.mxu0 0
        %995 = vmatpush1.bf16.msra.mxu0 0
        %996 = vmatprep.subr.bf16.mxu0 0
        %997 = vmatpush1.bf16.msra.mxu0 0
        %998 = vmatprep.subr.bf16.mxu0 0
        %999 = vmatpush1.bf16.msra.mxu0 0
        %1000 = vmatprep.subr.bf16.mxu0 0
        %1001 = vmatpush1.bf16.msra.mxu0 0
        %1002 = vmatprep.subr.bf16.mxu0 0
        %1003 = vmatpush1.bf16.msra.mxu0 0
        %1004 = vmatprep.subr.bf16.mxu0 0
        %1005 = vmatpush1.bf16.msra.mxu0 0
        %1006 = vmatprep.subr.bf16.mxu0 0
        %1007 = vmatpush1.bf16.msra.mxu0 0
        %1008 = vmatprep.subr.bf16.mxu0 0
        %1009 = vmatpush1.bf16.msra.mxu0 0
        %1010 = vmatprep.subr.bf16.mxu0 0
        %1011 = vmatpush1.bf16.msra.mxu0 0
        %1012 = vmatprep.subr.bf16.mxu0 0
        %1013 = vmatpush1.bf16.msra.mxu0 0
        %1014 = vmatprep.subr.bf16.mxu0 0
        %1015 = vmatpush1.bf16.msra.mxu0 0
        %1016 = vmatprep.subr.bf16.mxu0 0
        %1017 = vmatpush1.bf16.msra.mxu0 0
        %1018 = vmatprep.mubr.bf16.mxu0 0
        %1019 = vmatmul.mubr.bf16.gmra.mrb[0].mxu0 %v275
        %v1020 = vpop.f32.mrb[0].mxu0
        %v1021 = vadd.f32 0.0, %v1020
        %v1022 = vpop.f32.mrb[0].mxu0
        %v1023 = vpop.f32.mrb[0].mxu0
        %v1024 = vpop.f32.mrb[0].mxu0
        %1025 = vdwg.mxu0
        %v1026 = vmul.f32 %v1021, 0.5
        %v1027 = vpack.c.bf16 %v1026, %v1026
        %v1028 = vpack.c.bf16 %v1021, %v1021
        %1030 = vrot.lane.b32.xlu0 %v1028, 124
        %v1031 = vpop.permute.xlu0 %1030
        %v1033 = vsel %vm323, %v1027, 0
        %v1036 = vsel %vm323, %v1031, 0
        %1038 = vmatprep.subr.bf16.mxu0 0
        %1039 = vmatpush1.bf16.xpose.msra.mxu0 %v1036
        %1040 = vmatprep.subr.bf16.mxu0 0
        %1041 = vmatpush1.bf16.xpose.msra.mxu0 0
        %1042 = vmatprep.subr.bf16.mxu0 0
        %1043 = vmatpush1.bf16.xpose.msra.mxu0 0
        %1044 = vmatprep.subr.bf16.mxu0 0
        %1045 = vmatpush1.bf16.xpose.msra.mxu0 0
        %1046 = vmatprep.subr.bf16.mxu0 0
        %1047 = vmatpush1.bf16.xpose.msra.mxu0 0
        %1048 = vmatprep.subr.bf16.mxu0 0
        %1049 = vmatpush1.bf16.xpose.msra.mxu0 0
        %1050 = vmatprep.subr.bf16.mxu0 0
        %1051 = vmatpush1.bf16.xpose.msra.mxu0 0
        %1052 = vmatprep.subr.bf16.mxu0 0
        %1053 = vmatpush1.bf16.xpose.msra.mxu0 0
        %1054 = vmatprep.subr.bf16.mxu0 0
        %1055 = vmatpush1.bf16.xpose.msra.mxu0 0
        %1056 = vmatprep.subr.bf16.mxu0 0
        %1057 = vmatpush1.bf16.xpose.msra.mxu0 0
        %1058 = vmatprep.subr.bf16.mxu0 0
        %1059 = vmatpush1.bf16.xpose.msra.mxu0 0
        %1060 = vmatprep.subr.bf16.mxu0 0
        %1061 = vmatpush1.bf16.xpose.msra.mxu0 0
        %1062 = vmatprep.subr.bf16.mxu0 0
        %1063 = vmatpush1.bf16.xpose.msra.mxu0 0
        %1064 = vmatprep.subr.bf16.mxu0 0
        %1065 = vmatpush1.bf16.xpose.msra.mxu0 0
        %1066 = vmatprep.subr.bf16.mxu0 0
        %1067 = vmatpush1.bf16.xpose.msra.mxu0 0
        %1068 = vmatprep.subr.bf16.mxu0 0
        %1069 = vmatpush1.bf16.xpose.msra.mxu0 0
        %1070 = vmatprep.mubr.bf16.mxu0 0
        %1071 = vmatmul.mubr.bf16.gmra.mrb[0].mxu0 %v1033
        %v1072 = vpop.f32.mrb[0].mxu0
        %v1073 = vadd.f32 0.0, %v1072
        %v1074 = vpop.f32.mrb[0].mxu0
        %v1075 = vpop.f32.mrb[0].mxu0
        %v1076 = vpop.f32.mrb[0].mxu0
        %1077 = vdwg.mxu0
        %v1078 = vsel %vm370, %v1073, -inf
        %1079 = vmax.xlane.f32.xlu0 %v1078
        %v1080 = vpop.xlane.xlu0 %1079
        %v1081 = vsub.f32 %v1073, %v1080
        %v1082 = vmul.f32 %v1081, 1.442695
        %v1083 = vpow.pop %v1082
        %v1084 = vsel %vm370, %v1083, 0.0
        %1085 = vadd.xlane.f32.xlu0 %v1084
        %v1086 = vpop.xlane.xlu0 %1085
        %v1087 = vpack.c.bf16 %v1083, %v1083
        %1088 = vrot.lane.b32.xlu0 %v1028, 120
        %v1089 = vpop.permute.xlu0 %1088
        %v1091 = vsel %vm370, %v1087, 0
        %v1094 = vsel %vm386, %v1089, 0
        %1096 = vmatprep.subr.bf16.mxu0 0
        %1097 = vmatpush1.bf16.msra.mxu0 %v1094
        %1098 = vmatprep.subr.bf16.mxu0 0
        %1099 = vmatpush1.bf16.msra.mxu0 0
        %1100 = vmatprep.subr.bf16.mxu0 0
        %1101 = vmatpush1.bf16.msra.mxu0 0
        %1102 = vmatprep.subr.bf16.mxu0 0
        %1103 = vmatpush1.bf16.msra.mxu0 0
        %1104 = vmatprep.subr.bf16.mxu0 0
        %1105 = vmatpush1.bf16.msra.mxu0 0
        %1106 = vmatprep.subr.bf16.mxu0 0
        %1107 = vmatpush1.bf16.msra.mxu0 0
        %1108 = vmatprep.subr.bf16.mxu0 0
        %1109 = vmatpush1.bf16.msra.mxu0 0
        %1110 = vmatprep.subr.bf16.mxu0 0
        %1111 = vmatpush1.bf16.msra.mxu0 0
        %1112 = vmatprep.subr.bf16.mxu0 0
        %1113 = vmatpush1.bf16.msra.mxu0 0
        %1114 = vmatprep.subr.bf16.mxu0 0
        %1115 = vmatpush1.bf16.msra.mxu0 0
        %1116 = vmatprep.subr.bf16.mxu0 0
        %1117 = vmatpush1.bf16.msra.mxu0 0
        %1118 = vmatprep.subr.bf16.mxu0 0
        %1119 = vmatpush1.bf16.msra.mxu0 0
        %1120 = vmatprep.subr.bf16.mxu0 0
        %1121 = vmatpush1.bf16.msra.mxu0 0
        %1122 = vmatprep.subr.bf16.mxu0 0
        %1123 = vmatpush1.bf16.msra.mxu0 0
        %1124 = vmatprep.subr.bf16.mxu0 0
        %1125 = vmatpush1.bf16.msra.mxu0 0
        %1126 = vmatprep.subr.bf16.mxu0 0
        %1127 = vmatpush1.bf16.msra.mxu0 0
        %1128 = vmatprep.mubr.bf16.mxu0 0
        %1129 = vmatmul.mubr.bf16.gmra.mrb[0].mxu0 %v1091
        %v1130 = vpop.f32.mrb[0].mxu0
        %v1131 = vadd.f32 0.0, %v1130
        %v1132 = vpop.f32.mrb[0].mxu0
        %v1133 = vpop.f32.mrb[0].mxu0
        %v1134 = vpop.f32.mrb[0].mxu0
        %1135 = vdwg.mxu0
        %v1136 = vrcp.pop %v1086
        %v1137 = vmul.f32 %v1131, %v1136
        %v1138 = vpack.c.bf16 %v1137, %v1137
        %v1140 = vunpack.c.l.b16 %v1138
        %v1141 = vpack.c.b16 %v1140, %v1140
        %1142 = vrot.lane.b32.xlu0 %v1141, 16
        %v1143 = vpop.permute.xlu0 %1142
        %vm1145 = vcmask 158848
        %1146 = vst.msk [vmem:[#allocation2] sm:$0xf] %vm1145, %v1143
        %s1147 = scalar_lea.vmem [#allocation6], 80
        %v1148 = vld [vmem:[%s1147] sm:$0xf]
        %v1149 = vld [vmem:[%s1147 + $0x4] sm:$0xf]
        %v1150 = vld [vmem:[%s1147 + $0x8] sm:$0xf]
        %v1151 = vld [vmem:[%s1147 + $0xc] sm:$0xf]
        %v1156 = vunpack.c.l.b16 %v1148
        %v1157 = vunpack.c.l.b16 %v1149
        %v1158 = vunpack.c.l.b16 %v1150
        %v1159 = vunpack.c.l.b16 %v1151
        %v1160 = vpack.c.b16 %v1157, %v1156
        %v1161 = vpack.c.b16 %v1159, %v1158
        %1164 = vmatprep.subr.bf16.mxu0 0
        %1165 = vmatpush1.bf16.msra.mxu0 %v1160
        %1166 = vmatprep.subr.bf16.mxu0 0
        %1167 = vmatpush1.bf16.msra.mxu0 %v1161
        %1168 = vmatprep.subr.bf16.mxu0 0
        %1169 = vmatpush1.bf16.msra.mxu0 0
        %1170 = vmatprep.subr.bf16.mxu0 0
        %1171 = vmatpush1.bf16.msra.mxu0 0
        %1172 = vmatprep.subr.bf16.mxu0 0
        %1173 = vmatpush1.bf16.msra.mxu0 0
        %1174 = vmatprep.subr.bf16.mxu0 0
        %1175 = vmatpush1.bf16.msra.mxu0 0
        %1176 = vmatprep.subr.bf16.mxu0 0
        %1177 = vmatpush1.bf16.msra.mxu0 0
        %1178 = vmatprep.subr.bf16.mxu0 0
        %1179 = vmatpush1.bf16.msra.mxu0 0
        %1180 = vmatprep.subr.bf16.mxu0 0
        %1181 = vmatpush1.bf16.msra.mxu0 0
        %1182 = vmatprep.subr.bf16.mxu0 0
        %1183 = vmatpush1.bf16.msra.mxu0 0
        %1184 = vmatprep.subr.bf16.mxu0 0
        %1185 = vmatpush1.bf16.msra.mxu0 0
        %1186 = vmatprep.subr.bf16.mxu0 0
        %1187 = vmatpush1.bf16.msra.mxu0 0
        %1188 = vmatprep.subr.bf16.mxu0 0
        %1189 = vmatpush1.bf16.msra.mxu0 0
        %1190 = vmatprep.subr.bf16.mxu0 0
        %1191 = vmatpush1.bf16.msra.mxu0 0
        %1192 = vmatprep.subr.bf16.mxu0 0
        %1193 = vmatpush1.bf16.msra.mxu0 0
        %1194 = vmatprep.subr.bf16.mxu0 0
        %1195 = vmatpush1.bf16.msra.mxu0 0
        %1196 = vmatprep.mubr.bf16.mxu0 0
        %1197 = vmatmul.mubr.bf16.gmra.mrb[0].mxu0 %v275
        %v1198 = vpop.f32.mrb[0].mxu0
        %v1199 = vadd.f32 0.0, %v1198
        %v1200 = vpop.f32.mrb[0].mxu0
        %v1201 = vpop.f32.mrb[0].mxu0
        %v1202 = vpop.f32.mrb[0].mxu0
        %1203 = vdwg.mxu0
        %v1204 = vmul.f32 %v1199, 0.5
        %v1205 = vpack.c.bf16 %v1204, %v1204
        %v1206 = vpack.c.bf16 %v1199, %v1199
        %1208 = vrot.lane.b32.xlu0 %v1206, 124
        %v1209 = vpop.permute.xlu0 %1208
        %v1211 = vsel %vm323, %v1205, 0
        %v1214 = vsel %vm323, %v1209, 0
        %1216 = vmatprep.subr.bf16.mxu0 0
        %1217 = vmatpush1.bf16.xpose.msra.mxu0 %v1214
        %1218 = vmatprep.subr.bf16.mxu0 0
        %1219 = vmatpush1.bf16.xpose.msra.mxu0 0
        %1220 = vmatprep.subr.bf16.mxu0 0
        %1221 = vmatpush1.bf16.xpose.msra.mxu0 0
        %1222 = vmatprep.subr.bf16.mxu0 0
        %1223 = vmatpush1.bf16.xpose.msra.mxu0 0
        %1224 = vmatprep.subr.bf16.mxu0 0
        %1225 = vmatpush1.bf16.xpose.msra.mxu0 0
        %1226 = vmatprep.subr.bf16.mxu0 0
        %1227 = vmatpush1.bf16.xpose.msra.mxu0 0
        %1228 = vmatprep.subr.bf16.mxu0 0
        %1229 = vmatpush1.bf16.xpose.msra.mxu0 0
        %1230 = vmatprep.subr.bf16.mxu0 0
        %1231 = vmatpush1.bf16.xpose.msra.mxu0 0
        %1232 = vmatprep.subr.bf16.mxu0 0
        %1233 = vmatpush1.bf16.xpose.msra.mxu0 0
        %1234 = vmatprep.subr.bf16.mxu0 0
        %1235 = vmatpush1.bf16.xpose.msra.mxu0 0
        %1236 = vmatprep.subr.bf16.mxu0 0
        %1237 = vmatpush1.bf16.xpose.msra.mxu0 0
        %1238 = vmatprep.subr.bf16.mxu0 0
        %1239 = vmatpush1.bf16.xpose.msra.mxu0 0
        %1240 = vmatprep.subr.bf16.mxu0 0
        %1241 = vmatpush1.bf16.xpose.msra.mxu0 0
        %1242 = vmatprep.subr.bf16.mxu0 0
        %1243 = vmatpush1.bf16.xpose.msra.mxu0 0
        %1244 = vmatprep.subr.bf16.mxu0 0
        %1245 = vmatpush1.bf16.xpose.msra.mxu0 0
        %1246 = vmatprep.subr.bf16.mxu0 0
        %1247 = vmatpush1.bf16.xpose.msra.mxu0 0
        %1248 = vmatprep.mubr.bf16.mxu0 0
        %1249 = vmatmul.mubr.bf16.gmra.mrb[0].mxu0 %v1211
        %v1250 = vpop.f32.mrb[0].mxu0
        %v1251 = vadd.f32 0.0, %v1250
        %v1252 = vpop.f32.mrb[0].mxu0
        %v1253 = vpop.f32.mrb[0].mxu0
        %v1254 = vpop.f32.mrb[0].mxu0
        %1255 = vdwg.mxu0
        %v1256 = vsel %vm370, %v1251, -inf
        %1257 = vmax.xlane.f32.xlu0 %v1256
        %v1258 = vpop.xlane.xlu0 %1257
        %v1259 = vsub.f32 %v1251, %v1258
        %v1260 = vmul.f32 %v1259, 1.442695
        %v1261 = vpow.pop %v1260
        %v1262 = vsel %vm370, %v1261, 0.0
        %1263 = vadd.xlane.f32.xlu0 %v1262
        %v1264 = vpop.xlane.xlu0 %1263
        %v1265 = vpack.c.bf16 %v1261, %v1261
        %1266 = vrot.lane.b32.xlu0 %v1206, 120
        %v1267 = vpop.permute.xlu0 %1266
        %v1269 = vsel %vm370, %v1265, 0
        %v1272 = vsel %vm386, %v1267, 0
        %1274 = vmatprep.subr.bf16.mxu0 0
        %1275 = vmatpush1.bf16.msra.mxu0 %v1272
        %1276 = vmatprep.subr.bf16.mxu0 0
        %1277 = vmatpush1.bf16.msra.mxu0 0
        %1278 = vmatprep.subr.bf16.mxu0 0
        %1279 = vmatpush1.bf16.msra.mxu0 0
        %1280 = vmatprep.subr.bf16.mxu0 0
        %1281 = vmatpush1.bf16.msra.mxu0 0
        %1282 = vmatprep.subr.bf16.mxu0 0
        %1283 = vmatpush1.bf16.msra.mxu0 0
        %1284 = vmatprep.subr.bf16.mxu0 0
        %1285 = vmatpush1.bf16.msra.mxu0 0
        %1286 = vmatprep.subr.bf16.mxu0 0
        %1287 = vmatpush1.bf16.msra.mxu0 0
        %1288 = vmatprep.subr.bf16.mxu0 0
        %1289 = vmatpush1.bf16.msra.mxu0 0
        %1290 = vmatprep.subr.bf16.mxu0 0
        %1291 = vmatpush1.bf16.msra.mxu0 0
        %1292 = vmatprep.subr.bf16.mxu0 0
        %1293 = vmatpush1.bf16.msra.mxu0 0
        %1294 = vmatprep.subr.bf16.mxu0 0
        %1295 = vmatpush1.bf16.msra.mxu0 0
        %1296 = vmatprep.subr.bf16.mxu0 0
        %1297 = vmatpush1.bf16.msra.mxu0 0
        %1298 = vmatprep.subr.bf16.mxu0 0
        %1299 = vmatpush1.bf16.msra.mxu0 0
        %1300 = vmatprep.subr.bf16.mxu0 0
        %1301 = vmatpush1.bf16.msra.mxu0 0
        %1302 = vmatprep.subr.bf16.mxu0 0
        %1303 = vmatpush1.bf16.msra.mxu0 0
        %1304 = vmatprep.subr.bf16.mxu0 0
        %1305 = vmatpush1.bf16.msra.mxu0 0
        %1306 = vmatprep.mubr.bf16.mxu0 0
        %1307 = vmatmul.mubr.bf16.gmra.mrb[0].mxu0 %v1269
        %v1308 = vpop.f32.mrb[0].mxu0
        %v1309 = vadd.f32 0.0, %v1308
        %v1310 = vpop.f32.mrb[0].mxu0
        %v1311 = vpop.f32.mrb[0].mxu0
        %v1312 = vpop.f32.mrb[0].mxu0
        %1313 = vdwg.mxu0
        %v1314 = vrcp.pop %v1264
        %v1315 = vmul.f32 %v1309, %v1314
        %v1316 = vpack.c.bf16 %v1315, %v1315
        %v1318 = vunpack.c.l.b16 %v1316
        %v1319 = vpack.c.b16 %v1318, %v1318
        %1320 = vrot.lane.b32.xlu0 %v1319, 20
        %v1321 = vpop.permute.xlu0 %1320
        %vm1323 = vcmask 191648
        %1324 = vst.msk [vmem:[#allocation2] sm:$0xf] %vm1323, %v1321
        %s1325 = scalar_lea.vmem [#allocation6], 96
        %v1326 = vld [vmem:[%s1325] sm:$0xf]
        %v1327 = vld [vmem:[%s1325 + $0x4] sm:$0xf]
        %v1328 = vld [vmem:[%s1325 + $0x8] sm:$0xf]
        %v1329 = vld [vmem:[%s1325 + $0xc] sm:$0xf]
        %v1334 = vunpack.c.l.b16 %v1326
        %v1335 = vunpack.c.l.b16 %v1327
        %v1336 = vunpack.c.l.b16 %v1328
        %v1337 = vunpack.c.l.b16 %v1329
        %v1338 = vpack.c.b16 %v1335, %v1334
        %v1339 = vpack.c.b16 %v1337, %v1336
        %1342 = vmatprep.subr.bf16.mxu0 0
        %1343 = vmatpush1.bf16.msra.mxu0 %v1338
        %1344 = vmatprep.subr.bf16.mxu0 0
        %1345 = vmatpush1.bf16.msra.mxu0 %v1339
        %1346 = vmatprep.subr.bf16.mxu0 0
        %1347 = vmatpush1.bf16.msra.mxu0 0
        %1348 = vmatprep.subr.bf16.mxu0 0
        %1349 = vmatpush1.bf16.msra.mxu0 0
        %1350 = vmatprep.subr.bf16.mxu0 0
        %1351 = vmatpush1.bf16.msra.mxu0 0
        %1352 = vmatprep.subr.bf16.mxu0 0
        %1353 = vmatpush1.bf16.msra.mxu0 0
        %1354 = vmatprep.subr.bf16.mxu0 0
        %1355 = vmatpush1.bf16.msra.mxu0 0
        %1356 = vmatprep.subr.bf16.mxu0 0
        %1357 = vmatpush1.bf16.msra.mxu0 0
        %1358 = vmatprep.subr.bf16.mxu0 0
        %1359 = vmatpush1.bf16.msra.mxu0 0
        %1360 = vmatprep.subr.bf16.mxu0 0
        %1361 = vmatpush1.bf16.msra.mxu0 0
        %1362 = vmatprep.subr.bf16.mxu0 0
        %1363 = vmatpush1.bf16.msra.mxu0 0
        %1364 = vmatprep.subr.bf16.mxu0 0
        %1365 = vmatpush1.bf16.msra.mxu0 0
        %1366 = vmatprep.subr.bf16.mxu0 0
        %1367 = vmatpush1.bf16.msra.mxu0 0
        %1368 = vmatprep.subr.bf16.mxu0 0
        %1369 = vmatpush1.bf16.msra.mxu0 0
        %1370 = vmatprep.subr.bf16.mxu0 0
        %1371 = vmatpush1.bf16.msra.mxu0 0
        %1372 = vmatprep.subr.bf16.mxu0 0
        %1373 = vmatpush1.bf16.msra.mxu0 0
        %1374 = vmatprep.mubr.bf16.mxu0 0
        %1375 = vmatmul.mubr.bf16.gmra.mrb[0].mxu0 %v275
        %v1376 = vpop.f32.mrb[0].mxu0
        %v1377 = vadd.f32 0.0, %v1376
        %v1378 = vpop.f32.mrb[0].mxu0
        %v1379 = vpop.f32.mrb[0].mxu0
        %v1380 = vpop.f32.mrb[0].mxu0
        %1381 = vdwg.mxu0
        %v1382 = vmul.f32 %v1377, 0.5
        %v1383 = vpack.c.bf16 %v1382, %v1382
        %v1384 = vpack.c.bf16 %v1377, %v1377
        %1386 = vrot.lane.b32.xlu0 %v1384, 124
        %v1387 = vpop.permute.xlu0 %1386
        %v1389 = vsel %vm323, %v1383, 0
        %v1392 = vsel %vm323, %v1387, 0
        %1394 = vmatprep.subr.bf16.mxu0 0
        %1395 = vmatpush1.bf16.xpose.msra.mxu0 %v1392
        %1396 = vmatprep.subr.bf16.mxu0 0
        %1397 = vmatpush1.bf16.xpose.msra.mxu0 0
        %1398 = vmatprep.subr.bf16.mxu0 0
        %1399 = vmatpush1.bf16.xpose.msra.mxu0 0
        %1400 = vmatprep.subr.bf16.mxu0 0
        %1401 = vmatpush1.bf16.xpose.msra.mxu0 0
        %1402 = vmatprep.subr.bf16.mxu0 0
        %1403 = vmatpush1.bf16.xpose.msra.mxu0 0
        %1404 = vmatprep.subr.bf16.mxu0 0
        %1405 = vmatpush1.bf16.xpose.msra.mxu0 0
        %1406 = vmatprep.subr.bf16.mxu0 0
        %1407 = vmatpush1.bf16.xpose.msra.mxu0 0
        %1408 = vmatprep.subr.bf16.mxu0 0
        %1409 = vmatpush1.bf16.xpose.msra.mxu0 0
        %1410 = vmatprep.subr.bf16.mxu0 0
        %1411 = vmatpush1.bf16.xpose.msra.mxu0 0
        %1412 = vmatprep.subr.bf16.mxu0 0
        %1413 = vmatpush1.bf16.xpose.msra.mxu0 0
        %1414 = vmatprep.subr.bf16.mxu0 0
        %1415 = vmatpush1.bf16.xpose.msra.mxu0 0
        %1416 = vmatprep.subr.bf16.mxu0 0
        %1417 = vmatpush1.bf16.xpose.msra.mxu0 0
        %1418 = vmatprep.subr.bf16.mxu0 0
        %1419 = vmatpush1.bf16.xpose.msra.mxu0 0
        %1420 = vmatprep.subr.bf16.mxu0 0
        %1421 = vmatpush1.bf16.xpose.msra.mxu0 0
        %1422 = vmatprep.subr.bf16.mxu0 0
        %1423 = vmatpush1.bf16.xpose.msra.mxu0 0
        %1424 = vmatprep.subr.bf16.mxu0 0
        %1425 = vmatpush1.bf16.xpose.msra.mxu0 0
        %1426 = vmatprep.mubr.bf16.mxu0 0
        %1427 = vmatmul.mubr.bf16.gmra.mrb[0].mxu0 %v1389
        %v1428 = vpop.f32.mrb[0].mxu0
        %v1429 = vadd.f32 0.0, %v1428
        %v1430 = vpop.f32.mrb[0].mxu0
        %v1431 = vpop.f32.mrb[0].mxu0
        %v1432 = vpop.f32.mrb[0].mxu0
        %1433 = vdwg.mxu0
        %v1434 = vsel %vm370, %v1429, -inf
        %1435 = vmax.xlane.f32.xlu0 %v1434
        %v1436 = vpop.xlane.xlu0 %1435
        %v1437 = vsub.f32 %v1429, %v1436
        %v1438 = vmul.f32 %v1437, 1.442695
        %v1439 = vpow.pop %v1438
        %v1440 = vsel %vm370, %v1439, 0.0
        %1441 = vadd.xlane.f32.xlu0 %v1440
        %v1442 = vpop.xlane.xlu0 %1441
        %v1443 = vpack.c.bf16 %v1439, %v1439
        %1444 = vrot.lane.b32.xlu0 %v1384, 120
        %v1445 = vpop.permute.xlu0 %1444
        %v1447 = vsel %vm370, %v1443, 0
        %v1450 = vsel %vm386, %v1445, 0
        %1452 = vmatprep.subr.bf16.mxu0 0
        %1453 = vmatpush1.bf16.msra.mxu0 %v1450
        %1454 = vmatprep.subr.bf16.mxu0 0
        %1455 = vmatpush1.bf16.msra.mxu0 0
        %1456 = vmatprep.subr.bf16.mxu0 0
        %1457 = vmatpush1.bf16.msra.mxu0 0
        %1458 = vmatprep.subr.bf16.mxu0 0
        %1459 = vmatpush1.bf16.msra.mxu0 0
        %1460 = vmatprep.subr.bf16.mxu0 0
        %1461 = vmatpush1.bf16.msra.mxu0 0
        %1462 = vmatprep.subr.bf16.mxu0 0
        %1463 = vmatpush1.bf16.msra.mxu0 0
        %1464 = vmatprep.subr.bf16.mxu0 0
        %1465 = vmatpush1.bf16.msra.mxu0 0
        %1466 = vmatprep.subr.bf16.mxu0 0
        %1467 = vmatpush1.bf16.msra.mxu0 0
        %1468 = vmatprep.subr.bf16.mxu0 0
        %1469 = vmatpush1.bf16.msra.mxu0 0
        %1470 = vmatprep.subr.bf16.mxu0 0
        %1471 = vmatpush1.bf16.msra.mxu0 0
        %1472 = vmatprep.subr.bf16.mxu0 0
        %1473 = vmatpush1.bf16.msra.mxu0 0
        %1474 = vmatprep.subr.bf16.mxu0 0
        %1475 = vmatpush1.bf16.msra.mxu0 0
        %1476 = vmatprep.subr.bf16.mxu0 0
        %1477 = vmatpush1.bf16.msra.mxu0 0
        %1478 = vmatprep.subr.bf16.mxu0 0
        %1479 = vmatpush1.bf16.msra.mxu0 0
        %1480 = vmatprep.subr.bf16.mxu0 0
        %1481 = vmatpush1.bf16.msra.mxu0 0
        %1482 = vmatprep.subr.bf16.mxu0 0
        %1483 = vmatpush1.bf16.msra.mxu0 0
        %1484 = vmatprep.mubr.bf16.mxu0 0
        %1485 = vmatmul.mubr.bf16.gmra.mrb[0].mxu0 %v1447
        %v1486 = vpop.f32.mrb[0].mxu0
        %v1487 = vadd.f32 0.0, %v1486
        %v1488 = vpop.f32.mrb[0].mxu0
        %v1489 = vpop.f32.mrb[0].mxu0
        %v1490 = vpop.f32.mrb[0].mxu0
        %1491 = vdwg.mxu0
        %v1492 = vrcp.pop %v1442
        %v1493 = vmul.f32 %v1487, %v1492
        %v1494 = vpack.c.bf16 %v1493, %v1493
        %v1496 = vunpack.c.l.b16 %v1494
        %v1497 = vpack.c.b16 %v1496, %v1496
        %1498 = vrot.lane.b32.xlu0 %v1497, 24
        %v1499 = vpop.permute.xlu0 %1498
        %vm1501 = vcmask 224448
        %1502 = vst.msk [vmem:[#allocation2] sm:$0xf] %vm1501, %v1499
        %s1503 = scalar_lea.vmem [#allocation6], 112
        %v1504 = vld [vmem:[%s1503] sm:$0xf]
        %v1505 = vld [vmem:[%s1503 + $0x4] sm:$0xf]
        %v1506 = vld [vmem:[%s1503 + $0x8] sm:$0xf]
        %v1507 = vld [vmem:[%s1503 + $0xc] sm:$0xf]
        %v1512 = vunpack.c.l.b16 %v1504
        %v1513 = vunpack.c.l.b16 %v1505
        %v1514 = vunpack.c.l.b16 %v1506
        %v1515 = vunpack.c.l.b16 %v1507
        %v1516 = vpack.c.b16 %v1513, %v1512
        %v1517 = vpack.c.b16 %v1515, %v1514
        %1520 = vmatprep.subr.bf16.mxu0 0
        %1521 = vmatpush1.bf16.msra.mxu0 %v1516
        %1522 = vmatprep.subr.bf16.mxu0 0
        %1523 = vmatpush1.bf16.msra.mxu0 %v1517
        %1524 = vmatprep.subr.bf16.mxu0 0
        %1525 = vmatpush1.bf16.msra.mxu0 0
        %1526 = vmatprep.subr.bf16.mxu0 0
        %1527 = vmatpush1.bf16.msra.mxu0 0
        %1528 = vmatprep.subr.bf16.mxu0 0
        %1529 = vmatpush1.bf16.msra.mxu0 0
        %1530 = vmatprep.subr.bf16.mxu0 0
        %1531 = vmatpush1.bf16.msra.mxu0 0
        %1532 = vmatprep.subr.bf16.mxu0 0
        %1533 = vmatpush1.bf16.msra.mxu0 0
        %1534 = vmatprep.subr.bf16.mxu0 0
        %1535 = vmatpush1.bf16.msra.mxu0 0
        %1536 = vmatprep.subr.bf16.mxu0 0
        %1537 = vmatpush1.bf16.msra.mxu0 0
        %1538 = vmatprep.subr.bf16.mxu0 0
        %1539 = vmatpush1.bf16.msra.mxu0 0
        %1540 = vmatprep.subr.bf16.mxu0 0
        %1541 = vmatpush1.bf16.msra.mxu0 0
        %1542 = vmatprep.subr.bf16.mxu0 0
        %1543 = vmatpush1.bf16.msra.mxu0 0
        %1544 = vmatprep.subr.bf16.mxu0 0
        %1545 = vmatpush1.bf16.msra.mxu0 0
        %1546 = vmatprep.subr.bf16.mxu0 0
        %1547 = vmatpush1.bf16.msra.mxu0 0
        %1548 = vmatprep.subr.bf16.mxu0 0
        %1549 = vmatpush1.bf16.msra.mxu0 0
        %1550 = vmatprep.subr.bf16.mxu0 0
        %1551 = vmatpush1.bf16.msra.mxu0 0
        %1552 = vmatprep.mubr.bf16.mxu0 0
        %1553 = vmatmul.mubr.bf16.gmra.mrb[0].mxu0 %v275
        %v1554 = vpop.f32.mrb[0].mxu0
        %v1555 = vadd.f32 0.0, %v1554
        %v1556 = vpop.f32.mrb[0].mxu0
        %v1557 = vpop.f32.mrb[0].mxu0
        %v1558 = vpop.f32.mrb[0].mxu0
        %1559 = vdwg.mxu0
        %v1560 = vmul.f32 %v1555, 0.5
        %v1561 = vpack.c.bf16 %v1560, %v1560
        %v1562 = vpack.c.bf16 %v1555, %v1555
        %1564 = vrot.lane.b32.xlu0 %v1562, 124
        %v1565 = vpop.permute.xlu0 %1564
        %v1567 = vsel %vm323, %v1561, 0
        %v1570 = vsel %vm323, %v1565, 0
        %1572 = vmatprep.subr.bf16.mxu0 0
        %1573 = vmatpush1.bf16.xpose.msra.mxu0 %v1570
        %1574 = vmatprep.subr.bf16.mxu0 0
        %1575 = vmatpush1.bf16.xpose.msra.mxu0 0
        %1576 = vmatprep.subr.bf16.mxu0 0
        %1577 = vmatpush1.bf16.xpose.msra.mxu0 0
        %1578 = vmatprep.subr.bf16.mxu0 0
        %1579 = vmatpush1.bf16.xpose.msra.mxu0 0
        %1580 = vmatprep.subr.bf16.mxu0 0
        %1581 = vmatpush1.bf16.xpose.msra.mxu0 0
        %1582 = vmatprep.subr.bf16.mxu0 0
        %1583 = vmatpush1.bf16.xpose.msra.mxu0 0
        %1584 = vmatprep.subr.bf16.mxu0 0
        %1585 = vmatpush1.bf16.xpose.msra.mxu0 0
        %1586 = vmatprep.subr.bf16.mxu0 0
        %1587 = vmatpush1.bf16.xpose.msra.mxu0 0
        %1588 = vmatprep.subr.bf16.mxu0 0
        %1589 = vmatpush1.bf16.xpose.msra.mxu0 0
        %1590 = vmatprep.subr.bf16.mxu0 0
        %1591 = vmatpush1.bf16.xpose.msra.mxu0 0
        %1592 = vmatprep.subr.bf16.mxu0 0
        %1593 = vmatpush1.bf16.xpose.msra.mxu0 0
        %1594 = vmatprep.subr.bf16.mxu0 0
        %1595 = vmatpush1.bf16.xpose.msra.mxu0 0
        %1596 = vmatprep.subr.bf16.mxu0 0
        %1597 = vmatpush1.bf16.xpose.msra.mxu0 0
        %1598 = vmatprep.subr.bf16.mxu0 0
        %1599 = vmatpush1.bf16.xpose.msra.mxu0 0
        %1600 = vmatprep.subr.bf16.mxu0 0
        %1601 = vmatpush1.bf16.xpose.msra.mxu0 0
        %1602 = vmatprep.subr.bf16.mxu0 0
        %1603 = vmatpush1.bf16.xpose.msra.mxu0 0
        %1604 = vmatprep.mubr.bf16.mxu0 0
        %1605 = vmatmul.mubr.bf16.gmra.mrb[0].mxu0 %v1567
        %v1606 = vpop.f32.mrb[0].mxu0
        %v1607 = vadd.f32 0.0, %v1606
        %v1608 = vpop.f32.mrb[0].mxu0
        %v1609 = vpop.f32.mrb[0].mxu0
        %v1610 = vpop.f32.mrb[0].mxu0
        %1611 = vdwg.mxu0
        %v1612 = vsel %vm370, %v1607, -inf
        %1613 = vmax.xlane.f32.xlu0 %v1612
        %v1614 = vpop.xlane.xlu0 %1613
        %v1615 = vsub.f32 %v1607, %v1614
        %v1616 = vmul.f32 %v1615, 1.442695
        %v1617 = vpow.pop %v1616
        %v1618 = vsel %vm370, %v1617, 0.0
        %1619 = vadd.xlane.f32.xlu0 %v1618
        %v1620 = vpop.xlane.xlu0 %1619
        %v1621 = vpack.c.bf16 %v1617, %v1617
        %1622 = vrot.lane.b32.xlu0 %v1562, 120
        %v1623 = vpop.permute.xlu0 %1622
        %v1625 = vsel %vm370, %v1621, 0
        %v1628 = vsel %vm386, %v1623, 0
        %1630 = vmatprep.subr.bf16.mxu0 0
        %1631 = vmatpush1.bf16.msra.mxu0 %v1628
        %1632 = vmatprep.subr.bf16.mxu0 0
        %1633 = vmatpush1.bf16.msra.mxu0 0
        %1634 = vmatprep.subr.bf16.mxu0 0
        %1635 = vmatpush1.bf16.msra.mxu0 0
        %1636 = vmatprep.subr.bf16.mxu0 0
        %1637 = vmatpush1.bf16.msra.mxu0 0
        %1638 = vmatprep.subr.bf16.mxu0 0
        %1639 = vmatpush1.bf16.msra.mxu0 0
        %1640 = vmatprep.subr.bf16.mxu0 0
        %1641 = vmatpush1.bf16.msra.mxu0 0
        %1642 = vmatprep.subr.bf16.mxu0 0
        %1643 = vmatpush1.bf16.msra.mxu0 0
        %1644 = vmatprep.subr.bf16.mxu0 0
        %1645 = vmatpush1.bf16.msra.mxu0 0
        %1646 = vmatprep.subr.bf16.mxu0 0
        %1647 = vmatpush1.bf16.msra.mxu0 0
        %1648 = vmatprep.subr.bf16.mxu0 0
        %1649 = vmatpush1.bf16.msra.mxu0 0
        %1650 = vmatprep.subr.bf16.mxu0 0
        %1651 = vmatpush1.bf16.msra.mxu0 0
        %1652 = vmatprep.subr.bf16.mxu0 0
        %1653 = vmatpush1.bf16.msra.mxu0 0
        %1654 = vmatprep.subr.bf16.mxu0 0
        %1655 = vmatpush1.bf16.msra.mxu0 0
        %1656 = vmatprep.subr.bf16.mxu0 0
        %1657 = vmatpush1.bf16.msra.mxu0 0
        %1658 = vmatprep.subr.bf16.mxu0 0
        %1659 = vmatpush1.bf16.msra.mxu0 0
        %1660 = vmatprep.subr.bf16.mxu0 0
        %1661 = vmatpush1.bf16.msra.mxu0 0
        %1662 = vmatprep.mubr.bf16.mxu0 0
        %1663 = vmatmul.mubr.bf16.gmra.mrb[0].mxu0 %v1625
        %v1664 = vpop.f32.mrb[0].mxu0
        %v1665 = vadd.f32 0.0, %v1664
        %v1666 = vpop.f32.mrb[0].mxu0
        %v1667 = vpop.f32.mrb[0].mxu0
        %v1668 = vpop.f32.mrb[0].mxu0
        %1669 = vdwg.mxu0
        %v1670 = vrcp.pop %v1620
        %v1671 = vmul.f32 %v1665, %v1670
        %v1672 = vpack.c.bf16 %v1671, %v1671
        %v1674 = vunpack.c.l.b16 %v1672
        %v1675 = vpack.c.b16 %v1674, %v1674
        %1676 = vrot.lane.b32.xlu0 %v1675, 28
        %v1677 = vpop.permute.xlu0 %1676
        %vm1679 = vcmask 257248
        %1680 = vst.msk [vmem:[#allocation2] sm:$0xf] %vm1679, %v1677
        %v1681 = vld [vmem:[#allocation2] sm:$0xf]
        %v1682 = vld [vmem:[#allocation8] sm:$0xf]
        %v1683 = vld [vmem:[#allocation8 + $0x4] sm:$0xf]
        %v1684 = vld [vmem:[#allocation8 + $0x8] sm:$0xf]
        %v1685 = vld [vmem:[#allocation8 + $0xc] sm:$0xf]
        %v1686 = vld [vmem:[#allocation9] sm:$0x1]
        %v1688 = vlaneseq
        %v1689 = vshrl.u32 %v1688, 7
        %v1690 = vsub.s32 0, %v1689
        %v1691 = vrot.slane %v1686, %v1690
        %v1697 = vunpack.c.l.b16 %v1682
        %v1698 = vunpack.c.l.b16 %v1683
        %v1699 = vunpack.c.l.b16 %v1684
        %v1700 = vunpack.c.l.b16 %v1685
        %v1701 = vpack.c.b16 %v1698, %v1697
        %v1702 = vpack.c.b16 %v1700, %v1699
        %v1706 = vsel %vm273, %v1681, 0
        %1708 = vmatprep.subr.bf16.mxu0 0
        %1709 = vmatpush1.bf16.msra.mxu0 %v1701
        %1710 = vmatprep.subr.bf16.mxu0 0
        %1711 = vmatpush1.bf16.msra.mxu0 %v1702
        %1712 = vmatprep.subr.bf16.mxu0 0
        %1713 = vmatpush1.bf16.msra.mxu0 0
        %1714 = vmatprep.subr.bf16.mxu0 0
        %1715 = vmatpush1.bf16.msra.mxu0 0
        %1716 = vmatprep.subr.bf16.mxu0 0
        %1717 = vmatpush1.bf16.msra.mxu0 0
        %1718 = vmatprep.subr.bf16.mxu0 0
        %1719 = vmatpush1.bf16.msra.mxu0 0
        %1720 = vmatprep.subr.bf16.mxu0 0
        %1721 = vmatpush1.bf16.msra.mxu0 0
        %1722 = vmatprep.subr.bf16.mxu0 0
        %1723 = vmatpush1.bf16.msra.mxu0 0
        %1724 = vmatprep.subr.bf16.mxu0 0
        %1725 = vmatpush1.bf16.msra.mxu0 0
        %1726 = vmatprep.subr.bf16.mxu0 0
        %1727 = vmatpush1.bf16.msra.mxu0 0
        %1728 = vmatprep.subr.bf16.mxu0 0
        %1729 = vmatpush1.bf16.msra.mxu0 0
        %1730 = vmatprep.subr.bf16.mxu0 0
        %1731 = vmatpush1.bf16.msra.mxu0 0
        %1732 = vmatprep.subr.bf16.mxu0 0
        %1733 = vmatpush1.bf16.msra.mxu0 0
        %1734 = vmatprep.subr.bf16.mxu0 0
        %1735 = vmatpush1.bf16.msra.mxu0 0
        %1736 = vmatprep.subr.bf16.mxu0 0
        %1737 = vmatpush1.bf16.msra.mxu0 0
        %1738 = vmatprep.subr.bf16.mxu0 0
        %1739 = vmatpush1.bf16.msra.mxu0 0
        %1740 = vmatprep.mubr.bf16.mxu0 0
        %1741 = vmatmul.mubr.bf16.gmra.mrb[0].mxu0 %v1706
        %v1742 = vpop.f32.mrb[0].mxu0
        %v1743 = vadd.f32 %v1691, %v1742
        %v1744 = vpop.f32.mrb[0].mxu0
        %v1745 = vpop.f32.mrb[0].mxu0
        %v1746 = vpop.f32.mrb[0].mxu0
        %1747 = vdwg.mxu0
        %1748 = vst.msk [vmem:[%s254] sm:$0xff] %vm273, %v1743
        %s1749 = sand.u32 %s120, 1
        %s1750 = scalar_lea.sflag [#allocation5], %s1749
        %s1751 = sand.u32 %s120, 1
        %s1752 = smul.addr %s1751, 8
        %s1753 = scalar_lea.vmem [#allocation11], %s1752
        // Predicated region
        $region53: #{tpu_custom_call.1} parent=35 // pred_check
          %p1754 = pneg %p130
        $region54: #{tpu_custom_call.1} parent=35 // pred_check_branch
          %1756 = sbr.rel (%p1754) target = $region56
        $region55: #{tpu_custom_call.1} parent=35 // pred_region
          %s1758 = ssub.s32 128, 128
          %1759 = vsyncadd %s1750, %s1758
          %s1760 = smul.addr %s23, 128
          %s1761 = scalar_lea.hbm %s4, %s1760
          %s1763 = sshll.u32 %s1753, 4
          %s1764 = int_to_ptr.vmem [resolvable:$true] %s1763
          %1766 = dma.vmem_to_hbm [thread:$0]  %s1764, 128, %s1761, %s1750
        $region56: #{tpu_custom_call.1} parent=35 // pred_fallthru
          _
      $region36: #{tpu_custom_call.1} parent=5 // pred_fallthru
        _
      %p1767 = scmp.le.s32.totalorder 2, %s18
      // Predicated region
      $region57: #{tpu_custom_call.1} parent=5 // pred_check
        %p1768 = pneg %p1767
      $region58: #{tpu_custom_call.1} parent=5 // pred_check_branch
        %1770 = sbr.rel (%p1768) target = $region60
      $region59: #{tpu_custom_call.1} parent=5 // pred_region
        %s1771 = ssub.s32 %s18, 2
        // Predicated region
        $region61: #{tpu_custom_call.1} parent=59 // pred_check
          %p1772 = pneg %p136
        $region62: #{tpu_custom_call.1} parent=59 // pred_check_branch
          %1774 = sbr.rel (%p1772) target = $region64
        $region63: #{tpu_custom_call.1} parent=59 // pred_region
          %s1775 = sand.u32 %s121, 1
          %s1776 = scalar_lea.sflag [#allocation5], %s1775
          %s1777 = sand.u32 %s121, 1
          %s1778 = smul.addr %s1777, 8
          %s1779 = scalar_lea.vmem [#allocation11], %s1778
          %1780 = dma.done %s1776, 128
        $region64: #{tpu_custom_call.1} parent=59 // pred_fallthru
          _
      $region60: #{tpu_custom_call.1} parent=5 // pred_fallthru
        _
    $region6: #{tpu_custom_call.1} parent=1 // loop_footer
      %s22 = sadd.s32 1, %s18
    $region7: #{tpu_custom_call.1} parent=1 // loop_footer_branch
      %17 = sbr.rel target = $region3
    $region8: #{tpu_custom_call.1} parent=1 // loop_exit
      _
    %1781 = vsyncpa [#allocation4], 1
    %s1782 = scalar_lea.sflag [#allocation4], 1
    %1783 = vsyncpa %s1782, 1
    %1784 = vsyncpa [#allocation7], 1
    %1785 = vsyncpa [#allocation10], 1
    %1786 = vsyncpa [#allocation5], 1
    %s1787 = scalar_lea.sflag [#allocation5], 1
    %1788 = vsyncpa %s1787, 1

</llo_original>
